<compile_context>
chip_gen: v6e
topology: v6e:2x2x1
jax: 0.10.0
libtpu: 0.0.40
codegen_flags: <defaults>
</compile_context>

<pallas_src>
import numpy as np

import jax
import jax.numpy as jnp
from jax.experimental import pallas as pl
from jax.experimental.pallas import tpu as pltpu


def _round_up(x, m):
    return ((x + m - 1) // m) * m


# -------------------- one-time host-side prep --------------------

def _build_shift_mats(h, w, stride, pad=1, k=3):
    """(k*k, H*W, Ho*Wo) 0/1 selection matrices: column (ho,wo) of tap (di,dj)
    selects input position (stride*ho+di-pad, stride*wo+dj-pad) or nothing."""
    ho = (h + 2 * pad - k) // stride + 1
    wo = (w + 2 * pad - k) // stride + 1
    mats = np.zeros((k * k, h * w, ho * wo), np.float32)
    for di in range(k):
        for dj in range(k):
            t = di * k + dj
            for oh in range(ho):
                ih = stride * oh + di - pad
                if ih < 0 or ih >= h:
                    continue
                for ow in range(wo):
                    iw = stride * ow + dj - pad
                    if iw < 0 or iw >= w:
                        continue
                    mats[t, ih * w + iw, oh * wo + ow] = 1.0
    return jnp.asarray(mats, jnp.bfloat16), ho, wo


def prepare_params(conv_params, strides, fc_params, in_h, in_w):
    """One-time reformat (hoisted out of the forward path):
       conv layer l -> (S_l (9,HWin,HWout) bf16, W_l (9,Cout,Cin) bf16, b_l (Cout,1) f32)
       fc           -> (Wfc (ncls,hid) bf16, bfc (ncls,1) f32)."""
    h, w = in_h, in_w
    prepped = []
    for layer_idx, ((wt, bt), s) in enumerate(zip(conv_params, strides)):
        cout, cin, kh, kw = wt.shape
        smat, ho, wo = _build_shift_mats(h, w, s, pad=1, k=kh)
        wstack = jnp.transpose(wt, (2, 3, 0, 1)).reshape(kh * kw, cout, cin)
        if layer_idx == 0:
            cin_pad = _round_up(cin, 8)              # sublane multiple for the input
            if cin_pad != cin:
                wstack = jnp.pad(wstack, ((0, 0), (0, 0), (0, cin_pad - cin)))
        prepped.append((smat,
                        wstack.astype(jnp.bfloat16),
                        bt.reshape(cout, 1).astype(jnp.float32)))
        h, w = ho, wo
    w_fc, b_fc = fc_params
    ncls = w_fc.shape[0]
    prepped_fc = (w_fc.astype(jnp.bfloat16),
                  b_fc.reshape(ncls, 1).astype(jnp.float32))
    return tuple(prepped), prepped_fc


# -------------------- fused Pallas kernel --------------------

def _make_fused_cnn_kernel(num_layers, hw_last):
    inv_hw = 1.0 / float(hw_last)

    def kernel(*refs):
        # refs = (x, S_0, W_0, b_0, ..., S_{L-1}, W_{L-1}, b_{L-1}, Wfc, bfc, out)
        x_ref = refs[0]
        wfc_ref = refs[1 + 3 * num_layers]
        bfc_ref = refs[2 + 3 * num_layers]
        o_ref = refs[3 + 3 * num_layers]

        a = x_ref[0]                                    # (Cin, HW0) bf16
        for l in range(num_layers):
            s_ref = refs[1 + 3 * l]                     # (9, HWin, HWout) bf16
            w_ref = refs[2 + 3 * l]                     # (9, Cout, Cin)   bf16
            b_ref = refs[3 + 3 * l]                     # (Cout, 1)        f32
            acc = None
            for t in range(s_ref.shape[0]):             # 9 kernel taps, unrolled
                # gather shifted input window (exact 0/1 selection), MXU
                g = jnp.dot(a, s_ref[t], preferred_element_type=jnp.float32)
                part = jnp.dot(w_ref[t], g.astype(jnp.bfloat16),
                               preferred_element_type=jnp.float32)
                acc = part if acc is None else acc + part
            act = jnp.maximum(acc + b_ref[...], 0.0)    # f32 bias + ReLU
            a = act.astype(jnp.bfloat16)                # VMEM-resident activation

        # FC then mean (== mean then FC by linearity); pool = XLU lane reduce.
        tfc = jnp.dot(wfc_ref[...], a, preferred_element_type=jnp.float32)   # (ncls, HW)
        logits = jnp.sum(tfc, axis=1, keepdims=True) * inv_hw + bfc_ref[...]  # (ncls, 1)
        o_ref[0] = logits

    return kernel


@jax.jit
def cnn_forward(x_nchw, prepped_conv, prepped_fc):
    n, c, h, w = x_nchw.shape
    num_layers = len(prepped_conv)
    hw_last = prepped_conv[-1][0].shape[2]
    cin_pad = prepped_conv[0][1].shape[2]
    wfc, bfc = prepped_fc
    ncls = wfc.shape[0]

    # Cheap one-shot input prep (pad channels to sublane multiple, flatten HW, bf16).
    x = x_nchw.astype(jnp.bfloat16)
    if cin_pad != c:
        x = jnp.pad(x, ((0, 0), (0, cin_pad - c), (0, 0), (0, 0)))
    x3d = x.reshape(n, cin_pad, h * w)

    operands = [x3d]
    in_specs = [pl.BlockSpec((1, cin_pad, h * w), lambda i: (i, 0, 0))]
    for (smat, wstack, bias) in prepped_conv:
        in_specs.append(pl.BlockSpec(smat.shape, lambda i: (0, 0, 0)))    # resident
        in_specs.append(pl.BlockSpec(wstack.shape, lambda i: (0, 0, 0)))  # resident
        in_specs.append(pl.BlockSpec(bias.shape, lambda i: (0, 0)))       # resident
        operands += [smat, wstack, bias]
    in_specs.append(pl.BlockSpec(wfc.shape, lambda i: (0, 0)))
    in_specs.append(pl.BlockSpec(bfc.shape, lambda i: (0, 0)))
    operands += [wfc, bfc]

    out3 = pl.pallas_call(
        _make_fused_cnn_kernel(num_layers, hw_last),
        out_shape=jax.ShapeDtypeStruct((n, ncls, 1), jnp.float32),
        grid=(n,),
        in_specs=in_specs,
        out_specs=pl.BlockSpec((1, ncls, 1), lambda i: (i, 0, 0)),
        compiler_params=pltpu.CompilerParams(
            dimension_semantics=("parallel",),   # v7x: one batch element per TC
        ),
    )(*operands)
    return out3[:, :, 0]


# -------------------- parameters --------------------

def init_cnn_params(key, in_channels, hidden_size, num_layers, num_classes, kernel_size=3):
    """Deterministic PyTorch-default-style (uniform fan-in) initialization."""
    # TODO(synk): init_and_maybe_normalize_layer / weight_norm variants are not
    # specified in the source; plain deterministic fan-in init is used.
    conv_params = []
    strides = []
    for layer_idx in range(num_layers):
        cin = in_channels if layer_idx == 0 else hidden_size
        key, k1, k2 = jax.random.split(key, 3)
        fan_in = cin * kernel_size * kernel_size
        bound = 1.0 / float(fan_in) ** 0.5
        w = jax.random.uniform(k1, (hidden_size, cin, kernel_size, kernel_size),
                               jnp.float32, -bound, bound)
        b = jax.random.uniform(k2, (hidden_size,), jnp.float32, -bound, bound)
        conv_params.append((w, b))
        strides.append(2 if layer_idx in (0, 1) else 1)
    key, k1, k2 = jax.random.split(key, 3)
    bound = 1.0 / float(hidden_size) ** 0.5
    w_fc = jax.random.uniform(k1, (num_classes, hidden_size), jnp.float32, -bound, bound)
    b_fc = jax.random.uniform(k2, (num_classes,), jnp.float32, -bound, bound)
    return tuple(conv_params), tuple(strides), (w_fc, b_fc)


# -------------------- references --------------------

def _reference_forward_f32(x_nchw, conv_params, fc_params, strides):
    """Pure f32 reference (PyTorch semantics)."""
    x = x_nchw
    for (w, b), s in zip(conv_params, strides):
        x = jax.lax.conv_general_dilated(
            x, w, (s, s), ((1, 1), (1, 1)),
            dimension_numbers=("NCHW", "OIHW", "NCHW"))
        x = jnp.maximum(x + b[None, :, None, None], 0.0)
    pooled = jnp.mean(x.reshape(x.shape[0], x.shape[1], -1), axis=2)
    w_fc, b_fc = fc_params
    return pooled @ w_fc.T + b_fc


def _reference_forward_matched(x_nchw, conv_params, fc_params, strides):
    """Reference mirroring kernel numerics: bf16 matmul inputs, f32 accumulate,
    f32 bias/ReLU, bf16 activation storage, FC-before-mean tail in f32."""
    x = x_nchw.astype(jnp.float32)
    y = None
    for (w, b), s in zip(conv_params, strides):
        y = jax.lax.conv_general_dilated(
            x.astype(jnp.bfloat16), w.astype(jnp.bfloat16), (s, s), ((1, 1), (1, 1)),
            dimension_numbers=("NCHW", "OIHW", "NCHW"),
            preferred_element_type=jnp.float32)
        y = jnp.maximum(y + b[None, :, None, None], 0.0)
        x = y
    w_fc, b_fc = fc_params
    n, ncls = y.shape[0], w_fc.shape[0]
    a = y.astype(jnp.bfloat16).astype(jnp.float32)
    t = jnp.einsum('kc,nchw->nkhw', w_fc.astype(jnp.bfloat16).astype(jnp.float32), a)
    return t.reshape(n, ncls, -1).mean(axis=2) + b_fc


if __name__ == "__main__":
    key = jax.random.PRNGKey(0)
    batch, in_ch, h, w_sp = 2, 4, 16, 16     # input NCHW, channels = input_size[-1] = 4
    hidden, num_layers, num_classes = 32, 3, 10

    kx, kp = jax.random.split(key)
    x = jax.random.normal(kx, (batch, in_ch, h, w_sp), jnp.float32)
    conv_params, strides, fc_params = init_cnn_params(kp, in_ch, hidden, num_layers,
                                                      num_classes)

    # One-time parameter prep (shift-selection matrices, bf16 weights), hoisted
    # out of the jitted forward path.
    prepped_conv, prepped_fc = prepare_params(conv_params, strides, fc_params, h, w_sp)

    out = cnn_forward(x, prepped_conv, prepped_fc)
    out = jax.block_until_ready(out)
    assert out.shape == (batch, num_classes)

    # Check against a reference with matching bf16-input / f32-accumulate numerics.
    ref_matched = _reference_forward_matched(x, conv_params, fc_params, strides)
    assert jnp.allclose(out, ref_matched, rtol=5e-3, atol=5e-3), (
        f"mismatch vs bf16-matched reference: {jnp.max(jnp.abs(out - ref_matched))}")

    # Loose check against the pure-f32 PyTorch-semantics reference.
    ref_f32 = _reference_forward_f32(x, conv_params, fc_params, strides)
    assert jnp.allclose(out, ref_f32, rtol=3e-2, atol=3e-2), (
        f"mismatch vs f32 reference: {jnp.max(jnp.abs(out - ref_f32))}")

    print("KERNEL_OK")
</pallas_src>

<mosaic_0001>
module attributes {stable_mosaic.version = 11 : i64} {
  func.func @kernel(%arg0: i32, %arg1: memref<1x8x256xbf16, #tpu.memory_space<vmem>>, %arg2: memref<9x256x64xbf16, #tpu.memory_space<vmem>>, %arg3: memref<9x32x8xbf16, #tpu.memory_space<vmem>>, %arg4: memref<32x1xf32, #tpu.memory_space<vmem>>, %arg5: memref<9x64x16xbf16, #tpu.memory_space<vmem>>, %arg6: memref<9x32x32xbf16, #tpu.memory_space<vmem>>, %arg7: memref<32x1xf32, #tpu.memory_space<vmem>>, %arg8: memref<9x16x16xbf16, #tpu.memory_space<vmem>>, %arg9: memref<9x32x32xbf16, #tpu.memory_space<vmem>>, %arg10: memref<32x1xf32, #tpu.memory_space<vmem>>, %arg11: memref<10x32xbf16, #tpu.memory_space<vmem>>, %arg12: memref<10x1xf32, #tpu.memory_space<vmem>>, %arg13: memref<1x10x1xf32, #tpu.memory_space<vmem>>) attributes {dimension_semantics = [#tpu.dimension_semantics<parallel>], iteration_bounds = array<i64: 2>, scalar_prefetch = 0 : i64, scratch_operands = 0 : i64, tpu.core_type = #tpu.core_type<tc>, window_params = [{transform_indices = @transform_0, window_bounds = array<i64: 1, 8, 256>}, {pipeline_mode = #tpu.pipeline_mode<synchronous>, transform_indices = @transform_1, window_bounds = array<i64: 9, 256, 64>}, {pipeline_mode = #tpu.pipeline_mode<synchronous>, transform_indices = @transform_2, window_bounds = array<i64: 9, 32, 8>}, {pipeline_mode = #tpu.pipeline_mode<synchronous>, transform_indices = @transform_3, window_bounds = array<i64: 32, 1>}, {pipeline_mode = #tpu.pipeline_mode<synchronous>, transform_indices = @transform_4, window_bounds = array<i64: 9, 64, 16>}, {pipeline_mode = #tpu.pipeline_mode<synchronous>, transform_indices = @transform_5, window_bounds = array<i64: 9, 32, 32>}, {pipeline_mode = #tpu.pipeline_mode<synchronous>, transform_indices = @transform_6, window_bounds = array<i64: 32, 1>}, {pipeline_mode = #tpu.pipeline_mode<synchronous>, transform_indices = @transform_7, window_bounds = array<i64: 9, 16, 16>}, {pipeline_mode = #tpu.pipeline_mode<synchronous>, transform_indices = @transform_8, window_bounds = array<i64: 9, 32, 32>}, {pipeline_mode = #tpu.pipeline_mode<synchronous>, transform_indices = @transform_9, window_bounds = array<i64: 32, 1>}, {pipeline_mode = #tpu.pipeline_mode<synchronous>, transform_indices = @transform_10, window_bounds = array<i64: 10, 32>}, {pipeline_mode = #tpu.pipeline_mode<synchronous>, transform_indices = @transform_11, window_bounds = array<i64: 10, 1>}, {transform_indices = @transform_12, window_bounds = array<i64: 1, 10, 1>}]} {
    %c0 = arith.constant 0 : index
    %c0_0 = arith.constant 0 : index
    %c0_1 = arith.constant 0 : index
    %0 = vector.load %arg1[%c0, %c0_0, %c0_1] : memref<1x8x256xbf16, #tpu.memory_space<vmem>>, vector<1x8x256xbf16>
    %1 = vector.shape_cast %0 : vector<1x8x256xbf16> to vector<8x256xbf16>
    %c0_2 = arith.constant 0 : index
    %c0_3 = arith.constant 0 : index
    %c0_4 = arith.constant 0 : index
    %2 = vector.load %arg2[%c0_2, %c0_3, %c0_4] : memref<9x256x64xbf16, #tpu.memory_space<vmem>>, vector<1x256x64xbf16>
    %3 = vector.shape_cast %2 : vector<1x256x64xbf16> to vector<256x64xbf16>
    %cst = arith.constant dense<0.000000e+00> : vector<8x64xf32>
    %4 = tpu.matmul %1, %3, %cst {dimension_numbers = #tpu.dot_dimension_numbers<[1], [0], [0], [1], [0, 0, 1, 1], [], []>} : vector<8x256xbf16>, vector<256x64xbf16>, vector<8x64xf32> -> vector<8x64xf32>
    %c0_5 = arith.constant 0 : index
    %c0_6 = arith.constant 0 : index
    %c0_7 = arith.constant 0 : index
    %5 = vector.load %arg3[%c0_5, %c0_6, %c0_7] : memref<9x32x8xbf16, #tpu.memory_space<vmem>>, vector<1x32x8xbf16>
    %6 = vector.shape_cast %5 : vector<1x32x8xbf16> to vector<32x8xbf16>
    %7 = arith.truncf %4 : vector<8x64xf32> to vector<8x64xbf16>
    %cst_8 = arith.constant dense<0.000000e+00> : vector<32x64xf32>
    %8 = tpu.matmul %6, %7, %cst_8 {dimension_numbers = #tpu.dot_dimension_numbers<[1], [0], [0], [1], [0, 0, 1, 1], [], []>} : vector<32x8xbf16>, vector<8x64xbf16>, vector<32x64xf32> -> vector<32x64xf32>
    %c1 = arith.constant 1 : index
    %c0_9 = arith.constant 0 : index
    %c0_10 = arith.constant 0 : index
    %9 = vector.load %arg2[%c1, %c0_9, %c0_10] : memref<9x256x64xbf16, #tpu.memory_space<vmem>>, vector<1x256x64xbf16>
    %10 = vector.shape_cast %9 : vector<1x256x64xbf16> to vector<256x64xbf16>
    %cst_11 = arith.constant dense<0.000000e+00> : vector<8x64xf32>
    %11 = tpu.matmul %1, %10, %cst_11 {dimension_numbers = #tpu.dot_dimension_numbers<[1], [0], [0], [1], [0, 0, 1, 1], [], []>} : vector<8x256xbf16>, vector<256x64xbf16>, vector<8x64xf32> -> vector<8x64xf32>
    %c1_12 = arith.constant 1 : index
    %c0_13 = arith.constant 0 : index
    %c0_14 = arith.constant 0 : index
    %12 = vector.load %arg3[%c1_12, %c0_13, %c0_14] : memref<9x32x8xbf16, #tpu.memory_space<vmem>>, vector<1x32x8xbf16>
    %13 = vector.shape_cast %12 : vector<1x32x8xbf16> to vector<32x8xbf16>
    %14 = arith.truncf %11 : vector<8x64xf32> to vector<8x64xbf16>
    %cst_15 = arith.constant dense<0.000000e+00> : vector<32x64xf32>
    %15 = tpu.matmul %13, %14, %cst_15 {dimension_numbers = #tpu.dot_dimension_numbers<[1], [0], [0], [1], [0, 0, 1, 1], [], []>} : vector<32x8xbf16>, vector<8x64xbf16>, vector<32x64xf32> -> vector<32x64xf32>
    %16 = arith.addf %8, %15 : vector<32x64xf32>
    %c2 = arith.constant 2 : index
    %c0_16 = arith.constant 0 : index
    %c0_17 = arith.constant 0 : index
    %17 = vector.load %arg2[%c2, %c0_16, %c0_17] : memref<9x256x64xbf16, #tpu.memory_space<vmem>>, vector<1x256x64xbf16>
    %18 = vector.shape_cast %17 : vector<1x256x64xbf16> to vector<256x64xbf16>
    %cst_18 = arith.constant dense<0.000000e+00> : vector<8x64xf32>
    %19 = tpu.matmul %1, %18, %cst_18 {dimension_numbers = #tpu.dot_dimension_numbers<[1], [0], [0], [1], [0, 0, 1, 1], [], []>} : vector<8x256xbf16>, vector<256x64xbf16>, vector<8x64xf32> -> vector<8x64xf32>
    %c2_19 = arith.constant 2 : index
    %c0_20 = arith.constant 0 : index
    %c0_21 = arith.constant 0 : index
    %20 = vector.load %arg3[%c2_19, %c0_20, %c0_21] : memref<9x32x8xbf16, #tpu.memory_space<vmem>>, vector<1x32x8xbf16>
    %21 = vector.shape_cast %20 : vector<1x32x8xbf16> to vector<32x8xbf16>
    %22 = arith.truncf %19 : vector<8x64xf32> to vector<8x64xbf16>
    %cst_22 = arith.constant dense<0.000000e+00> : vector<32x64xf32>
    %23 = tpu.matmul %21, %22, %cst_22 {dimension_numbers = #tpu.dot_dimension_numbers<[1], [0], [0], [1], [0, 0, 1, 1], [], []>} : vector<32x8xbf16>, vector<8x64xbf16>, vector<32x64xf32> -> vector<32x64xf32>
    %24 = arith.addf %16, %23 : vector<32x64xf32>
    %c3 = arith.constant 3 : index
    %c0_23 = arith.constant 0 : index
    %c0_24 = arith.constant 0 : index
    %25 = vector.load %arg2[%c3, %c0_23, %c0_24] : memref<9x256x64xbf16, #tpu.memory_space<vmem>>, vector<1x256x64xbf16>
    %26 = vector.shape_cast %25 : vector<1x256x64xbf16> to vector<256x64xbf16>
    %cst_25 = arith.constant dense<0.000000e+00> : vector<8x64xf32>
    %27 = tpu.matmul %1, %26, %cst_25 {dimension_numbers = #tpu.dot_dimension_numbers<[1], [0], [0], [1], [0, 0, 1, 1], [], []>} : vector<8x256xbf16>, vector<256x64xbf16>, vector<8x64xf32> -> vector<8x64xf32>
    %c3_26 = arith.constant 3 : index
    %c0_27 = arith.constant 0 : index
    %c0_28 = arith.constant 0 : index
    %28 = vector.load %arg3[%c3_26, %c0_27, %c0_28] : memref<9x32x8xbf16, #tpu.memory_space<vmem>>, vector<1x32x8xbf16>
    %29 = vector.shape_cast %28 : vector<1x32x8xbf16> to vector<32x8xbf16>
    %30 = arith.truncf %27 : vector<8x64xf32> to vector<8x64xbf16>
    %cst_29 = arith.constant dense<0.000000e+00> : vector<32x64xf32>
    %31 = tpu.matmul %29, %30, %cst_29 {dimension_numbers = #tpu.dot_dimension_numbers<[1], [0], [0], [1], [0, 0, 1, 1], [], []>} : vector<32x8xbf16>, vector<8x64xbf16>, vector<32x64xf32> -> vector<32x64xf32>
    %32 = arith.addf %24, %31 : vector<32x64xf32>
    %c4 = arith.constant 4 : index
    %c0_30 = arith.constant 0 : index
    %c0_31 = arith.constant 0 : index
    %33 = vector.load %arg2[%c4, %c0_30, %c0_31] : memref<9x256x64xbf16, #tpu.memory_space<vmem>>, vector<1x256x64xbf16>
    %34 = vector.shape_cast %33 : vector<1x256x64xbf16> to vector<256x64xbf16>
    %cst_32 = arith.constant dense<0.000000e+00> : vector<8x64xf32>
    %35 = tpu.matmul %1, %34, %cst_32 {dimension_numbers = #tpu.dot_dimension_numbers<[1], [0], [0], [1], [0, 0, 1, 1], [], []>} : vector<8x256xbf16>, vector<256x64xbf16>, vector<8x64xf32> -> vector<8x64xf32>
    %c4_33 = arith.constant 4 : index
    %c0_34 = arith.constant 0 : index
    %c0_35 = arith.constant 0 : index
    %36 = vector.load %arg3[%c4_33, %c0_34, %c0_35] : memref<9x32x8xbf16, #tpu.memory_space<vmem>>, vector<1x32x8xbf16>
    %37 = vector.shape_cast %36 : vector<1x32x8xbf16> to vector<32x8xbf16>
    %38 = arith.truncf %35 : vector<8x64xf32> to vector<8x64xbf16>
    %cst_36 = arith.constant dense<0.000000e+00> : vector<32x64xf32>
    %39 = tpu.matmul %37, %38, %cst_36 {dimension_numbers = #tpu.dot_dimension_numbers<[1], [0], [0], [1], [0, 0, 1, 1], [], []>} : vector<32x8xbf16>, vector<8x64xbf16>, vector<32x64xf32> -> vector<32x64xf32>
    %40 = arith.addf %32, %39 : vector<32x64xf32>
    %c5 = arith.constant 5 : index
    %c0_37 = arith.constant 0 : index
    %c0_38 = arith.constant 0 : index
    %41 = vector.load %arg2[%c5, %c0_37, %c0_38] : memref<9x256x64xbf16, #tpu.memory_space<vmem>>, vector<1x256x64xbf16>
    %42 = vector.shape_cast %41 : vector<1x256x64xbf16> to vector<256x64xbf16>
    %cst_39 = arith.constant dense<0.000000e+00> : vector<8x64xf32>
    %43 = tpu.matmul %1, %42, %cst_39 {dimension_numbers = #tpu.dot_dimension_numbers<[1], [0], [0], [1], [0, 0, 1, 1], [], []>} : vector<8x256xbf16>, vector<256x64xbf16>, vector<8x64xf32> -> vector<8x64xf32>
    %c5_40 = arith.constant 5 : index
    %c0_41 = arith.constant 0 : index
    %c0_42 = arith.constant 0 : index
    %44 = vector.load %arg3[%c5_40, %c0_41, %c0_42] : memref<9x32x8xbf16, #tpu.memory_space<vmem>>, vector<1x32x8xbf16>
    %45 = vector.shape_cast %44 : vector<1x32x8xbf16> to vector<32x8xbf16>
    %46 = arith.truncf %43 : vector<8x64xf32> to vector<8x64xbf16>
    %cst_43 = arith.constant dense<0.000000e+00> : vector<32x64xf32>
    %47 = tpu.matmul %45, %46, %cst_43 {dimension_numbers = #tpu.dot_dimension_numbers<[1], [0], [0], [1], [0, 0, 1, 1], [], []>} : vector<32x8xbf16>, vector<8x64xbf16>, vector<32x64xf32> -> vector<32x64xf32>
    %48 = arith.addf %40, %47 : vector<32x64xf32>
    %c6 = arith.constant 6 : index
    %c0_44 = arith.constant 0 : index
    %c0_45 = arith.constant 0 : index
    %49 = vector.load %arg2[%c6, %c0_44, %c0_45] : memref<9x256x64xbf16, #tpu.memory_space<vmem>>, vector<1x256x64xbf16>
    %50 = vector.shape_cast %49 : vector<1x256x64xbf16> to vector<256x64xbf16>
    %cst_46 = arith.constant dense<0.000000e+00> : vector<8x64xf32>
    %51 = tpu.matmul %1, %50, %cst_46 {dimension_numbers = #tpu.dot_dimension_numbers<[1], [0], [0], [1], [0, 0, 1, 1], [], []>} : vector<8x256xbf16>, vector<256x64xbf16>, vector<8x64xf32> -> vector<8x64xf32>
    %c6_47 = arith.constant 6 : index
    %c0_48 = arith.constant 0 : index
    %c0_49 = arith.constant 0 : index
    %52 = vector.load %arg3[%c6_47, %c0_48, %c0_49] : memref<9x32x8xbf16, #tpu.memory_space<vmem>>, vector<1x32x8xbf16>
    %53 = vector.shape_cast %52 : vector<1x32x8xbf16> to vector<32x8xbf16>
    %54 = arith.truncf %51 : vector<8x64xf32> to vector<8x64xbf16>
    %cst_50 = arith.constant dense<0.000000e+00> : vector<32x64xf32>
    %55 = tpu.matmul %53, %54, %cst_50 {dimension_numbers = #tpu.dot_dimension_numbers<[1], [0], [0], [1], [0, 0, 1, 1], [], []>} : vector<32x8xbf16>, vector<8x64xbf16>, vector<32x64xf32> -> vector<32x64xf32>
    %56 = arith.addf %48, %55 : vector<32x64xf32>
    %c7 = arith.constant 7 : index
    %c0_51 = arith.constant 0 : index
    %c0_52 = arith.constant 0 : index
    %57 = vector.load %arg2[%c7, %c0_51, %c0_52] : memref<9x256x64xbf16, #tpu.memory_space<vmem>>, vector<1x256x64xbf16>
    %58 = vector.shape_cast %57 : vector<1x256x64xbf16> to vector<256x64xbf16>
    %cst_53 = arith.constant dense<0.000000e+00> : vector<8x64xf32>
    %59 = tpu.matmul %1, %58, %cst_53 {dimension_numbers = #tpu.dot_dimension_numbers<[1], [0], [0], [1], [0, 0, 1, 1], [], []>} : vector<8x256xbf16>, vector<256x64xbf16>, vector<8x64xf32> -> vector<8x64xf32>
    %c7_54 = arith.constant 7 : index
    %c0_55 = arith.constant 0 : index
    %c0_56 = arith.constant 0 : index
    %60 = vector.load %arg3[%c7_54, %c0_55, %c0_56] : memref<9x32x8xbf16, #tpu.memory_space<vmem>>, vector<1x32x8xbf16>
    %61 = vector.shape_cast %60 : vector<1x32x8xbf16> to vector<32x8xbf16>
    %62 = arith.truncf %59 : vector<8x64xf32> to vector<8x64xbf16>
    %cst_57 = arith.constant dense<0.000000e+00> : vector<32x64xf32>
    %63 = tpu.matmul %61, %62, %cst_57 {dimension_numbers = #tpu.dot_dimension_numbers<[1], [0], [0], [1], [0, 0, 1, 1], [], []>} : vector<32x8xbf16>, vector<8x64xbf16>, vector<32x64xf32> -> vector<32x64xf32>
    %64 = arith.addf %56, %63 : vector<32x64xf32>
    %c8 = arith.constant 8 : index
    %c0_58 = arith.constant 0 : index
    %c0_59 = arith.constant 0 : index
    %65 = vector.load %arg2[%c8, %c0_58, %c0_59] : memref<9x256x64xbf16, #tpu.memory_space<vmem>>, vector<1x256x64xbf16>
    %66 = vector.shape_cast %65 : vector<1x256x64xbf16> to vector<256x64xbf16>
    %cst_60 = arith.constant dense<0.000000e+00> : vector<8x64xf32>
    %67 = tpu.matmul %1, %66, %cst_60 {dimension_numbers = #tpu.dot_dimension_numbers<[1], [0], [0], [1], [0, 0, 1, 1], [], []>} : vector<8x256xbf16>, vector<256x64xbf16>, vector<8x64xf32> -> vector<8x64xf32>
    %c8_61 = arith.constant 8 : index
    %c0_62 = arith.constant 0 : index
    %c0_63 = arith.constant 0 : index
    %68 = vector.load %arg3[%c8_61, %c0_62, %c0_63] : memref<9x32x8xbf16, #tpu.memory_space<vmem>>, vector<1x32x8xbf16>
    %69 = vector.shape_cast %68 : vector<1x32x8xbf16> to vector<32x8xbf16>
    %70 = arith.truncf %67 : vector<8x64xf32> to vector<8x64xbf16>
    %cst_64 = arith.constant dense<0.000000e+00> : vector<32x64xf32>
    %71 = tpu.matmul %69, %70, %cst_64 {dimension_numbers = #tpu.dot_dimension_numbers<[1], [0], [0], [1], [0, 0, 1, 1], [], []>} : vector<32x8xbf16>, vector<8x64xbf16>, vector<32x64xf32> -> vector<32x64xf32>
    %72 = arith.addf %64, %71 : vector<32x64xf32>
    %c0_65 = arith.constant 0 : index
    %c0_66 = arith.constant 0 : index
    %73 = vector.load %arg4[%c0_65, %c0_66] : memref<32x1xf32, #tpu.memory_space<vmem>>, vector<32x1xf32>
    %74 = vector.broadcast %73 : vector<32x1xf32> to vector<32x64xf32>
    %75 = arith.addf %72, %74 : vector<32x64xf32>
    %cst_67 = arith.constant 0.000000e+00 : f32
    %76 = vector.broadcast %cst_67 : f32 to vector<32x64xf32>
    %77 = arith.maximumf %75, %76 : vector<32x64xf32>
    %78 = arith.truncf %77 : vector<32x64xf32> to vector<32x64xbf16>
    %c0_68 = arith.constant 0 : index
    %c0_69 = arith.constant 0 : index
    %c0_70 = arith.constant 0 : index
    %79 = vector.load %arg5[%c0_68, %c0_69, %c0_70] : memref<9x64x16xbf16, #tpu.memory_space<vmem>>, vector<1x64x16xbf16>
    %80 = vector.shape_cast %79 : vector<1x64x16xbf16> to vector<64x16xbf16>
    %cst_71 = arith.constant dense<0.000000e+00> : vector<32x16xf32>
    %81 = tpu.matmul %78, %80, %cst_71 {dimension_numbers = #tpu.dot_dimension_numbers<[1], [0], [0], [1], [0, 0, 1, 1], [], []>} : vector<32x64xbf16>, vector<64x16xbf16>, vector<32x16xf32> -> vector<32x16xf32>
    %c0_72 = arith.constant 0 : index
    %c0_73 = arith.constant 0 : index
    %c0_74 = arith.constant 0 : index
    %82 = vector.load %arg6[%c0_72, %c0_73, %c0_74] : memref<9x32x32xbf16, #tpu.memory_space<vmem>>, vector<1x32x32xbf16>
    %83 = vector.shape_cast %82 : vector<1x32x32xbf16> to vector<32x32xbf16>
    %84 = arith.truncf %81 : vector<32x16xf32> to vector<32x16xbf16>
    %cst_75 = arith.constant dense<0.000000e+00> : vector<32x16xf32>
    %85 = tpu.matmul %83, %84, %cst_75 {dimension_numbers = #tpu.dot_dimension_numbers<[1], [0], [0], [1], [0, 0, 1, 1], [], []>} : vector<32x32xbf16>, vector<32x16xbf16>, vector<32x16xf32> -> vector<32x16xf32>
    %c1_76 = arith.constant 1 : index
    %c0_77 = arith.constant 0 : index
    %c0_78 = arith.constant 0 : index
    %86 = vector.load %arg5[%c1_76, %c0_77, %c0_78] : memref<9x64x16xbf16, #tpu.memory_space<vmem>>, vector<1x64x16xbf16>
    %87 = vector.shape_cast %86 : vector<1x64x16xbf16> to vector<64x16xbf16>
    %cst_79 = arith.constant dense<0.000000e+00> : vector<32x16xf32>
    %88 = tpu.matmul %78, %87, %cst_79 {dimension_numbers = #tpu.dot_dimension_numbers<[1], [0], [0], [1], [0, 0, 1, 1], [], []>} : vector<32x64xbf16>, vector<64x16xbf16>, vector<32x16xf32> -> vector<32x16xf32>
    %c1_80 = arith.constant 1 : index
    %c0_81 = arith.constant 0 : index
    %c0_82 = arith.constant 0 : index
    %89 = vector.load %arg6[%c1_80, %c0_81, %c0_82] : memref<9x32x32xbf16, #tpu.memory_space<vmem>>, vector<1x32x32xbf16>
    %90 = vector.shape_cast %89 : vector<1x32x32xbf16> to vector<32x32xbf16>
    %91 = arith.truncf %88 : vector<32x16xf32> to vector<32x16xbf16>
    %cst_83 = arith.constant dense<0.000000e+00> : vector<32x16xf32>
    %92 = tpu.matmul %90, %91, %cst_83 {dimension_numbers = #tpu.dot_dimension_numbers<[1], [0], [0], [1], [0, 0, 1, 1], [], []>} : vector<32x32xbf16>, vector<32x16xbf16>, vector<32x16xf32> -> vector<32x16xf32>
    %93 = arith.addf %85, %92 : vector<32x16xf32>
    %c2_84 = arith.constant 2 : index
    %c0_85 = arith.constant 0 : index
    %c0_86 = arith.constant 0 : index
    %94 = vector.load %arg5[%c2_84, %c0_85, %c0_86] : memref<9x64x16xbf16, #tpu.memory_space<vmem>>, vector<1x64x16xbf16>
    %95 = vector.shape_cast %94 : vector<1x64x16xbf16> to vector<64x16xbf16>
    %cst_87 = arith.constant dense<0.000000e+00> : vector<32x16xf32>
    %96 = tpu.matmul %78, %95, %cst_87 {dimension_numbers = #tpu.dot_dimension_numbers<[1], [0], [0], [1], [0, 0, 1, 1], [], []>} : vector<32x64xbf16>, vector<64x16xbf16>, vector<32x16xf32> -> vector<32x16xf32>
    %c2_88 = arith.constant 2 : index
    %c0_89 = arith.constant 0 : index
    %c0_90 = arith.constant 0 : index
    %97 = vector.load %arg6[%c2_88, %c0_89, %c0_90] : memref<9x32x32xbf16, #tpu.memory_space<vmem>>, vector<1x32x32xbf16>
    %98 = vector.shape_cast %97 : vector<1x32x32xbf16> to vector<32x32xbf16>
    %99 = arith.truncf %96 : vector<32x16xf32> to vector<32x16xbf16>
    %cst_91 = arith.constant dense<0.000000e+00> : vector<32x16xf32>
    %100 = tpu.matmul %98, %99, %cst_91 {dimension_numbers = #tpu.dot_dimension_numbers<[1], [0], [0], [1], [0, 0, 1, 1], [], []>} : vector<32x32xbf16>, vector<32x16xbf16>, vector<32x16xf32> -> vector<32x16xf32>
    %101 = arith.addf %93, %100 : vector<32x16xf32>
    %c3_92 = arith.constant 3 : index
    %c0_93 = arith.constant 0 : index
    %c0_94 = arith.constant 0 : index
    %102 = vector.load %arg5[%c3_92, %c0_93, %c0_94] : memref<9x64x16xbf16, #tpu.memory_space<vmem>>, vector<1x64x16xbf16>
    %103 = vector.shape_cast %102 : vector<1x64x16xbf16> to vector<64x16xbf16>
    %cst_95 = arith.constant dense<0.000000e+00> : vector<32x16xf32>
    %104 = tpu.matmul %78, %103, %cst_95 {dimension_numbers = #tpu.dot_dimension_numbers<[1], [0], [0], [1], [0, 0, 1, 1], [], []>} : vector<32x64xbf16>, vector<64x16xbf16>, vector<32x16xf32> -> vector<32x16xf32>
    %c3_96 = arith.constant 3 : index
    %c0_97 = arith.constant 0 : index
    %c0_98 = arith.constant 0 : index
    %105 = vector.load %arg6[%c3_96, %c0_97, %c0_98] : memref<9x32x32xbf16, #tpu.memory_space<vmem>>, vector<1x32x32xbf16>
    %106 = vector.shape_cast %105 : vector<1x32x32xbf16> to vector<32x32xbf16>
    %107 = arith.truncf %104 : vector<32x16xf32> to vector<32x16xbf16>
    %cst_99 = arith.constant dense<0.000000e+00> : vector<32x16xf32>
    %108 = tpu.matmul %106, %107, %cst_99 {dimension_numbers = #tpu.dot_dimension_numbers<[1], [0], [0], [1], [0, 0, 1, 1], [], []>} : vector<32x32xbf16>, vector<32x16xbf16>, vector<32x16xf32> -> vector<32x16xf32>
    %109 = arith.addf %101, %108 : vector<32x16xf32>
    %c4_100 = arith.constant 4 : index
    %c0_101 = arith.constant 0 : index
    %c0_102 = arith.constant 0 : index
    %110 = vector.load %arg5[%c4_100, %c0_101, %c0_102] : memref<9x64x16xbf16, #tpu.memory_space<vmem>>, vector<1x64x16xbf16>
    %111 = vector.shape_cast %110 : vector<1x64x16xbf16> to vector<64x16xbf16>
    %cst_103 = arith.constant dense<0.000000e+00> : vector<32x16xf32>
    %112 = tpu.matmul %78, %111, %cst_103 {dimension_numbers = #tpu.dot_dimension_numbers<[1], [0], [0], [1], [0, 0, 1, 1], [], []>} : vector<32x64xbf16>, vector<64x16xbf16>, vector<32x16xf32> -> vector<32x16xf32>
    %c4_104 = arith.constant 4 : index
    %c0_105 = arith.constant 0 : index
    %c0_106 = arith.constant 0 : index
    %113 = vector.load %arg6[%c4_104, %c0_105, %c0_106] : memref<9x32x32xbf16, #tpu.memory_space<vmem>>, vector<1x32x32xbf16>
    %114 = vector.shape_cast %113 : vector<1x32x32xbf16> to vector<32x32xbf16>
    %115 = arith.truncf %112 : vector<32x16xf32> to vector<32x16xbf16>
    %cst_107 = arith.constant dense<0.000000e+00> : vector<32x16xf32>
    %116 = tpu.matmul %114, %115, %cst_107 {dimension_numbers = #tpu.dot_dimension_numbers<[1], [0], [0], [1], [0, 0, 1, 1], [], []>} : vector<32x32xbf16>, vector<32x16xbf16>, vector<32x16xf32> -> vector<32x16xf32>
    %117 = arith.addf %109, %116 : vector<32x16xf32>
    %c5_108 = arith.constant 5 : index
    %c0_109 = arith.constant 0 : index
    %c0_110 = arith.constant 0 : index
    %118 = vector.load %arg5[%c5_108, %c0_109, %c0_110] : memref<9x64x16xbf16, #tpu.memory_space<vmem>>, vector<1x64x16xbf16>
    %119 = vector.shape_cast %118 : vector<1x64x16xbf16> to vector<64x16xbf16>
    %cst_111 = arith.constant dense<0.000000e+00> : vector<32x16xf32>
    %120 = tpu.matmul %78, %119, %cst_111 {dimension_numbers = #tpu.dot_dimension_numbers<[1], [0], [0], [1], [0, 0, 1, 1], [], []>} : vector<32x64xbf16>, vector<64x16xbf16>, vector<32x16xf32> -> vector<32x16xf32>
    %c5_112 = arith.constant 5 : index
    %c0_113 = arith.constant 0 : index
    %c0_114 = arith.constant 0 : index
    %121 = vector.load %arg6[%c5_112, %c0_113, %c0_114] : memref<9x32x32xbf16, #tpu.memory_space<vmem>>, vector<1x32x32xbf16>
    %122 = vector.shape_cast %121 : vector<1x32x32xbf16> to vector<32x32xbf16>
    %123 = arith.truncf %120 : vector<32x16xf32> to vector<32x16xbf16>
    %cst_115 = arith.constant dense<0.000000e+00> : vector<32x16xf32>
    %124 = tpu.matmul %122, %123, %cst_115 {dimension_numbers = #tpu.dot_dimension_numbers<[1], [0], [0], [1], [0, 0, 1, 1], [], []>} : vector<32x32xbf16>, vector<32x16xbf16>, vector<32x16xf32> -> vector<32x16xf32>
    %125 = arith.addf %117, %124 : vector<32x16xf32>
    %c6_116 = arith.constant 6 : index
    %c0_117 = arith.constant 0 : index
    %c0_118 = arith.constant 0 : index
    %126 = vector.load %arg5[%c6_116, %c0_117, %c0_118] : memref<9x64x16xbf16, #tpu.memory_space<vmem>>, vector<1x64x16xbf16>
    %127 = vector.shape_cast %126 : vector<1x64x16xbf16> to vector<64x16xbf16>
    %cst_119 = arith.constant dense<0.000000e+00> : vector<32x16xf32>
    %128 = tpu.matmul %78, %127, %cst_119 {dimension_numbers = #tpu.dot_dimension_numbers<[1], [0], [0], [1], [0, 0, 1, 1], [], []>} : vector<32x64xbf16>, vector<64x16xbf16>, vector<32x16xf32> -> vector<32x16xf32>
    %c6_120 = arith.constant 6 : index
    %c0_121 = arith.constant 0 : index
    %c0_122 = arith.constant 0 : index
    %129 = vector.load %arg6[%c6_120, %c0_121, %c0_122] : memref<9x32x32xbf16, #tpu.memory_space<vmem>>, vector<1x32x32xbf16>
    %130 = vector.shape_cast %129 : vector<1x32x32xbf16> to vector<32x32xbf16>
    %131 = arith.truncf %128 : vector<32x16xf32> to vector<32x16xbf16>
    %cst_123 = arith.constant dense<0.000000e+00> : vector<32x16xf32>
    %132 = tpu.matmul %130, %131, %cst_123 {dimension_numbers = #tpu.dot_dimension_numbers<[1], [0], [0], [1], [0, 0, 1, 1], [], []>} : vector<32x32xbf16>, vector<32x16xbf16>, vector<32x16xf32> -> vector<32x16xf32>
    %133 = arith.addf %125, %132 : vector<32x16xf32>
    %c7_124 = arith.constant 7 : index
    %c0_125 = arith.constant 0 : index
    %c0_126 = arith.constant 0 : index
    %134 = vector.load %arg5[%c7_124, %c0_125, %c0_126] : memref<9x64x16xbf16, #tpu.memory_space<vmem>>, vector<1x64x16xbf16>
    %135 = vector.shape_cast %134 : vector<1x64x16xbf16> to vector<64x16xbf16>
    %cst_127 = arith.constant dense<0.000000e+00> : vector<32x16xf32>
    %136 = tpu.matmul %78, %135, %cst_127 {dimension_numbers = #tpu.dot_dimension_numbers<[1], [0], [0], [1], [0, 0, 1, 1], [], []>} : vector<32x64xbf16>, vector<64x16xbf16>, vector<32x16xf32> -> vector<32x16xf32>
    %c7_128 = arith.constant 7 : index
    %c0_129 = arith.constant 0 : index
    %c0_130 = arith.constant 0 : index
    %137 = vector.load %arg6[%c7_128, %c0_129, %c0_130] : memref<9x32x32xbf16, #tpu.memory_space<vmem>>, vector<1x32x32xbf16>
    %138 = vector.shape_cast %137 : vector<1x32x32xbf16> to vector<32x32xbf16>
    %139 = arith.truncf %136 : vector<32x16xf32> to vector<32x16xbf16>
    %cst_131 = arith.constant dense<0.000000e+00> : vector<32x16xf32>
    %140 = tpu.matmul %138, %139, %cst_131 {dimension_numbers = #tpu.dot_dimension_numbers<[1], [0], [0], [1], [0, 0, 1, 1], [], []>} : vector<32x32xbf16>, vector<32x16xbf16>, vector<32x16xf32> -> vector<32x16xf32>
    %141 = arith.addf %133, %140 : vector<32x16xf32>
    %c8_132 = arith.constant 8 : index
    %c0_133 = arith.constant 0 : index
    %c0_134 = arith.constant 0 : index
    %142 = vector.load %arg5[%c8_132, %c0_133, %c0_134] : memref<9x64x16xbf16, #tpu.memory_space<vmem>>, vector<1x64x16xbf16>
    %143 = vector.shape_cast %142 : vector<1x64x16xbf16> to vector<64x16xbf16>
    %cst_135 = arith.constant dense<0.000000e+00> : vector<32x16xf32>
    %144 = tpu.matmul %78, %143, %cst_135 {dimension_numbers = #tpu.dot_dimension_numbers<[1], [0], [0], [1], [0, 0, 1, 1], [], []>} : vector<32x64xbf16>, vector<64x16xbf16>, vector<32x16xf32> -> vector<32x16xf32>
    %c8_136 = arith.constant 8 : index
    %c0_137 = arith.constant 0 : index
    %c0_138 = arith.constant 0 : index
    %145 = vector.load %arg6[%c8_136, %c0_137, %c0_138] : memref<9x32x32xbf16, #tpu.memory_space<vmem>>, vector<1x32x32xbf16>
    %146 = vector.shape_cast %145 : vector<1x32x32xbf16> to vector<32x32xbf16>
    %147 = arith.truncf %144 : vector<32x16xf32> to vector<32x16xbf16>
    %cst_139 = arith.constant dense<0.000000e+00> : vector<32x16xf32>
    %148 = tpu.matmul %146, %147, %cst_139 {dimension_numbers = #tpu.dot_dimension_numbers<[1], [0], [0], [1], [0, 0, 1, 1], [], []>} : vector<32x32xbf16>, vector<32x16xbf16>, vector<32x16xf32> -> vector<32x16xf32>
    %149 = arith.addf %141, %148 : vector<32x16xf32>
    %c0_140 = arith.constant 0 : index
    %c0_141 = arith.constant 0 : index
    %150 = vector.load %arg7[%c0_140, %c0_141] : memref<32x1xf32, #tpu.memory_space<vmem>>, vector<32x1xf32>
    %151 = vector.broadcast %150 : vector<32x1xf32> to vector<32x16xf32>
    %152 = arith.addf %149, %151 : vector<32x16xf32>
    %cst_142 = arith.constant 0.000000e+00 : f32
    %153 = vector.broadcast %cst_142 : f32 to vector<32x16xf32>
    %154 = arith.maximumf %152, %153 : vector<32x16xf32>
    %155 = arith.truncf %154 : vector<32x16xf32> to vector<32x16xbf16>
    %c0_143 = arith.constant 0 : index
    %c0_144 = arith.constant 0 : index
    %c0_145 = arith.constant 0 : index
    %156 = vector.load %arg8[%c0_143, %c0_144, %c0_145] : memref<9x16x16xbf16, #tpu.memory_space<vmem>>, vector<1x16x16xbf16>
    %157 = vector.shape_cast %156 : vector<1x16x16xbf16> to vector<16x16xbf16>
    %cst_146 = arith.constant dense<0.000000e+00> : vector<32x16xf32>
    %158 = tpu.matmul %155, %157, %cst_146 {dimension_numbers = #tpu.dot_dimension_numbers<[1], [0], [0], [1], [0, 0, 1, 1], [], []>} : vector<32x16xbf16>, vector<16x16xbf16>, vector<32x16xf32> -> vector<32x16xf32>
    %c0_147 = arith.constant 0 : index
    %c0_148 = arith.constant 0 : index
    %c0_149 = arith.constant 0 : index
    %159 = vector.load %arg9[%c0_147, %c0_148, %c0_149] : memref<9x32x32xbf16, #tpu.memory_space<vmem>>, vector<1x32x32xbf16>
    %160 = vector.shape_cast %159 : vector<1x32x32xbf16> to vector<32x32xbf16>
    %161 = arith.truncf %158 : vector<32x16xf32> to vector<32x16xbf16>
    %cst_150 = arith.constant dense<0.000000e+00> : vector<32x16xf32>
    %162 = tpu.matmul %160, %161, %cst_150 {dimension_numbers = #tpu.dot_dimension_numbers<[1], [0], [0], [1], [0, 0, 1, 1], [], []>} : vector<32x32xbf16>, vector<32x16xbf16>, vector<32x16xf32> -> vector<32x16xf32>
    %c1_151 = arith.constant 1 : index
    %c0_152 = arith.constant 0 : index
    %c0_153 = arith.constant 0 : index
    %163 = vector.load %arg8[%c1_151, %c0_152, %c0_153] : memref<9x16x16xbf16, #tpu.memory_space<vmem>>, vector<1x16x16xbf16>
    %164 = vector.shape_cast %163 : vector<1x16x16xbf16> to vector<16x16xbf16>
    %cst_154 = arith.constant dense<0.000000e+00> : vector<32x16xf32>
    %165 = tpu.matmul %155, %164, %cst_154 {dimension_numbers = #tpu.dot_dimension_numbers<[1], [0], [0], [1], [0, 0, 1, 1], [], []>} : vector<32x16xbf16>, vector<16x16xbf16>, vector<32x16xf32> -> vector<32x16xf32>
    %c1_155 = arith.constant 1 : index
    %c0_156 = arith.constant 0 : index
    %c0_157 = arith.constant 0 : index
    %166 = vector.load %arg9[%c1_155, %c0_156, %c0_157] : memref<9x32x32xbf16, #tpu.memory_space<vmem>>, vector<1x32x32xbf16>
    %167 = vector.shape_cast %166 : vector<1x32x32xbf16> to vector<32x32xbf16>
    %168 = arith.truncf %165 : vector<32x16xf32> to vector<32x16xbf16>
    %cst_158 = arith.constant dense<0.000000e+00> : vector<32x16xf32>
    %169 = tpu.matmul %167, %168, %cst_158 {dimension_numbers = #tpu.dot_dimension_numbers<[1], [0], [0], [1], [0, 0, 1, 1], [], []>} : vector<32x32xbf16>, vector<32x16xbf16>, vector<32x16xf32> -> vector<32x16xf32>
    %170 = arith.addf %162, %169 : vector<32x16xf32>
    %c2_159 = arith.constant 2 : index
    %c0_160 = arith.constant 0 : index
    %c0_161 = arith.constant 0 : index
    %171 = vector.load %arg8[%c2_159, %c0_160, %c0_161] : memref<9x16x16xbf16, #tpu.memory_space<vmem>>, vector<1x16x16xbf16>
    %172 = vector.shape_cast %171 : vector<1x16x16xbf16> to vector<16x16xbf16>
    %cst_162 = arith.constant dense<0.000000e+00> : vector<32x16xf32>
    %173 = tpu.matmul %155, %172, %cst_162 {dimension_numbers = #tpu.dot_dimension_numbers<[1], [0], [0], [1], [0, 0, 1, 1], [], []>} : vector<32x16xbf16>, vector<16x16xbf16>, vector<32x16xf32> -> vector<32x16xf32>
    %c2_163 = arith.constant 2 : index
    %c0_164 = arith.constant 0 : index
    %c0_165 = arith.constant 0 : index
    %174 = vector.load %arg9[%c2_163, %c0_164, %c0_165] : memref<9x32x32xbf16, #tpu.memory_space<vmem>>, vector<1x32x32xbf16>
    %175 = vector.shape_cast %174 : vector<1x32x32xbf16> to vector<32x32xbf16>
    %176 = arith.truncf %173 : vector<32x16xf32> to vector<32x16xbf16>
    %cst_166 = arith.constant dense<0.000000e+00> : vector<32x16xf32>
    %177 = tpu.matmul %175, %176, %cst_166 {dimension_numbers = #tpu.dot_dimension_numbers<[1], [0], [0], [1], [0, 0, 1, 1], [], []>} : vector<32x32xbf16>, vector<32x16xbf16>, vector<32x16xf32> -> vector<32x16xf32>
    %178 = arith.addf %170, %177 : vector<32x16xf32>
    %c3_167 = arith.constant 3 : index
    %c0_168 = arith.constant 0 : index
    %c0_169 = arith.constant 0 : index
    %179 = vector.load %arg8[%c3_167, %c0_168, %c0_169] : memref<9x16x16xbf16, #tpu.memory_space<vmem>>, vector<1x16x16xbf16>
    %180 = vector.shape_cast %179 : vector<1x16x16xbf16> to vector<16x16xbf16>
    %cst_170 = arith.constant dense<0.000000e+00> : vector<32x16xf32>
    %181 = tpu.matmul %155, %180, %cst_170 {dimension_numbers = #tpu.dot_dimension_numbers<[1], [0], [0], [1], [0, 0, 1, 1], [], []>} : vector<32x16xbf16>, vector<16x16xbf16>, vector<32x16xf32> -> vector<32x16xf32>
    %c3_171 = arith.constant 3 : index
    %c0_172 = arith.constant 0 : index
    %c0_173 = arith.constant 0 : index
    %182 = vector.load %arg9[%c3_171, %c0_172, %c0_173] : memref<9x32x32xbf16, #tpu.memory_space<vmem>>, vector<1x32x32xbf16>
    %183 = vector.shape_cast %182 : vector<1x32x32xbf16> to vector<32x32xbf16>
    %184 = arith.truncf %181 : vector<32x16xf32> to vector<32x16xbf16>
    %cst_174 = arith.constant dense<0.000000e+00> : vector<32x16xf32>
    %185 = tpu.matmul %183, %184, %cst_174 {dimension_numbers = #tpu.dot_dimension_numbers<[1], [0], [0], [1], [0, 0, 1, 1], [], []>} : vector<32x32xbf16>, vector<32x16xbf16>, vector<32x16xf32> -> vector<32x16xf32>
    %186 = arith.addf %178, %185 : vector<32x16xf32>
    %c4_175 = arith.constant 4 : index
    %c0_176 = arith.constant 0 : index
    %c0_177 = arith.constant 0 : index
    %187 = vector.load %arg8[%c4_175, %c0_176, %c0_177] : memref<9x16x16xbf16, #tpu.memory_space<vmem>>, vector<1x16x16xbf16>
    %188 = vector.shape_cast %187 : vector<1x16x16xbf16> to vector<16x16xbf16>
    %cst_178 = arith.constant dense<0.000000e+00> : vector<32x16xf32>
    %189 = tpu.matmul %155, %188, %cst_178 {dimension_numbers = #tpu.dot_dimension_numbers<[1], [0], [0], [1], [0, 0, 1, 1], [], []>} : vector<32x16xbf16>, vector<16x16xbf16>, vector<32x16xf32> -> vector<32x16xf32>
    %c4_179 = arith.constant 4 : index
    %c0_180 = arith.constant 0 : index
    %c0_181 = arith.constant 0 : index
    %190 = vector.load %arg9[%c4_179, %c0_180, %c0_181] : memref<9x32x32xbf16, #tpu.memory_space<vmem>>, vector<1x32x32xbf16>
    %191 = vector.shape_cast %190 : vector<1x32x32xbf16> to vector<32x32xbf16>
    %192 = arith.truncf %189 : vector<32x16xf32> to vector<32x16xbf16>
    %cst_182 = arith.constant dense<0.000000e+00> : vector<32x16xf32>
    %193 = tpu.matmul %191, %192, %cst_182 {dimension_numbers = #tpu.dot_dimension_numbers<[1], [0], [0], [1], [0, 0, 1, 1], [], []>} : vector<32x32xbf16>, vector<32x16xbf16>, vector<32x16xf32> -> vector<32x16xf32>
    %194 = arith.addf %186, %193 : vector<32x16xf32>
    %c5_183 = arith.constant 5 : index
    %c0_184 = arith.constant 0 : index
    %c0_185 = arith.constant 0 : index
    %195 = vector.load %arg8[%c5_183, %c0_184, %c0_185] : memref<9x16x16xbf16, #tpu.memory_space<vmem>>, vector<1x16x16xbf16>
    %196 = vector.shape_cast %195 : vector<1x16x16xbf16> to vector<16x16xbf16>
    %cst_186 = arith.constant dense<0.000000e+00> : vector<32x16xf32>
    %197 = tpu.matmul %155, %196, %cst_186 {dimension_numbers = #tpu.dot_dimension_numbers<[1], [0], [0], [1], [0, 0, 1, 1], [], []>} : vector<32x16xbf16>, vector<16x16xbf16>, vector<32x16xf32> -> vector<32x16xf32>
    %c5_187 = arith.constant 5 : index
    %c0_188 = arith.constant 0 : index
    %c0_189 = arith.constant 0 : index
    %198 = vector.load %arg9[%c5_187, %c0_188, %c0_189] : memref<9x32x32xbf16, #tpu.memory_space<vmem>>, vector<1x32x32xbf16>
    %199 = vector.shape_cast %198 : vector<1x32x32xbf16> to vector<32x32xbf16>
    %200 = arith.truncf %197 : vector<32x16xf32> to vector<32x16xbf16>
    %cst_190 = arith.constant dense<0.000000e+00> : vector<32x16xf32>
    %201 = tpu.matmul %199, %200, %cst_190 {dimension_numbers = #tpu.dot_dimension_numbers<[1], [0], [0], [1], [0, 0, 1, 1], [], []>} : vector<32x32xbf16>, vector<32x16xbf16>, vector<32x16xf32> -> vector<32x16xf32>
    %202 = arith.addf %194, %201 : vector<32x16xf32>
    %c6_191 = arith.constant 6 : index
    %c0_192 = arith.constant 0 : index
    %c0_193 = arith.constant 0 : index
    %203 = vector.load %arg8[%c6_191, %c0_192, %c0_193] : memref<9x16x16xbf16, #tpu.memory_space<vmem>>, vector<1x16x16xbf16>
    %204 = vector.shape_cast %203 : vector<1x16x16xbf16> to vector<16x16xbf16>
    %cst_194 = arith.constant dense<0.000000e+00> : vector<32x16xf32>
    %205 = tpu.matmul %155, %204, %cst_194 {dimension_numbers = #tpu.dot_dimension_numbers<[1], [0], [0], [1], [0, 0, 1, 1], [], []>} : vector<32x16xbf16>, vector<16x16xbf16>, vector<32x16xf32> -> vector<32x16xf32>
    %c6_195 = arith.constant 6 : index
    %c0_196 = arith.constant 0 : index
    %c0_197 = arith.constant 0 : index
    %206 = vector.load %arg9[%c6_195, %c0_196, %c0_197] : memref<9x32x32xbf16, #tpu.memory_space<vmem>>, vector<1x32x32xbf16>
    %207 = vector.shape_cast %206 : vector<1x32x32xbf16> to vector<32x32xbf16>
    %208 = arith.truncf %205 : vector<32x16xf32> to vector<32x16xbf16>
    %cst_198 = arith.constant dense<0.000000e+00> : vector<32x16xf32>
    %209 = tpu.matmul %207, %208, %cst_198 {dimension_numbers = #tpu.dot_dimension_numbers<[1], [0], [0], [1], [0, 0, 1, 1], [], []>} : vector<32x32xbf16>, vector<32x16xbf16>, vector<32x16xf32> -> vector<32x16xf32>
    %210 = arith.addf %202, %209 : vector<32x16xf32>
    %c7_199 = arith.constant 7 : index
    %c0_200 = arith.constant 0 : index
    %c0_201 = arith.constant 0 : index
    %211 = vector.load %arg8[%c7_199, %c0_200, %c0_201] : memref<9x16x16xbf16, #tpu.memory_space<vmem>>, vector<1x16x16xbf16>
    %212 = vector.shape_cast %211 : vector<1x16x16xbf16> to vector<16x16xbf16>
    %cst_202 = arith.constant dense<0.000000e+00> : vector<32x16xf32>
    %213 = tpu.matmul %155, %212, %cst_202 {dimension_numbers = #tpu.dot_dimension_numbers<[1], [0], [0], [1], [0, 0, 1, 1], [], []>} : vector<32x16xbf16>, vector<16x16xbf16>, vector<32x16xf32> -> vector<32x16xf32>
    %c7_203 = arith.constant 7 : index
    %c0_204 = arith.constant 0 : index
    %c0_205 = arith.constant 0 : index
    %214 = vector.load %arg9[%c7_203, %c0_204, %c0_205] : memref<9x32x32xbf16, #tpu.memory_space<vmem>>, vector<1x32x32xbf16>
    %215 = vector.shape_cast %214 : vector<1x32x32xbf16> to vector<32x32xbf16>
    %216 = arith.truncf %213 : vector<32x16xf32> to vector<32x16xbf16>
    %cst_206 = arith.constant dense<0.000000e+00> : vector<32x16xf32>
    %217 = tpu.matmul %215, %216, %cst_206 {dimension_numbers = #tpu.dot_dimension_numbers<[1], [0], [0], [1], [0, 0, 1, 1], [], []>} : vector<32x32xbf16>, vector<32x16xbf16>, vector<32x16xf32> -> vector<32x16xf32>
    %218 = arith.addf %210, %217 : vector<32x16xf32>
    %c8_207 = arith.constant 8 : index
    %c0_208 = arith.constant 0 : index
    %c0_209 = arith.constant 0 : index
    %219 = vector.load %arg8[%c8_207, %c0_208, %c0_209] : memref<9x16x16xbf16, #tpu.memory_space<vmem>>, vector<1x16x16xbf16>
    %220 = vector.shape_cast %219 : vector<1x16x16xbf16> to vector<16x16xbf16>
    %cst_210 = arith.constant dense<0.000000e+00> : vector<32x16xf32>
    %221 = tpu.matmul %155, %220, %cst_210 {dimension_numbers = #tpu.dot_dimension_numbers<[1], [0], [0], [1], [0, 0, 1, 1], [], []>} : vector<32x16xbf16>, vector<16x16xbf16>, vector<32x16xf32> -> vector<32x16xf32>
    %c8_211 = arith.constant 8 : index
    %c0_212 = arith.constant 0 : index
    %c0_213 = arith.constant 0 : index
    %222 = vector.load %arg9[%c8_211, %c0_212, %c0_213] : memref<9x32x32xbf16, #tpu.memory_space<vmem>>, vector<1x32x32xbf16>
    %223 = vector.shape_cast %222 : vector<1x32x32xbf16> to vector<32x32xbf16>
    %224 = arith.truncf %221 : vector<32x16xf32> to vector<32x16xbf16>
    %cst_214 = arith.constant dense<0.000000e+00> : vector<32x16xf32>
    %225 = tpu.matmul %223, %224, %cst_214 {dimension_numbers = #tpu.dot_dimension_numbers<[1], [0], [0], [1], [0, 0, 1, 1], [], []>} : vector<32x32xbf16>, vector<32x16xbf16>, vector<32x16xf32> -> vector<32x16xf32>
    %226 = arith.addf %218, %225 : vector<32x16xf32>
    %c0_215 = arith.constant 0 : index
    %c0_216 = arith.constant 0 : index
    %227 = vector.load %arg10[%c0_215, %c0_216] : memref<32x1xf32, #tpu.memory_space<vmem>>, vector<32x1xf32>
    %228 = vector.broadcast %227 : vector<32x1xf32> to vector<32x16xf32>
    %229 = arith.addf %226, %228 : vector<32x16xf32>
    %cst_217 = arith.constant 0.000000e+00 : f32
    %230 = vector.broadcast %cst_217 : f32 to vector<32x16xf32>
    %231 = arith.maximumf %229, %230 : vector<32x16xf32>
    %232 = arith.truncf %231 : vector<32x16xf32> to vector<32x16xbf16>
    %c0_218 = arith.constant 0 : index
    %c0_219 = arith.constant 0 : index
    %233 = vector.load %arg11[%c0_218, %c0_219] : memref<10x32xbf16, #tpu.memory_space<vmem>>, vector<10x32xbf16>
    %cst_220 = arith.constant dense<0.000000e+00> : vector<10x16xf32>
    %234 = tpu.matmul %233, %232, %cst_220 {dimension_numbers = #tpu.dot_dimension_numbers<[1], [0], [0], [1], [0, 0, 1, 1], [], []>} : vector<10x32xbf16>, vector<32x16xbf16>, vector<10x16xf32> -> vector<10x16xf32>
    %cst_221 = arith.constant dense<0.000000e+00> : vector<10xf32>
    %235 = vector.multi_reduction <add>, %234, %cst_221 [1] : vector<10x16xf32> to vector<10xf32>
    %236 = vector.shape_cast %235 : vector<10xf32> to vector<10x1xf32>
    %cst_222 = arith.constant 6.250000e-02 : f32
    %237 = vector.broadcast %cst_222 : f32 to vector<10x1xf32>
    %238 = arith.mulf %236, %237 : vector<10x1xf32>
    %c0_223 = arith.constant 0 : index
    %c0_224 = arith.constant 0 : index
    %239 = vector.load %arg12[%c0_223, %c0_224] : memref<10x1xf32, #tpu.memory_space<vmem>>, vector<10x1xf32>
    %240 = arith.addf %238, %239 : vector<10x1xf32>
    %c0_225 = arith.constant 0 : index
    %c0_226 = arith.constant 0 : index
    %c0_227 = arith.constant 0 : index
    %241 = vector.load %arg13[%c0_225, %c0_226, %c0_227] : memref<1x10x1xf32, #tpu.memory_space<vmem>>, vector<1x10x1xf32>
    %242 = vector.shape_cast %241 : vector<1x10x1xf32> to vector<10x1xf32>
    %243 = vector.shape_cast %240 : vector<10x1xf32> to vector<1x10x1xf32>
    tpu.vector_store %arg13[%c0_225, %c0_226, %c0_227], %243 {strides = array<i32>} : memref<1x10x1xf32, #tpu.memory_space<vmem>>, vector<1x10x1xf32>,
    return
  }
  func.func @transform_0(%arg0: i32) -> (i32, i32, i32) {
    %c0_i32 = arith.constant 0 : i32
    %c0_i32_0 = arith.constant 0 : i32
    %c0_i32_1 = arith.constant 0 : i32
    return %arg0, %c0_i32, %c0_i32_0 : i32, i32, i32
  }
  func.func @transform_1(%arg0: i32) -> (i32, i32, i32) {
    %c0_i32 = arith.constant 0 : i32
    %c0_i32_0 = arith.constant 0 : i32
    %c0_i32_1 = arith.constant 0 : i32
    %c0_i32_2 = arith.constant 0 : i32
    return %c0_i32, %c0_i32_0, %c0_i32_1 : i32, i32, i32
  }
  func.func @transform_2(%arg0: i32) -> (i32, i32, i32) {
    %c0_i32 = arith.constant 0 : i32
    %c0_i32_0 = arith.constant 0 : i32
    %c0_i32_1 = arith.constant 0 : i32
    %c0_i32_2 = arith.constant 0 : i32
    return %c0_i32, %c0_i32_0, %c0_i32_1 : i32, i32, i32
  }
  func.func @transform_3(%arg0: i32) -> (i32, i32) {
    %c0_i32 = arith.constant 0 : i32
    %c0_i32_0 = arith.constant 0 : i32
    %c0_i32_1 = arith.constant 0 : i32
    return %c0_i32, %c0_i32_0 : i32, i32
  }
  func.func @transform_4(%arg0: i32) -> (i32, i32, i32) {
    %c0_i32 = arith.constant 0 : i32
    %c0_i32_0 = arith.constant 0 : i32
    %c0_i32_1 = arith.constant 0 : i32
    %c0_i32_2 = arith.constant 0 : i32
    return %c0_i32, %c0_i32_0, %c0_i32_1 : i32, i32, i32
  }
  func.func @transform_5(%arg0: i32) -> (i32, i32, i32) {
    %c0_i32 = arith.constant 0 : i32
    %c0_i32_0 = arith.constant 0 : i32
    %c0_i32_1 = arith.constant 0 : i32
    %c0_i32_2 = arith.constant 0 : i32
    return %c0_i32, %c0_i32_0, %c0_i32_1 : i32, i32, i32
  }
  func.func @transform_6(%arg0: i32) -> (i32, i32) {
    %c0_i32 = arith.constant 0 : i32
    %c0_i32_0 = arith.constant 0 : i32
    %c0_i32_1 = arith.constant 0 : i32
    return %c0_i32, %c0_i32_0 : i32, i32
  }
  func.func @transform_7(%arg0: i32) -> (i32, i32, i32) {
    %c0_i32 = arith.constant 0 : i32
    %c0_i32_0 = arith.constant 0 : i32
    %c0_i32_1 = arith.constant 0 : i32
    %c0_i32_2 = arith.constant 0 : i32
    return %c0_i32, %c0_i32_0, %c0_i32_1 : i32, i32, i32
  }
  func.func @transform_8(%arg0: i32) -> (i32, i32, i32) {
    %c0_i32 = arith.constant 0 : i32
    %c0_i32_0 = arith.constant 0 : i32
    %c0_i32_1 = arith.constant 0 : i32
    %c0_i32_2 = arith.constant 0 : i32
    return %c0_i32, %c0_i32_0, %c0_i32_1 : i32, i32, i32
  }
  func.func @transform_9(%arg0: i32) -> (i32, i32) {
    %c0_i32 = arith.constant 0 : i32
    %c0_i32_0 = arith.constant 0 : i32
    %c0_i32_1 = arith.constant 0 : i32
    return %c0_i32, %c0_i32_0 : i32, i32
  }
  func.func @transform_10(%arg0: i32) -> (i32, i32) {
    %c0_i32 = arith.constant 0 : i32
    %c0_i32_0 = arith.constant 0 : i32
    %c0_i32_1 = arith.constant 0 : i32
    return %c0_i32, %c0_i32_0 : i32, i32
  }
  func.func @transform_11(%arg0: i32) -> (i32, i32) {
    %c0_i32 = arith.constant 0 : i32
    %c0_i32_0 = arith.constant 0 : i32
    %c0_i32_1 = arith.constant 0 : i32
    return %c0_i32, %c0_i32_0 : i32, i32
  }
  func.func @transform_12(%arg0: i32) -> (i32, i32, i32) {
    %c0_i32 = arith.constant 0 : i32
    %c0_i32_0 = arith.constant 0 : i32
    %c0_i32_1 = arith.constant 0 : i32
    return %arg0, %c0_i32, %c0_i32_0 : i32, i32, i32
  }
}

</mosaic_0001>

<llo_original>
// kernel: cnn_forward.1
$region0: #{cnn_forward.1}
  #allocation0 [shape = 'u32[]', space=smem, size = 0x4, offset = 0x4, fixed_abs, tag = 'smem constant byte address 0x4 - core index']
  #allocation1 [shape = 'u32[144,128]{1,0:T(1,128)}', space=vmem, size = 0x12000, scoped, tag = 'internal scratch']
  %s0 = inlined_call_operand.vmem [shape: bf16[2,8,256], index: 0, kind: input, shape index: {}]
  %s1 = inlined_call_operand.vmem [shape: bf16[9,256,64], index: 1, kind: input, shape index: {}]
  %s2 = inlined_call_operand.vmem [shape: bf16[9,32,8], index: 2, kind: input, shape index: {}]
  %s3 = inlined_call_operand.vmem [shape: f32[32,1], index: 3, kind: input, shape index: {}]
  %s4 = inlined_call_operand.vmem [shape: bf16[9,64,16], index: 4, kind: input, shape index: {}]
  %s5 = inlined_call_operand.vmem [shape: bf16[9,32,32], index: 5, kind: input, shape index: {}]
  %s6 = inlined_call_operand.vmem [shape: f32[32,1], index: 6, kind: input, shape index: {}]
  %s7 = inlined_call_operand.vmem [shape: bf16[9,16,16], index: 7, kind: input, shape index: {}]
  %s8 = inlined_call_operand.vmem [shape: bf16[9,32,32], index: 8, kind: input, shape index: {}]
  %s9 = inlined_call_operand.vmem [shape: f32[32,1], index: 9, kind: input, shape index: {}]
  %s10 = inlined_call_operand.vmem [shape: bf16[10,32], index: 10, kind: input, shape index: {}]
  %s11 = inlined_call_operand.vmem [shape: f32[10,1], index: 11, kind: input, shape index: {}]
  %s12 = inlined_call_operand.vmem [shape: f32[2,10,1], index: 12, kind: output, shape index: {}]
  %s13 = sld [smem:[#allocation0]]
  $region81: #{cnn_forward.1} parent=0
    _
  %s15 = ssub.s32 1, %s13
  %s16 = scalar_select 0, %s15, %s13
  loop: start=0, step=1, limit=4
  $region2: #{cnn_forward.1} parent=0 // loop_pre_header
    _
  $region3: #{cnn_forward.1} parent=0 // loop_header
    %s18 = sphi 0, %s22
    %p19 = scmp.ge.s32.totalorder %s18, 4
    %s28 = sphi 0, %s30
    %s31 = sphi 0, %s28
    %s32 = sphi 0, %s31
    %s48 = sphi 0, %s32
    %s52 = sphi 0, %s52
    %s54 = sphi 0, %s52
    %s55 = sphi 0, %s54
    %s69 = sphi 0, %s55
    %s73 = sphi 0, %s73
    %s75 = sphi 0, %s73
    %s76 = sphi 0, %s75
    %s90 = sphi 0, %s76
    %s94 = sphi 0, %s94
    %s96 = sphi 0, %s94
    %s97 = sphi 0, %s96
    %s111 = sphi 0, %s97
    %s115 = sphi 0, %s115
    %s117 = sphi 0, %s115
    %s118 = sphi 0, %s117
    %s132 = sphi 0, %s118
    %s136 = sphi 0, %s136
    %s138 = sphi 0, %s136
    %s139 = sphi 0, %s138
    %s153 = sphi 0, %s139
    %s157 = sphi 0, %s157
    %s159 = sphi 0, %s157
    %s160 = sphi 0, %s159
    %s174 = sphi 0, %s160
    %s178 = sphi 0, %s178
    %s180 = sphi 0, %s178
    %s181 = sphi 0, %s180
    %s195 = sphi 0, %s181
    %s199 = sphi 0, %s199
    %s201 = sphi 0, %s199
    %s202 = sphi 0, %s201
    %s216 = sphi 0, %s202
    %s220 = sphi 0, %s220
    %s222 = sphi 0, %s220
    %s223 = sphi 0, %s222
    %s237 = sphi 0, %s223
    %s241 = sphi 0, %s241
    %s243 = sphi 0, %s241
    %s244 = sphi 0, %s243
    %s258 = sphi 0, %s244
    %s262 = sphi 0, %s262
    %s264 = sphi 0, %s262
    %s265 = sphi 0, %s264
    %s279 = sphi 0, %s265
    %s285 = sphi 0, %s287
    %s288 = sphi 0, %s285
    %s289 = sphi 0, %s288
    %s305 = sphi 0, %s289
  $region4: #{cnn_forward.1} parent=0 // loop_header_branch
    %21 = sbr.rel (%p19) target = $region8
  $region5: #{cnn_forward.1} parent=0 // loop_body
    %s23 = ssub.s32 %s18, 1
    %s24 = ssub.s32 %s18, 2
    %s25 = sadd.s32 %s18, 1
    %s26 = ssub.s32 %s18, %s25
    %p27 = scmp.eq.s32.totalorder %s26, 0
    %s29 = sadd.s32 %s28, 1
    %s30 = scalar_select %p27, %s28, %s29
    %p33 = pneg %p27
    %p34 = scmp.eq.s32.totalorder %s18, 1
    %p35 = por %p33, %p34
    %p36 = scmp.ne.s32.totalorder %s28, %s31
    %p37 = scmp.eq.s32.totalorder %s18, 0
    %p38 = por %p36, %p37
    %p39 = scmp.ne.s32.totalorder %s28, %s31
    %p40 = scmp.eq.s32.totalorder %s23, 1
    %p41 = por %p39, %p40
    %p42 = scmp.ne.s32.totalorder %s31, %s32
    %p43 = scmp.eq.s32.totalorder %s23, 0
    %p44 = por %p42, %p43
    %p45 = scmp.ne.s32.totalorder %s31, %s32
    %p46 = scmp.eq.s32.totalorder %s24, 1
    %p47 = por %p45, %p46
    %p49 = scmp.ne.s32.totalorder %s32, %s48
    %p50 = scmp.eq.s32.totalorder %s24, 0
    %p51 = por %p49, %p50
    %s53 = sadd.s32 %s52, 1
    %p56 = scmp.eq.s32.totalorder %s18, 1
    %p57 = scmp.ne.s32.totalorder %s52, %s54
    %p58 = scmp.eq.s32.totalorder %s18, 0
    %p59 = por %p57, %p58
    %p60 = scmp.ne.s32.totalorder %s52, %s54
    %p61 = scmp.eq.s32.totalorder %s23, 1
    %p62 = por %p60, %p61
    %p63 = scmp.ne.s32.totalorder %s54, %s55
    %p64 = scmp.eq.s32.totalorder %s23, 0
    %p65 = por %p63, %p64
    %p66 = scmp.ne.s32.totalorder %s54, %s55
    %p67 = scmp.eq.s32.totalorder %s24, 1
    %p68 = por %p66, %p67
    %p70 = scmp.ne.s32.totalorder %s55, %s69
    %p71 = scmp.eq.s32.totalorder %s24, 0
    %p72 = por %p70, %p71
    %s74 = sadd.s32 %s73, 1
    %p77 = scmp.eq.s32.totalorder %s18, 1
    %p78 = scmp.ne.s32.totalorder %s73, %s75
    %p79 = scmp.eq.s32.totalorder %s18, 0
    %p80 = por %p78, %p79
    %p81 = scmp.ne.s32.totalorder %s73, %s75
    %p82 = scmp.eq.s32.totalorder %s23, 1
    %p83 = por %p81, %p82
    %p84 = scmp.ne.s32.totalorder %s75, %s76
    %p85 = scmp.eq.s32.totalorder %s23, 0
    %p86 = por %p84, %p85
    %p87 = scmp.ne.s32.totalorder %s75, %s76
    %p88 = scmp.eq.s32.totalorder %s24, 1
    %p89 = por %p87, %p88
    %p91 = scmp.ne.s32.totalorder %s76, %s90
    %p92 = scmp.eq.s32.totalorder %s24, 0
    %p93 = por %p91, %p92
    %s95 = sadd.s32 %s94, 1
    %p98 = scmp.eq.s32.totalorder %s18, 1
    %p99 = scmp.ne.s32.totalorder %s94, %s96
    %p100 = scmp.eq.s32.totalorder %s18, 0
    %p101 = por %p99, %p100
    %p102 = scmp.ne.s32.totalorder %s94, %s96
    %p103 = scmp.eq.s32.totalorder %s23, 1
    %p104 = por %p102, %p103
    %p105 = scmp.ne.s32.totalorder %s96, %s97
    %p106 = scmp.eq.s32.totalorder %s23, 0
    %p107 = por %p105, %p106
    %p108 = scmp.ne.s32.totalorder %s96, %s97
    %p109 = scmp.eq.s32.totalorder %s24, 1
    %p110 = por %p108, %p109
    %p112 = scmp.ne.s32.totalorder %s97, %s111
    %p113 = scmp.eq.s32.totalorder %s24, 0
    %p114 = por %p112, %p113
    %s116 = sadd.s32 %s115, 1
    %p119 = scmp.eq.s32.totalorder %s18, 1
    %p120 = scmp.ne.s32.totalorder %s115, %s117
    %p121 = scmp.eq.s32.totalorder %s18, 0
    %p122 = por %p120, %p121
    %p123 = scmp.ne.s32.totalorder %s115, %s117
    %p124 = scmp.eq.s32.totalorder %s23, 1
    %p125 = por %p123, %p124
    %p126 = scmp.ne.s32.totalorder %s117, %s118
    %p127 = scmp.eq.s32.totalorder %s23, 0
    %p128 = por %p126, %p127
    %p129 = scmp.ne.s32.totalorder %s117, %s118
    %p130 = scmp.eq.s32.totalorder %s24, 1
    %p131 = por %p129, %p130
    %p133 = scmp.ne.s32.totalorder %s118, %s132
    %p134 = scmp.eq.s32.totalorder %s24, 0
    %p135 = por %p133, %p134
    %s137 = sadd.s32 %s136, 1
    %p140 = scmp.eq.s32.totalorder %s18, 1
    %p141 = scmp.ne.s32.totalorder %s136, %s138
    %p142 = scmp.eq.s32.totalorder %s18, 0
    %p143 = por %p141, %p142
    %p144 = scmp.ne.s32.totalorder %s136, %s138
    %p145 = scmp.eq.s32.totalorder %s23, 1
    %p146 = por %p144, %p145
    %p147 = scmp.ne.s32.totalorder %s138, %s139
    %p148 = scmp.eq.s32.totalorder %s23, 0
    %p149 = por %p147, %p148
    %p150 = scmp.ne.s32.totalorder %s138, %s139
    %p151 = scmp.eq.s32.totalorder %s24, 1
    %p152 = por %p150, %p151
    %p154 = scmp.ne.s32.totalorder %s139, %s153
    %p155 = scmp.eq.s32.totalorder %s24, 0
    %p156 = por %p154, %p155
    %s158 = sadd.s32 %s157, 1
    %p161 = scmp.eq.s32.totalorder %s18, 1
    %p162 = scmp.ne.s32.totalorder %s157, %s159
    %p163 = scmp.eq.s32.totalorder %s18, 0
    %p164 = por %p162, %p163
    %p165 = scmp.ne.s32.totalorder %s157, %s159
    %p166 = scmp.eq.s32.totalorder %s23, 1
    %p167 = por %p165, %p166
    %p168 = scmp.ne.s32.totalorder %s159, %s160
    %p169 = scmp.eq.s32.totalorder %s23, 0
    %p170 = por %p168, %p169
    %p171 = scmp.ne.s32.totalorder %s159, %s160
    %p172 = scmp.eq.s32.totalorder %s24, 1
    %p173 = por %p171, %p172
    %p175 = scmp.ne.s32.totalorder %s160, %s174
    %p176 = scmp.eq.s32.totalorder %s24, 0
    %p177 = por %p175, %p176
    %s179 = sadd.s32 %s178, 1
    %p182 = scmp.eq.s32.totalorder %s18, 1
    %p183 = scmp.ne.s32.totalorder %s178, %s180
    %p184 = scmp.eq.s32.totalorder %s18, 0
    %p185 = por %p183, %p184
    %p186 = scmp.ne.s32.totalorder %s178, %s180
    %p187 = scmp.eq.s32.totalorder %s23, 1
    %p188 = por %p186, %p187
    %p189 = scmp.ne.s32.totalorder %s180, %s181
    %p190 = scmp.eq.s32.totalorder %s23, 0
    %p191 = por %p189, %p190
    %p192 = scmp.ne.s32.totalorder %s180, %s181
    %p193 = scmp.eq.s32.totalorder %s24, 1
    %p194 = por %p192, %p193
    %p196 = scmp.ne.s32.totalorder %s181, %s195
    %p197 = scmp.eq.s32.totalorder %s24, 0
    %p198 = por %p196, %p197
    %s200 = sadd.s32 %s199, 1
    %p203 = scmp.eq.s32.totalorder %s18, 1
    %p204 = scmp.ne.s32.totalorder %s199, %s201
    %p205 = scmp.eq.s32.totalorder %s18, 0
    %p206 = por %p204, %p205
    %p207 = scmp.ne.s32.totalorder %s199, %s201
    %p208 = scmp.eq.s32.totalorder %s23, 1
    %p209 = por %p207, %p208
    %p210 = scmp.ne.s32.totalorder %s201, %s202
    %p211 = scmp.eq.s32.totalorder %s23, 0
    %p212 = por %p210, %p211
    %p213 = scmp.ne.s32.totalorder %s201, %s202
    %p214 = scmp.eq.s32.totalorder %s24, 1
    %p215 = por %p213, %p214
    %p217 = scmp.ne.s32.totalorder %s202, %s216
    %p218 = scmp.eq.s32.totalorder %s24, 0
    %p219 = por %p217, %p218
    %s221 = sadd.s32 %s220, 1
    %p224 = scmp.eq.s32.totalorder %s18, 1
    %p225 = scmp.ne.s32.totalorder %s220, %s222
    %p226 = scmp.eq.s32.totalorder %s18, 0
    %p227 = por %p225, %p226
    %p228 = scmp.ne.s32.totalorder %s220, %s222
    %p229 = scmp.eq.s32.totalorder %s23, 1
    %p230 = por %p228, %p229
    %p231 = scmp.ne.s32.totalorder %s222, %s223
    %p232 = scmp.eq.s32.totalorder %s23, 0
    %p233 = por %p231, %p232
    %p234 = scmp.ne.s32.totalorder %s222, %s223
    %p235 = scmp.eq.s32.totalorder %s24, 1
    %p236 = por %p234, %p235
    %p238 = scmp.ne.s32.totalorder %s223, %s237
    %p239 = scmp.eq.s32.totalorder %s24, 0
    %p240 = por %p238, %p239
    %s242 = sadd.s32 %s241, 1
    %p245 = scmp.eq.s32.totalorder %s18, 1
    %p246 = scmp.ne.s32.totalorder %s241, %s243
    %p247 = scmp.eq.s32.totalorder %s18, 0
    %p248 = por %p246, %p247
    %p249 = scmp.ne.s32.totalorder %s241, %s243
    %p250 = scmp.eq.s32.totalorder %s23, 1
    %p251 = por %p249, %p250
    %p252 = scmp.ne.s32.totalorder %s243, %s244
    %p253 = scmp.eq.s32.totalorder %s23, 0
    %p254 = por %p252, %p253
    %p255 = scmp.ne.s32.totalorder %s243, %s244
    %p256 = scmp.eq.s32.totalorder %s24, 1
    %p257 = por %p255, %p256
    %p259 = scmp.ne.s32.totalorder %s244, %s258
    %p260 = scmp.eq.s32.totalorder %s24, 0
    %p261 = por %p259, %p260
    %s263 = sadd.s32 %s262, 1
    %p266 = scmp.eq.s32.totalorder %s18, 1
    %p267 = scmp.ne.s32.totalorder %s262, %s264
    %p268 = scmp.eq.s32.totalorder %s18, 0
    %p269 = por %p267, %p268
    %p270 = scmp.ne.s32.totalorder %s262, %s264
    %p271 = scmp.eq.s32.totalorder %s23, 1
    %p272 = por %p270, %p271
    %p273 = scmp.ne.s32.totalorder %s264, %s265
    %p274 = scmp.eq.s32.totalorder %s23, 0
    %p275 = por %p273, %p274
    %p276 = scmp.ne.s32.totalorder %s264, %s265
    %p277 = scmp.eq.s32.totalorder %s24, 1
    %p278 = por %p276, %p277
    %p280 = scmp.ne.s32.totalorder %s265, %s279
    %p281 = scmp.eq.s32.totalorder %s24, 0
    %p282 = por %p280, %p281
    %s283 = ssub.s32 %s18, %s25
    %p284 = scmp.eq.s32.totalorder %s283, 0
    %s286 = sadd.s32 %s285, 1
    %s287 = scalar_select %p284, %s285, %s286
    %p290 = pneg %p284
    %p291 = scmp.eq.s32.totalorder %s18, 1
    %p292 = por %p290, %p291
    %p293 = scmp.ne.s32.totalorder %s285, %s288
    %p294 = scmp.eq.s32.totalorder %s18, 0
    %p295 = por %p293, %p294
    %p296 = scmp.ne.s32.totalorder %s285, %s288
    %p297 = scmp.eq.s32.totalorder %s23, 1
    %p298 = por %p296, %p297
    %p299 = scmp.ne.s32.totalorder %s288, %s289
    %p300 = scmp.eq.s32.totalorder %s23, 0
    %p301 = por %p299, %p300
    %p302 = scmp.ne.s32.totalorder %s288, %s289
    %p303 = scmp.eq.s32.totalorder %s24, 1
    %p304 = por %p302, %p303
    %p306 = scmp.ne.s32.totalorder %s289, %s305
    %p307 = scmp.eq.s32.totalorder %s24, 0
    %p308 = por %p306, %p307
    %p309 = scmp.le.s32.totalorder 1, %s18
    %p310 = scmp.lt.s32.totalorder %s18, 3
    %p311 = pnand %p309, %p310
    %p312 = pneg %p311
    // Predicated region
    $region9: #{cnn_forward.1} parent=5 // pred_check
      _
    $region10: #{cnn_forward.1} parent=5 // pred_check_branch
      %314 = sbr.rel (%p311) target = $region12
    $region11: #{cnn_forward.1} parent=5 // pred_region
      %s315 = ssub.s32 %s18, 1
      // Predicated region
      $region13: #{cnn_forward.1} parent=11 // pred_check
        %p316 = pneg %p65
      $region14: #{cnn_forward.1} parent=11 // pred_check_branch
        %318 = sbr.rel (%p316) target = $region16
      $region15: #{cnn_forward.1} parent=11 // pred_region
        _
      $region16: #{cnn_forward.1} parent=11 // pred_fallthru
        _
      // Predicated region
      $region17: #{cnn_forward.1} parent=11 // pred_check
        %p319 = pneg %p86
      $region18: #{cnn_forward.1} parent=11 // pred_check_branch
        %321 = sbr.rel (%p319) target = $region20
      $region19: #{cnn_forward.1} parent=11 // pred_region
        _
      $region20: #{cnn_forward.1} parent=11 // pred_fallthru
        _
      // Predicated region
      $region21: #{cnn_forward.1} parent=11 // pred_check
        %p322 = pneg %p107
      $region22: #{cnn_forward.1} parent=11 // pred_check_branch
        %324 = sbr.rel (%p322) target = $region24
      $region23: #{cnn_forward.1} parent=11 // pred_region
        _
      $region24: #{cnn_forward.1} parent=11 // pred_fallthru
        _
      // Predicated region
      $region25: #{cnn_forward.1} parent=11 // pred_check
        %p325 = pneg %p128
      $region26: #{cnn_forward.1} parent=11 // pred_check_branch
        %327 = sbr.rel (%p325) target = $region28
      $region27: #{cnn_forward.1} parent=11 // pred_region
        _
      $region28: #{cnn_forward.1} parent=11 // pred_fallthru
        _
      // Predicated region
      $region29: #{cnn_forward.1} parent=11 // pred_check
        %p328 = pneg %p149
      $region30: #{cnn_forward.1} parent=11 // pred_check_branch
        %330 = sbr.rel (%p328) target = $region32
      $region31: #{cnn_forward.1} parent=11 // pred_region
        _
      $region32: #{cnn_forward.1} parent=11 // pred_fallthru
        _
      // Predicated region
      $region33: #{cnn_forward.1} parent=11 // pred_check
        %p331 = pneg %p170
      $region34: #{cnn_forward.1} parent=11 // pred_check_branch
        %333 = sbr.rel (%p331) target = $region36
      $region35: #{cnn_forward.1} parent=11 // pred_region
        _
      $region36: #{cnn_forward.1} parent=11 // pred_fallthru
        _
      // Predicated region
      $region37: #{cnn_forward.1} parent=11 // pred_check
        %p334 = pneg %p191
      $region38: #{cnn_forward.1} parent=11 // pred_check_branch
        %336 = sbr.rel (%p334) target = $region40
      $region39: #{cnn_forward.1} parent=11 // pred_region
        _
      $region40: #{cnn_forward.1} parent=11 // pred_fallthru
        _
      // Predicated region
      $region41: #{cnn_forward.1} parent=11 // pred_check
        %p337 = pneg %p212
      $region42: #{cnn_forward.1} parent=11 // pred_check_branch
        %339 = sbr.rel (%p337) target = $region44
      $region43: #{cnn_forward.1} parent=11 // pred_region
        _
      $region44: #{cnn_forward.1} parent=11 // pred_fallthru
        _
      // Predicated region
      $region45: #{cnn_forward.1} parent=11 // pred_check
        %p340 = pneg %p233
      $region46: #{cnn_forward.1} parent=11 // pred_check_branch
        %342 = sbr.rel (%p340) target = $region48
      $region47: #{cnn_forward.1} parent=11 // pred_region
        _
      $region48: #{cnn_forward.1} parent=11 // pred_fallthru
        _
      // Predicated region
      $region49: #{cnn_forward.1} parent=11 // pred_check
        %p343 = pneg %p254
      $region50: #{cnn_forward.1} parent=11 // pred_check_branch
        %345 = sbr.rel (%p343) target = $region52
      $region51: #{cnn_forward.1} parent=11 // pred_region
        _
      $region52: #{cnn_forward.1} parent=11 // pred_fallthru
        _
      // Predicated region
      $region53: #{cnn_forward.1} parent=11 // pred_check
        %p346 = pneg %p275
      $region54: #{cnn_forward.1} parent=11 // pred_check_branch
        %348 = sbr.rel (%p346) target = $region56
      $region55: #{cnn_forward.1} parent=11 // pred_region
        _
      $region56: #{cnn_forward.1} parent=11 // pred_fallthru
        _
    $region12: #{cnn_forward.1} parent=5 // pred_fallthru
      _
    %p349 = scmp.lt.s32.totalorder %s18, 2
    // Predicated region
    $region57: #{cnn_forward.1} parent=5 // pred_check
      %p350 = pneg %p349
    $region58: #{cnn_forward.1} parent=5 // pred_check_branch
      %352 = sbr.rel (%p350) target = $region60
    $region59: #{cnn_forward.1} parent=5 // pred_region
      // Predicated region
      $region61: #{cnn_forward.1} parent=59 // pred_check
        %p353 = pneg %p38
      $region62: #{cnn_forward.1} parent=59 // pred_check_branch
        %355 = sbr.rel (%p353) target = $region64
      $region63: #{cnn_forward.1} parent=59 // pred_region
        %p356 = scmp.lt.s32.totalorder %s18, 1
        %s357 = scalar_select %p356, %s18, 1
        %s358 = smul.addr %s357, 2
        %s359 = smul.addr %s358, 4
        %s360 = scalar_lea.vmem %s0, %s359
      $region64: #{cnn_forward.1} parent=59 // pred_fallthru
        _
    $region60: #{cnn_forward.1} parent=5 // pred_fallthru
      _
    %p361 = scmp.le.s32.totalorder 1, %s18
    %p362 = scmp.lt.s32.totalorder %s18, 3
    %p363 = pnand %p361, %p362
    %p364 = pneg %p363
    // Predicated region
    $region65: #{cnn_forward.1} parent=5 // pred_check
      _
    $region66: #{cnn_forward.1} parent=5 // pred_check_branch
      %366 = sbr.rel (%p363) target = $region68
    $region67: #{cnn_forward.1} parent=5 // pred_region
      %s367 = ssub.s32 %s18, 1
      %p368 = scmp.lt.s32.totalorder %s23, 1
      %s369 = scalar_select %p368, %s23, 1
      %s370 = smul.addr %s369, 2
      %s371 = smul.addr %s370, 4
      %s372 = scalar_lea.vmem %s0, %s371
      %p373 = pneg %p44
      %p374 = pneg %p41
      %p375 = pneg %p65
      %p376 = pneg %p62
      %p377 = pneg %p86
      %p378 = pneg %p83
      %p379 = pneg %p107
      %p380 = pneg %p104
      %p381 = pneg %p128
      %p382 = pneg %p125
      %p383 = pneg %p149
      %p384 = pneg %p146
      %p385 = pneg %p170
      %p386 = pneg %p167
      %p387 = pneg %p191
      %p388 = pneg %p188
      %p389 = pneg %p212
      %p390 = pneg %p209
      %p391 = pneg %p233
      %p392 = pneg %p230
      %p393 = pneg %p254
      %p394 = pneg %p251
      %p395 = pneg %p275
      %p396 = pneg %p272
      %p397 = pneg %p301
      %p398 = pneg %p298
      %p399 = scmp.lt.s32.totalorder %s23, 1
      %s400 = scalar_select %p399, %s23, 1
      %s401 = smul.addr %s400, 2
      %s402 = smul.addr %s401, 8
      %s403 = scalar_lea.vmem %s12, %s402
      %p404 = scmp.lt.s32.totalorder %s23, 1
      %s405 = scalar_select %p404, %s23, 1
      %s406 = smul.addr %s405, 2
      %s407 = smul.addr %s406, 4
      %s408 = scalar_lea.vmem %s0, %s407
      %p409 = scmp.lt.s32.totalorder %s23, 1
      %s410 = scalar_select %p409, %s23, 1
      %s411 = smul.addr %s410, 2
      %s412 = smul.addr %s411, 8
      %s413 = scalar_lea.vmem %s12, %s412
      %v415 = vld [vmem:[%s408] sm:$0xff]
      %v416 = vld [vmem:[%s1] sm:$0xf]
      %v417 = vld [vmem:[%s1 + $0x4] sm:$0xf]
      %v418 = vld [vmem:[%s1 + $0x8] sm:$0xf]
      %v419 = vld [vmem:[%s1 + $0xc] sm:$0xf]
      %v420 = vld [vmem:[%s1 + $0x10] sm:$0xf]
      %v421 = vld [vmem:[%s1 + $0x14] sm:$0xf]
      %v422 = vld [vmem:[%s1 + $0x18] sm:$0xf]
      %v423 = vld [vmem:[%s1 + $0x1c] sm:$0xf]
      %v424 = vld [vmem:[%s1 + $0x20] sm:$0xf]
      %v425 = vld [vmem:[%s1 + $0x24] sm:$0xf]
      %v426 = vld [vmem:[%s1 + $0x28] sm:$0xf]
      %v427 = vld [vmem:[%s1 + $0x2c] sm:$0xf]
      %v428 = vld [vmem:[%s1 + $0x30] sm:$0xf]
      %v429 = vld [vmem:[%s1 + $0x34] sm:$0xf]
      %v430 = vld [vmem:[%s1 + $0x38] sm:$0xf]
      %v431 = vld [vmem:[%s1 + $0x3c] sm:$0xf]
      %v432 = vld [vmem:[%s1 + $0x40] sm:$0xf]
      %v433 = vld [vmem:[%s1 + $0x44] sm:$0xf]
      %v434 = vld [vmem:[%s1 + $0x48] sm:$0xf]
      %v435 = vld [vmem:[%s1 + $0x4c] sm:$0xf]
      %v436 = vld [vmem:[%s1 + $0x50] sm:$0xf]
      %v437 = vld [vmem:[%s1 + $0x54] sm:$0xf]
      %v438 = vld [vmem:[%s1 + $0x58] sm:$0xf]
      %v439 = vld [vmem:[%s1 + $0x5c] sm:$0xf]
      %v440 = vld [vmem:[%s1 + $0x60] sm:$0xf]
      %v441 = vld [vmem:[%s1 + $0x64] sm:$0xf]
      %v442 = vld [vmem:[%s1 + $0x68] sm:$0xf]
      %v443 = vld [vmem:[%s1 + $0x6c] sm:$0xf]
      %v444 = vld [vmem:[%s1 + $0x70] sm:$0xf]
      %v445 = vld [vmem:[%s1 + $0x74] sm:$0xf]
      %v446 = vld [vmem:[%s1 + $0x78] sm:$0xf]
      %v447 = vld [vmem:[%s1 + $0x7c] sm:$0xf]
      %v449 = vunpack.c.l.b16 %v415
      %v450 = vunpack.c.h.b16 %v415
      %v451 = vpack.c.b16 %v449, %v449
      %v452 = vpack.c.b16 %v450, %v450
      %v487 = vunpack.c.l.b16 %v416
      %v488 = vunpack.c.l.b16 %v417
      %v489 = vunpack.c.l.b16 %v418
      %v490 = vunpack.c.l.b16 %v419
      %v491 = vunpack.c.l.b16 %v420
      %v492 = vunpack.c.l.b16 %v421
      %v493 = vunpack.c.l.b16 %v422
      %v494 = vunpack.c.l.b16 %v423
      %v495 = vunpack.c.l.b16 %v424
      %v496 = vunpack.c.l.b16 %v425
      %v497 = vunpack.c.l.b16 %v426
      %v498 = vunpack.c.l.b16 %v427
      %v499 = vunpack.c.l.b16 %v428
      %v500 = vunpack.c.l.b16 %v429
      %v501 = vunpack.c.l.b16 %v430
      %v502 = vunpack.c.l.b16 %v431
      %v503 = vunpack.c.l.b16 %v432
      %v504 = vunpack.c.l.b16 %v433
      %v505 = vunpack.c.l.b16 %v434
      %v506 = vunpack.c.l.b16 %v435
      %v507 = vunpack.c.l.b16 %v436
      %v508 = vunpack.c.l.b16 %v437
      %v509 = vunpack.c.l.b16 %v438
      %v510 = vunpack.c.l.b16 %v439
      %v511 = vunpack.c.l.b16 %v440
      %v512 = vunpack.c.l.b16 %v441
      %v513 = vunpack.c.l.b16 %v442
      %v514 = vunpack.c.l.b16 %v443
      %v515 = vunpack.c.l.b16 %v444
      %v516 = vunpack.c.l.b16 %v445
      %v517 = vunpack.c.l.b16 %v446
      %v518 = vunpack.c.l.b16 %v447
      %v519 = vpack.c.b16 %v488, %v487
      %v520 = vpack.c.b16 %v490, %v489
      %v521 = vpack.c.b16 %v492, %v491
      %v522 = vpack.c.b16 %v494, %v493
      %v523 = vpack.c.b16 %v496, %v495
      %v524 = vpack.c.b16 %v498, %v497
      %v525 = vpack.c.b16 %v500, %v499
      %v526 = vpack.c.b16 %v502, %v501
      %v527 = vpack.c.b16 %v504, %v503
      %v528 = vpack.c.b16 %v506, %v505
      %v529 = vpack.c.b16 %v508, %v507
      %v530 = vpack.c.b16 %v510, %v509
      %v531 = vpack.c.b16 %v512, %v511
      %v532 = vpack.c.b16 %v514, %v513
      %v533 = vpack.c.b16 %v516, %v515
      %v534 = vpack.c.b16 %v518, %v517
      %551 = vmatprep.subr.bf16.mxu0 0
      %552 = vmatpush1.bf16.msra.mxu0 %v526
      %553 = vmatprep.subr.bf16.mxu0 0
      %554 = vmatpush1.bf16.msra.mxu0 %v525
      %555 = vmatprep.subr.bf16.mxu0 0
      %556 = vmatpush1.bf16.msra.mxu0 %v524
      %557 = vmatprep.subr.bf16.mxu0 0
      %558 = vmatpush1.bf16.msra.mxu0 %v523
      %559 = vmatprep.subr.bf16.mxu0 0
      %560 = vmatpush1.bf16.msra.mxu0 %v522
      %561 = vmatprep.subr.bf16.mxu0 0
      %562 = vmatpush1.bf16.msra.mxu0 %v521
      %563 = vmatprep.subr.bf16.mxu0 0
      %564 = vmatpush1.bf16.msra.mxu0 %v520
      %565 = vmatprep.subr.bf16.mxu0 0
      %566 = vmatpush1.bf16.msra.mxu0 %v519
      %567 = vmatprep.subr.bf16.mxu0 0
      %568 = vmatpush2.bf16.msra.mxu0 %v534
      %569 = vmatprep.subr.bf16.mxu0 0
      %570 = vmatpush2.bf16.msra.mxu0 %v533
      %571 = vmatprep.subr.bf16.mxu0 0
      %572 = vmatpush2.bf16.msra.mxu0 %v532
      %573 = vmatprep.subr.bf16.mxu0 0
      %574 = vmatpush2.bf16.msra.mxu0 %v531
      %575 = vmatprep.subr.bf16.mxu0 0
      %576 = vmatpush2.bf16.msra.mxu0 %v530
      %577 = vmatprep.subr.bf16.mxu0 0
      %578 = vmatpush2.bf16.msra.mxu0 %v529
      %579 = vmatprep.subr.bf16.mxu0 0
      %580 = vmatpush2.bf16.msra.mxu0 %v528
      %581 = vmatprep.subr.bf16.mxu0 0
      %582 = vmatpush2.bf16.msra.mxu0 %v527
      %583 = vmatprep.mubr.bf16.mxu0 %v452
      %584 = vmatmul.mubr.bf16.gmra.mxu0 %v451
      %v585 = vpop.f32.mrf.mxu0
      %v586 = vadd.f32 0.0, %v585
      %v587 = vpop.f32.mrf.mxu0
      %v588 = vpop.f32.mrf.mxu0
      %v589 = vpop.f32.mrf.mxu0
      %590 = vdwg.mxu0
      %v591 = vld [vmem:[%s2] sm:$0xf]
      %v592 = vld [vmem:[%s2 + $0x4] sm:$0xf]
      %v593 = vld [vmem:[%s2 + $0x8] sm:$0xf]
      %v594 = vld [vmem:[%s2 + $0xc] sm:$0xf]
      %v595 = vpack.c.bf16 %v586, %v586
      %s596 = scalar_lea.vmem %s1, 128
      %v597 = vld [vmem:[%s596] sm:$0xf]
      %v598 = vld [vmem:[%s596 + $0x4] sm:$0xf]
      %v599 = vld [vmem:[%s596 + $0x8] sm:$0xf]
      %v600 = vld [vmem:[%s596 + $0xc] sm:$0xf]
      %v601 = vld [vmem:[%s596 + $0x10] sm:$0xf]
      %v602 = vld [vmem:[%s596 + $0x14] sm:$0xf]
      %v603 = vld [vmem:[%s596 + $0x18] sm:$0xf]
      %v604 = vld [vmem:[%s596 + $0x1c] sm:$0xf]
      %v605 = vld [vmem:[%s596 + $0x20] sm:$0xf]
      %v606 = vld [vmem:[%s596 + $0x24] sm:$0xf]
      %v607 = vld [vmem:[%s596 + $0x28] sm:$0xf]
      %v608 = vld [vmem:[%s596 + $0x2c] sm:$0xf]
      %v609 = vld [vmem:[%s596 + $0x30] sm:$0xf]
      %v610 = vld [vmem:[%s596 + $0x34] sm:$0xf]
      %v611 = vld [vmem:[%s596 + $0x38] sm:$0xf]
      %v612 = vld [vmem:[%s596 + $0x3c] sm:$0xf]
      %v613 = vld [vmem:[%s596 + $0x40] sm:$0xf]
      %v614 = vld [vmem:[%s596 + $0x44] sm:$0xf]
      %v615 = vld [vmem:[%s596 + $0x48] sm:$0xf]
      %v616 = vld [vmem:[%s596 + $0x4c] sm:$0xf]
      %v617 = vld [vmem:[%s596 + $0x50] sm:$0xf]
      %v618 = vld [vmem:[%s596 + $0x54] sm:$0xf]
      %v619 = vld [vmem:[%s596 + $0x58] sm:$0xf]
      %v620 = vld [vmem:[%s596 + $0x5c] sm:$0xf]
      %v621 = vld [vmem:[%s596 + $0x60] sm:$0xf]
      %v622 = vld [vmem:[%s596 + $0x64] sm:$0xf]
      %v623 = vld [vmem:[%s596 + $0x68] sm:$0xf]
      %v624 = vld [vmem:[%s596 + $0x6c] sm:$0xf]
      %v625 = vld [vmem:[%s596 + $0x70] sm:$0xf]
      %v626 = vld [vmem:[%s596 + $0x74] sm:$0xf]
      %v627 = vld [vmem:[%s596 + $0x78] sm:$0xf]
      %v628 = vld [vmem:[%s596 + $0x7c] sm:$0xf]
      %v661 = vunpack.c.l.b16 %v597
      %v662 = vunpack.c.l.b16 %v598
      %v663 = vunpack.c.l.b16 %v599
      %v664 = vunpack.c.l.b16 %v600
      %v665 = vunpack.c.l.b16 %v601
      %v666 = vunpack.c.l.b16 %v602
      %v667 = vunpack.c.l.b16 %v603
      %v668 = vunpack.c.l.b16 %v604
      %v669 = vunpack.c.l.b16 %v605
      %v670 = vunpack.c.l.b16 %v606
      %v671 = vunpack.c.l.b16 %v607
      %v672 = vunpack.c.l.b16 %v608
      %v673 = vunpack.c.l.b16 %v609
      %v674 = vunpack.c.l.b16 %v610
      %v675 = vunpack.c.l.b16 %v611
      %v676 = vunpack.c.l.b16 %v612
      %v677 = vunpack.c.l.b16 %v613
      %v678 = vunpack.c.l.b16 %v614
      %v679 = vunpack.c.l.b16 %v615
      %v680 = vunpack.c.l.b16 %v616
      %v681 = vunpack.c.l.b16 %v617
      %v682 = vunpack.c.l.b16 %v618
      %v683 = vunpack.c.l.b16 %v619
      %v684 = vunpack.c.l.b16 %v620
      %v685 = vunpack.c.l.b16 %v621
      %v686 = vunpack.c.l.b16 %v622
      %v687 = vunpack.c.l.b16 %v623
      %v688 = vunpack.c.l.b16 %v624
      %v689 = vunpack.c.l.b16 %v625
      %v690 = vunpack.c.l.b16 %v626
      %v691 = vunpack.c.l.b16 %v627
      %v692 = vunpack.c.l.b16 %v628
      %v693 = vpack.c.b16 %v662, %v661
      %v694 = vpack.c.b16 %v664, %v663
      %v695 = vpack.c.b16 %v666, %v665
      %v696 = vpack.c.b16 %v668, %v667
      %v697 = vpack.c.b16 %v670, %v669
      %v698 = vpack.c.b16 %v672, %v671
      %v699 = vpack.c.b16 %v674, %v673
      %v700 = vpack.c.b16 %v676, %v675
      %v701 = vpack.c.b16 %v678, %v677
      %v702 = vpack.c.b16 %v680, %v679
      %v703 = vpack.c.b16 %v682, %v681
      %v704 = vpack.c.b16 %v684, %v683
      %v705 = vpack.c.b16 %v686, %v685
      %v706 = vpack.c.b16 %v688, %v687
      %v707 = vpack.c.b16 %v690, %v689
      %v708 = vpack.c.b16 %v692, %v691
      %725 = vmatprep.subr.bf16.mxu0 0
      %726 = vmatpush1.bf16.msra.mxu0 %v700
      %727 = vmatprep.subr.bf16.mxu0 0
      %728 = vmatpush1.bf16.msra.mxu0 %v699
      %729 = vmatprep.subr.bf16.mxu0 0
      %730 = vmatpush1.bf16.msra.mxu0 %v698
      %731 = vmatprep.subr.bf16.mxu0 0
      %732 = vmatpush1.bf16.msra.mxu0 %v697
      %733 = vmatprep.subr.bf16.mxu0 0
      %734 = vmatpush1.bf16.msra.mxu0 %v696
      %735 = vmatprep.subr.bf16.mxu0 0
      %736 = vmatpush1.bf16.msra.mxu0 %v695
      %737 = vmatprep.subr.bf16.mxu0 0
      %738 = vmatpush1.bf16.msra.mxu0 %v694
      %739 = vmatprep.subr.bf16.mxu0 0
      %740 = vmatpush1.bf16.msra.mxu0 %v693
      %741 = vmatprep.subr.bf16.mxu0 0
      %742 = vmatpush2.bf16.msra.mxu0 %v708
      %743 = vmatprep.subr.bf16.mxu0 0
      %744 = vmatpush2.bf16.msra.mxu0 %v707
      %745 = vmatprep.subr.bf16.mxu0 0
      %746 = vmatpush2.bf16.msra.mxu0 %v706
      %747 = vmatprep.subr.bf16.mxu0 0
      %748 = vmatpush2.bf16.msra.mxu0 %v705
      %749 = vmatprep.subr.bf16.mxu0 0
      %750 = vmatpush2.bf16.msra.mxu0 %v704
      %751 = vmatprep.subr.bf16.mxu0 0
      %752 = vmatpush2.bf16.msra.mxu0 %v703
      %753 = vmatprep.subr.bf16.mxu0 0
      %754 = vmatpush2.bf16.msra.mxu0 %v702
      %755 = vmatprep.subr.bf16.mxu0 0
      %756 = vmatpush2.bf16.msra.mxu0 %v701
      %757 = vmatprep.mubr.bf16.mxu0 %v452
      %758 = vmatmul.mubr.bf16.gmra.mxu0 %v451
      %v759 = vpop.f32.mrf.mxu0
      %v760 = vadd.f32 0.0, %v759
      %v761 = vpop.f32.mrf.mxu0
      %v762 = vpop.f32.mrf.mxu0
      %v763 = vpop.f32.mrf.mxu0
      %764 = vdwg.mxu0
      %s765 = scalar_lea.vmem %s2, 16
      %v766 = vld [vmem:[%s765] sm:$0xf]
      %v767 = vld [vmem:[%s765 + $0x4] sm:$0xf]
      %v768 = vld [vmem:[%s765 + $0x8] sm:$0xf]
      %v769 = vld [vmem:[%s765 + $0xc] sm:$0xf]
      %v770 = vpack.c.bf16 %v760, %v760
      %v775 = vunpack.c.l.b16 %v766
      %v776 = vunpack.c.l.b16 %v767
      %v777 = vunpack.c.l.b16 %v768
      %v778 = vunpack.c.l.b16 %v769
      %v779 = vpack.c.b16 %v776, %v775
      %v780 = vpack.c.b16 %v778, %v777
      %vm781 = vcmask 64512
      %v783 = vsel %vm781, %v779, 0
      %v786 = vsel %vm781, %v780, 0
      %vm788 = vcmask 1043456
      %v790 = vsel %vm788, %v770, 0
      %792 = vmatprep.subr.bf16.mxu0 0
      %793 = vmatpush1.bf16.msra.mxu0 0
      %794 = vmatprep.subr.bf16.mxu0 0
      %795 = vmatpush1.bf16.msra.mxu0 0
      %796 = vmatprep.subr.bf16.mxu0 0
      %797 = vmatpush1.bf16.msra.mxu0 0
      %798 = vmatprep.subr.bf16.mxu0 0
      %799 = vmatpush1.bf16.msra.mxu0 0
      %800 = vmatprep.subr.bf16.mxu0 0
      %801 = vmatpush1.bf16.msra.mxu0 0
      %802 = vmatprep.subr.bf16.mxu0 0
      %803 = vmatpush1.bf16.msra.mxu0 0
      %804 = vmatprep.subr.bf16.mxu0 0
      %805 = vmatpush1.bf16.msra.mxu0 0
      %806 = vmatprep.subr.bf16.mxu0 0
      %807 = vmatpush1.bf16.msra.mxu0 %v790
      %808 = vmatprep.subr.bf16.mxu0 0
      %809 = vmatpush2.bf16.msra.mxu0 0
      %810 = vmatprep.subr.bf16.mxu0 0
      %811 = vmatpush2.bf16.msra.mxu0 0
      %812 = vmatprep.subr.bf16.mxu0 0
      %813 = vmatpush2.bf16.msra.mxu0 0
      %814 = vmatprep.subr.bf16.mxu0 0
      %815 = vmatpush2.bf16.msra.mxu0 0
      %816 = vmatprep.subr.bf16.mxu0 0
      %817 = vmatpush2.bf16.msra.mxu0 0
      %818 = vmatprep.subr.bf16.mxu0 0
      %819 = vmatpush2.bf16.msra.mxu0 0
      %820 = vmatprep.subr.bf16.mxu0 0
      %821 = vmatpush2.bf16.msra.mxu0 0
      %822 = vmatprep.subr.bf16.mxu0 0
      %823 = vmatpush2.bf16.msra.mxu0 0
      %824 = vmatprep.mubr.bf16.mxu0 0
      %825 = vmatmul.mubr.bf16.gmra.mxu0 %v783
      %v826 = vpop.f32.mrf.mxu0
      %v827 = vadd.f32 0.0, %v826
      %v828 = vpop.f32.mrf.mxu0
      %v829 = vpop.f32.mrf.mxu0
      %v830 = vadd.f32 0.0, %v829
      %v831 = vpop.f32.mrf.mxu0
      %832 = vmatprep.mubr.bf16.mxu0 0
      %833 = vmatmul.mubr.bf16.gmra.mxu0 %v786
      %v834 = vpop.f32.mrf.mxu0
      %v835 = vadd.f32 0.0, %v834
      %v836 = vpop.f32.mrf.mxu0
      %v837 = vpop.f32.mrf.mxu0
      %v838 = vadd.f32 0.0, %v837
      %v839 = vpop.f32.mrf.mxu0
      %840 = vdwg.mxu0
      %v845 = vunpack.c.l.b16 %v591
      %v846 = vunpack.c.l.b16 %v592
      %v847 = vunpack.c.l.b16 %v593
      %v848 = vunpack.c.l.b16 %v594
      %v849 = vpack.c.b16 %v846, %v845
      %v850 = vpack.c.b16 %v848, %v847
      %v852 = vsel %vm781, %v849, 0
      %v855 = vsel %vm781, %v850, 0
      %v858 = vsel %vm788, %v595, 0
      %860 = vmatprep.subr.bf16.mxu0 0
      %861 = vmatpush1.bf16.msra.mxu0 0
      %862 = vmatprep.subr.bf16.mxu0 0
      %863 = vmatpush1.bf16.msra.mxu0 0
      %864 = vmatprep.subr.bf16.mxu0 0
      %865 = vmatpush1.bf16.msra.mxu0 0
      %866 = vmatprep.subr.bf16.mxu0 0
      %867 = vmatpush1.bf16.msra.mxu0 0
      %868 = vmatprep.subr.bf16.mxu0 0
      %869 = vmatpush1.bf16.msra.mxu0 0
      %870 = vmatprep.subr.bf16.mxu0 0
      %871 = vmatpush1.bf16.msra.mxu0 0
      %872 = vmatprep.subr.bf16.mxu0 0
      %873 = vmatpush1.bf16.msra.mxu0 0
      %874 = vmatprep.subr.bf16.mxu0 0
      %875 = vmatpush1.bf16.msra.mxu0 %v858
      %876 = vmatprep.subr.bf16.mxu0 0
      %877 = vmatpush2.bf16.msra.mxu0 0
      %878 = vmatprep.subr.bf16.mxu0 0
      %879 = vmatpush2.bf16.msra.mxu0 0
      %880 = vmatprep.subr.bf16.mxu0 0
      %881 = vmatpush2.bf16.msra.mxu0 0
      %882 = vmatprep.subr.bf16.mxu0 0
      %883 = vmatpush2.bf16.msra.mxu0 0
      %884 = vmatprep.subr.bf16.mxu0 0
      %885 = vmatpush2.bf16.msra.mxu0 0
      %886 = vmatprep.subr.bf16.mxu0 0
      %887 = vmatpush2.bf16.msra.mxu0 0
      %888 = vmatprep.subr.bf16.mxu0 0
      %889 = vmatpush2.bf16.msra.mxu0 0
      %890 = vmatprep.subr.bf16.mxu0 0
      %891 = vmatpush2.bf16.msra.mxu0 0
      %892 = vmatprep.mubr.bf16.mxu0 0
      %893 = vmatmul.mubr.bf16.gmra.mxu0 %v852
      %v894 = vpop.f32.mrf.mxu0
      %v895 = vadd.f32 %v827, %v894
      %v896 = vpop.f32.mrf.mxu0
      %v897 = vpop.f32.mrf.mxu0
      %v898 = vadd.f32 %v830, %v897
      %v899 = vpop.f32.mrf.mxu0
      %900 = vmatprep.mubr.bf16.mxu0 0
      %901 = vmatmul.mubr.bf16.gmra.mxu0 %v855
      %v902 = vpop.f32.mrf.mxu0
      %v903 = vadd.f32 %v835, %v902
      %v904 = vpop.f32.mrf.mxu0
      %v905 = vpop.f32.mrf.mxu0
      %v906 = vadd.f32 %v838, %v905
      %v907 = vpop.f32.mrf.mxu0
      %908 = vdwg.mxu0
      %s909 = scalar_lea.vmem %s1, 256
      %v910 = vld [vmem:[%s909] sm:$0xf]
      %v911 = vld [vmem:[%s909 + $0x4] sm:$0xf]
      %v912 = vld [vmem:[%s909 + $0x8] sm:$0xf]
      %v913 = vld [vmem:[%s909 + $0xc] sm:$0xf]
      %v914 = vld [vmem:[%s909 + $0x10] sm:$0xf]
      %v915 = vld [vmem:[%s909 + $0x14] sm:$0xf]
      %v916 = vld [vmem:[%s909 + $0x18] sm:$0xf]
      %v917 = vld [vmem:[%s909 + $0x1c] sm:$0xf]
      %v918 = vld [vmem:[%s909 + $0x20] sm:$0xf]
      %v919 = vld [vmem:[%s909 + $0x24] sm:$0xf]
      %v920 = vld [vmem:[%s909 + $0x28] sm:$0xf]
      %v921 = vld [vmem:[%s909 + $0x2c] sm:$0xf]
      %v922 = vld [vmem:[%s909 + $0x30] sm:$0xf]
      %v923 = vld [vmem:[%s909 + $0x34] sm:$0xf]
      %v924 = vld [vmem:[%s909 + $0x38] sm:$0xf]
      %v925 = vld [vmem:[%s909 + $0x3c] sm:$0xf]
      %v926 = vld [vmem:[%s909 + $0x40] sm:$0xf]
      %v927 = vld [vmem:[%s909 + $0x44] sm:$0xf]
      %v928 = vld [vmem:[%s909 + $0x48] sm:$0xf]
      %v929 = vld [vmem:[%s909 + $0x4c] sm:$0xf]
      %v930 = vld [vmem:[%s909 + $0x50] sm:$0xf]
      %v931 = vld [vmem:[%s909 + $0x54] sm:$0xf]
      %v932 = vld [vmem:[%s909 + $0x58] sm:$0xf]
      %v933 = vld [vmem:[%s909 + $0x5c] sm:$0xf]
      %v934 = vld [vmem:[%s909 + $0x60] sm:$0xf]
      %v935 = vld [vmem:[%s909 + $0x64] sm:$0xf]
      %v936 = vld [vmem:[%s909 + $0x68] sm:$0xf]
      %v937 = vld [vmem:[%s909 + $0x6c] sm:$0xf]
      %v938 = vld [vmem:[%s909 + $0x70] sm:$0xf]
      %v939 = vld [vmem:[%s909 + $0x74] sm:$0xf]
      %v940 = vld [vmem:[%s909 + $0x78] sm:$0xf]
      %v941 = vld [vmem:[%s909 + $0x7c] sm:$0xf]
      %v974 = vunpack.c.l.b16 %v910
      %v975 = vunpack.c.l.b16 %v911
      %v976 = vunpack.c.l.b16 %v912
      %v977 = vunpack.c.l.b16 %v913
      %v978 = vunpack.c.l.b16 %v914
      %v979 = vunpack.c.l.b16 %v915
      %v980 = vunpack.c.l.b16 %v916
      %v981 = vunpack.c.l.b16 %v917
      %v982 = vunpack.c.l.b16 %v918
      %v983 = vunpack.c.l.b16 %v919
      %v984 = vunpack.c.l.b16 %v920
      %v985 = vunpack.c.l.b16 %v921
      %v986 = vunpack.c.l.b16 %v922
      %v987 = vunpack.c.l.b16 %v923
      %v988 = vunpack.c.l.b16 %v924
      %v989 = vunpack.c.l.b16 %v925
      %v990 = vunpack.c.l.b16 %v926
      %v991 = vunpack.c.l.b16 %v927
      %v992 = vunpack.c.l.b16 %v928
      %v993 = vunpack.c.l.b16 %v929
      %v994 = vunpack.c.l.b16 %v930
      %v995 = vunpack.c.l.b16 %v931
      %v996 = vunpack.c.l.b16 %v932
      %v997 = vunpack.c.l.b16 %v933
      %v998 = vunpack.c.l.b16 %v934
      %v999 = vunpack.c.l.b16 %v935
      %v1000 = vunpack.c.l.b16 %v936
      %v1001 = vunpack.c.l.b16 %v937
      %v1002 = vunpack.c.l.b16 %v938
      %v1003 = vunpack.c.l.b16 %v939
      %v1004 = vunpack.c.l.b16 %v940
      %v1005 = vunpack.c.l.b16 %v941
      %v1006 = vpack.c.b16 %v975, %v974
      %v1007 = vpack.c.b16 %v977, %v976
      %v1008 = vpack.c.b16 %v979, %v978
      %v1009 = vpack.c.b16 %v981, %v980
      %v1010 = vpack.c.b16 %v983, %v982
      %v1011 = vpack.c.b16 %v985, %v984
      %v1012 = vpack.c.b16 %v987, %v986
      %v1013 = vpack.c.b16 %v989, %v988
      %v1014 = vpack.c.b16 %v991, %v990
      %v1015 = vpack.c.b16 %v993, %v992
      %v1016 = vpack.c.b16 %v995, %v994
      %v1017 = vpack.c.b16 %v997, %v996
      %v1018 = vpack.c.b16 %v999, %v998
      %v1019 = vpack.c.b16 %v1001, %v1000
      %v1020 = vpack.c.b16 %v1003, %v1002
      %v1021 = vpack.c.b16 %v1005, %v1004
      %1038 = vmatprep.subr.bf16.mxu0 0
      %1039 = vmatpush1.bf16.msra.mxu0 %v1013
      %1040 = vmatprep.subr.bf16.mxu0 0
      %1041 = vmatpush1.bf16.msra.mxu0 %v1012
      %1042 = vmatprep.subr.bf16.mxu0 0
      %1043 = vmatpush1.bf16.msra.mxu0 %v1011
      %1044 = vmatprep.subr.bf16.mxu0 0
      %1045 = vmatpush1.bf16.msra.mxu0 %v1010
      %1046 = vmatprep.subr.bf16.mxu0 0
      %1047 = vmatpush1.bf16.msra.mxu0 %v1009
      %1048 = vmatprep.subr.bf16.mxu0 0
      %1049 = vmatpush1.bf16.msra.mxu0 %v1008
      %1050 = vmatprep.subr.bf16.mxu0 0
      %1051 = vmatpush1.bf16.msra.mxu0 %v1007
      %1052 = vmatprep.subr.bf16.mxu0 0
      %1053 = vmatpush1.bf16.msra.mxu0 %v1006
      %1054 = vmatprep.subr.bf16.mxu0 0
      %1055 = vmatpush2.bf16.msra.mxu0 %v1021
      %1056 = vmatprep.subr.bf16.mxu0 0
      %1057 = vmatpush2.bf16.msra.mxu0 %v1020
      %1058 = vmatprep.subr.bf16.mxu0 0
      %1059 = vmatpush2.bf16.msra.mxu0 %v1019
      %1060 = vmatprep.subr.bf16.mxu0 0
      %1061 = vmatpush2.bf16.msra.mxu0 %v1018
      %1062 = vmatprep.subr.bf16.mxu0 0
      %1063 = vmatpush2.bf16.msra.mxu0 %v1017
      %1064 = vmatprep.subr.bf16.mxu0 0
      %1065 = vmatpush2.bf16.msra.mxu0 %v1016
      %1066 = vmatprep.subr.bf16.mxu0 0
      %1067 = vmatpush2.bf16.msra.mxu0 %v1015
      %1068 = vmatprep.subr.bf16.mxu0 0
      %1069 = vmatpush2.bf16.msra.mxu0 %v1014
      %1070 = vmatprep.mubr.bf16.mxu0 %v452
      %1071 = vmatmul.mubr.bf16.gmra.mxu0 %v451
      %v1072 = vpop.f32.mrf.mxu0
      %v1073 = vadd.f32 0.0, %v1072
      %v1074 = vpop.f32.mrf.mxu0
      %v1075 = vpop.f32.mrf.mxu0
      %v1076 = vpop.f32.mrf.mxu0
      %1077 = vdwg.mxu0
      %s1078 = scalar_lea.vmem %s2, 32
      %v1079 = vld [vmem:[%s1078] sm:$0xf]
      %v1080 = vld [vmem:[%s1078 + $0x4] sm:$0xf]
      %v1081 = vld [vmem:[%s1078 + $0x8] sm:$0xf]
      %v1082 = vld [vmem:[%s1078 + $0xc] sm:$0xf]
      %v1083 = vpack.c.bf16 %v1073, %v1073
      %v1088 = vunpack.c.l.b16 %v1079
      %v1089 = vunpack.c.l.b16 %v1080
      %v1090 = vunpack.c.l.b16 %v1081
      %v1091 = vunpack.c.l.b16 %v1082
      %v1092 = vpack.c.b16 %v1089, %v1088
      %v1093 = vpack.c.b16 %v1091, %v1090
      %v1095 = vsel %vm781, %v1092, 0
      %v1098 = vsel %vm781, %v1093, 0
      %v1101 = vsel %vm788, %v1083, 0
      %1103 = vmatprep.subr.bf16.mxu0 0
      %1104 = vmatpush1.bf16.msra.mxu0 0
      %1105 = vmatprep.subr.bf16.mxu0 0
      %1106 = vmatpush1.bf16.msra.mxu0 0
      %1107 = vmatprep.subr.bf16.mxu0 0
      %1108 = vmatpush1.bf16.msra.mxu0 0
      %1109 = vmatprep.subr.bf16.mxu0 0
      %1110 = vmatpush1.bf16.msra.mxu0 0
      %1111 = vmatprep.subr.bf16.mxu0 0
      %1112 = vmatpush1.bf16.msra.mxu0 0
      %1113 = vmatprep.subr.bf16.mxu0 0
      %1114 = vmatpush1.bf16.msra.mxu0 0
      %1115 = vmatprep.subr.bf16.mxu0 0
      %1116 = vmatpush1.bf16.msra.mxu0 0
      %1117 = vmatprep.subr.bf16.mxu0 0
      %1118 = vmatpush1.bf16.msra.mxu0 %v1101
      %1119 = vmatprep.subr.bf16.mxu0 0
      %1120 = vmatpush2.bf16.msra.mxu0 0
      %1121 = vmatprep.subr.bf16.mxu0 0
      %1122 = vmatpush2.bf16.msra.mxu0 0
      %1123 = vmatprep.subr.bf16.mxu0 0
      %1124 = vmatpush2.bf16.msra.mxu0 0
      %1125 = vmatprep.subr.bf16.mxu0 0
      %1126 = vmatpush2.bf16.msra.mxu0 0
      %1127 = vmatprep.subr.bf16.mxu0 0
      %1128 = vmatpush2.bf16.msra.mxu0 0
      %1129 = vmatprep.subr.bf16.mxu0 0
      %1130 = vmatpush2.bf16.msra.mxu0 0
      %1131 = vmatprep.subr.bf16.mxu0 0
      %1132 = vmatpush2.bf16.msra.mxu0 0
      %1133 = vmatprep.subr.bf16.mxu0 0
      %1134 = vmatpush2.bf16.msra.mxu0 0
      %1135 = vmatprep.mubr.bf16.mxu0 0
      %1136 = vmatmul.mubr.bf16.gmra.mxu0 %v1095
      %v1137 = vpop.f32.mrf.mxu0
      %v1138 = vadd.f32 0.0, %v1137
      %v1139 = vpop.f32.mrf.mxu0
      %v1140 = vpop.f32.mrf.mxu0
      %v1141 = vadd.f32 0.0, %v1140
      %v1142 = vpop.f32.mrf.mxu0
      %1143 = vmatprep.mubr.bf16.mxu0 0
      %1144 = vmatmul.mubr.bf16.gmra.mxu0 %v1098
      %v1145 = vpop.f32.mrf.mxu0
      %v1146 = vadd.f32 0.0, %v1145
      %v1147 = vpop.f32.mrf.mxu0
      %v1148 = vpop.f32.mrf.mxu0
      %v1149 = vadd.f32 0.0, %v1148
      %v1150 = vpop.f32.mrf.mxu0
      %1151 = vdwg.mxu0
      %v1152 = vadd.f32 %v895, %v1138
      %v1153 = vadd.f32 %v898, %v1141
      %v1154 = vadd.f32 %v903, %v1146
      %v1155 = vadd.f32 %v906, %v1149
      %s1156 = scalar_lea.vmem %s1, 384
      %v1157 = vld [vmem:[%s1156] sm:$0xf]
      %v1158 = vld [vmem:[%s1156 + $0x4] sm:$0xf]
      %v1159 = vld [vmem:[%s1156 + $0x8] sm:$0xf]
      %v1160 = vld [vmem:[%s1156 + $0xc] sm:$0xf]
      %v1161 = vld [vmem:[%s1156 + $0x10] sm:$0xf]
      %v1162 = vld [vmem:[%s1156 + $0x14] sm:$0xf]
      %v1163 = vld [vmem:[%s1156 + $0x18] sm:$0xf]
      %v1164 = vld [vmem:[%s1156 + $0x1c] sm:$0xf]
      %v1165 = vld [vmem:[%s1156 + $0x20] sm:$0xf]
      %v1166 = vld [vmem:[%s1156 + $0x24] sm:$0xf]
      %v1167 = vld [vmem:[%s1156 + $0x28] sm:$0xf]
      %v1168 = vld [vmem:[%s1156 + $0x2c] sm:$0xf]
      %v1169 = vld [vmem:[%s1156 + $0x30] sm:$0xf]
      %v1170 = vld [vmem:[%s1156 + $0x34] sm:$0xf]
      %v1171 = vld [vmem:[%s1156 + $0x38] sm:$0xf]
      %v1172 = vld [vmem:[%s1156 + $0x3c] sm:$0xf]
      %v1173 = vld [vmem:[%s1156 + $0x40] sm:$0xf]
      %v1174 = vld [vmem:[%s1156 + $0x44] sm:$0xf]
      %v1175 = vld [vmem:[%s1156 + $0x48] sm:$0xf]
      %v1176 = vld [vmem:[%s1156 + $0x4c] sm:$0xf]
      %v1177 = vld [vmem:[%s1156 + $0x50] sm:$0xf]
      %v1178 = vld [vmem:[%s1156 + $0x54] sm:$0xf]
      %v1179 = vld [vmem:[%s1156 + $0x58] sm:$0xf]
      %v1180 = vld [vmem:[%s1156 + $0x5c] sm:$0xf]
      %v1181 = vld [vmem:[%s1156 + $0x60] sm:$0xf]
      %v1182 = vld [vmem:[%s1156 + $0x64] sm:$0xf]
      %v1183 = vld [vmem:[%s1156 + $0x68] sm:$0xf]
      %v1184 = vld [vmem:[%s1156 + $0x6c] sm:$0xf]
      %v1185 = vld [vmem:[%s1156 + $0x70] sm:$0xf]
      %v1186 = vld [vmem:[%s1156 + $0x74] sm:$0xf]
      %v1187 = vld [vmem:[%s1156 + $0x78] sm:$0xf]
      %v1188 = vld [vmem:[%s1156 + $0x7c] sm:$0xf]
      %v1221 = vunpack.c.l.b16 %v1157
      %v1222 = vunpack.c.l.b16 %v1158
      %v1223 = vunpack.c.l.b16 %v1159
      %v1224 = vunpack.c.l.b16 %v1160
      %v1225 = vunpack.c.l.b16 %v1161
      %v1226 = vunpack.c.l.b16 %v1162
      %v1227 = vunpack.c.l.b16 %v1163
      %v1228 = vunpack.c.l.b16 %v1164
      %v1229 = vunpack.c.l.b16 %v1165
      %v1230 = vunpack.c.l.b16 %v1166
      %v1231 = vunpack.c.l.b16 %v1167
      %v1232 = vunpack.c.l.b16 %v1168
      %v1233 = vunpack.c.l.b16 %v1169
      %v1234 = vunpack.c.l.b16 %v1170
      %v1235 = vunpack.c.l.b16 %v1171
      %v1236 = vunpack.c.l.b16 %v1172
      %v1237 = vunpack.c.l.b16 %v1173
      %v1238 = vunpack.c.l.b16 %v1174
      %v1239 = vunpack.c.l.b16 %v1175
      %v1240 = vunpack.c.l.b16 %v1176
      %v1241 = vunpack.c.l.b16 %v1177
      %v1242 = vunpack.c.l.b16 %v1178
      %v1243 = vunpack.c.l.b16 %v1179
      %v1244 = vunpack.c.l.b16 %v1180
      %v1245 = vunpack.c.l.b16 %v1181
      %v1246 = vunpack.c.l.b16 %v1182
      %v1247 = vunpack.c.l.b16 %v1183
      %v1248 = vunpack.c.l.b16 %v1184
      %v1249 = vunpack.c.l.b16 %v1185
      %v1250 = vunpack.c.l.b16 %v1186
      %v1251 = vunpack.c.l.b16 %v1187
      %v1252 = vunpack.c.l.b16 %v1188
      %v1253 = vpack.c.b16 %v1222, %v1221
      %v1254 = vpack.c.b16 %v1224, %v1223
      %v1255 = vpack.c.b16 %v1226, %v1225
      %v1256 = vpack.c.b16 %v1228, %v1227
      %v1257 = vpack.c.b16 %v1230, %v1229
      %v1258 = vpack.c.b16 %v1232, %v1231
      %v1259 = vpack.c.b16 %v1234, %v1233
      %v1260 = vpack.c.b16 %v1236, %v1235
      %v1261 = vpack.c.b16 %v1238, %v1237
      %v1262 = vpack.c.b16 %v1240, %v1239
      %v1263 = vpack.c.b16 %v1242, %v1241
      %v1264 = vpack.c.b16 %v1244, %v1243
      %v1265 = vpack.c.b16 %v1246, %v1245
      %v1266 = vpack.c.b16 %v1248, %v1247
      %v1267 = vpack.c.b16 %v1250, %v1249
      %v1268 = vpack.c.b16 %v1252, %v1251
      %1285 = vmatprep.subr.bf16.mxu0 0
      %1286 = vmatpush1.bf16.msra.mxu0 %v1260
      %1287 = vmatprep.subr.bf16.mxu0 0
      %1288 = vmatpush1.bf16.msra.mxu0 %v1259
      %1289 = vmatprep.subr.bf16.mxu0 0
      %1290 = vmatpush1.bf16.msra.mxu0 %v1258
      %1291 = vmatprep.subr.bf16.mxu0 0
      %1292 = vmatpush1.bf16.msra.mxu0 %v1257
      %1293 = vmatprep.subr.bf16.mxu0 0
      %1294 = vmatpush1.bf16.msra.mxu0 %v1256
      %1295 = vmatprep.subr.bf16.mxu0 0
      %1296 = vmatpush1.bf16.msra.mxu0 %v1255
      %1297 = vmatprep.subr.bf16.mxu0 0
      %1298 = vmatpush1.bf16.msra.mxu0 %v1254
      %1299 = vmatprep.subr.bf16.mxu0 0
      %1300 = vmatpush1.bf16.msra.mxu0 %v1253
      %1301 = vmatprep.subr.bf16.mxu0 0
      %1302 = vmatpush2.bf16.msra.mxu0 %v1268
      %1303 = vmatprep.subr.bf16.mxu0 0
      %1304 = vmatpush2.bf16.msra.mxu0 %v1267
      %1305 = vmatprep.subr.bf16.mxu0 0
      %1306 = vmatpush2.bf16.msra.mxu0 %v1266
      %1307 = vmatprep.subr.bf16.mxu0 0
      %1308 = vmatpush2.bf16.msra.mxu0 %v1265
      %1309 = vmatprep.subr.bf16.mxu0 0
      %1310 = vmatpush2.bf16.msra.mxu0 %v1264
      %1311 = vmatprep.subr.bf16.mxu0 0
      %1312 = vmatpush2.bf16.msra.mxu0 %v1263
      %1313 = vmatprep.subr.bf16.mxu0 0
      %1314 = vmatpush2.bf16.msra.mxu0 %v1262
      %1315 = vmatprep.subr.bf16.mxu0 0
      %1316 = vmatpush2.bf16.msra.mxu0 %v1261
      %1317 = vmatprep.mubr.bf16.mxu0 %v452
      %1318 = vmatmul.mubr.bf16.gmra.mxu0 %v451
      %v1319 = vpop.f32.mrf.mxu0
      %v1320 = vadd.f32 0.0, %v1319
      %v1321 = vpop.f32.mrf.mxu0
      %v1322 = vpop.f32.mrf.mxu0
      %v1323 = vpop.f32.mrf.mxu0
      %1324 = vdwg.mxu0
      %s1325 = scalar_lea.vmem %s2, 48
      %v1326 = vld [vmem:[%s1325] sm:$0xf]
      %v1327 = vld [vmem:[%s1325 + $0x4] sm:$0xf]
      %v1328 = vld [vmem:[%s1325 + $0x8] sm:$0xf]
      %v1329 = vld [vmem:[%s1325 + $0xc] sm:$0xf]
      %v1330 = vpack.c.bf16 %v1320, %v1320
      %v1335 = vunpack.c.l.b16 %v1326
      %v1336 = vunpack.c.l.b16 %v1327
      %v1337 = vunpack.c.l.b16 %v1328
      %v1338 = vunpack.c.l.b16 %v1329
      %v1339 = vpack.c.b16 %v1336, %v1335
      %v1340 = vpack.c.b16 %v1338, %v1337
      %v1342 = vsel %vm781, %v1339, 0
      %v1345 = vsel %vm781, %v1340, 0
      %v1348 = vsel %vm788, %v1330, 0
      %1350 = vmatprep.subr.bf16.mxu0 0
      %1351 = vmatpush1.bf16.msra.mxu0 0
      %1352 = vmatprep.subr.bf16.mxu0 0
      %1353 = vmatpush1.bf16.msra.mxu0 0
      %1354 = vmatprep.subr.bf16.mxu0 0
      %1355 = vmatpush1.bf16.msra.mxu0 0
      %1356 = vmatprep.subr.bf16.mxu0 0
      %1357 = vmatpush1.bf16.msra.mxu0 0
      %1358 = vmatprep.subr.bf16.mxu0 0
      %1359 = vmatpush1.bf16.msra.mxu0 0
      %1360 = vmatprep.subr.bf16.mxu0 0
      %1361 = vmatpush1.bf16.msra.mxu0 0
      %1362 = vmatprep.subr.bf16.mxu0 0
      %1363 = vmatpush1.bf16.msra.mxu0 0
      %1364 = vmatprep.subr.bf16.mxu0 0
      %1365 = vmatpush1.bf16.msra.mxu0 %v1348
      %1366 = vmatprep.subr.bf16.mxu0 0
      %1367 = vmatpush2.bf16.msra.mxu0 0
      %1368 = vmatprep.subr.bf16.mxu0 0
      %1369 = vmatpush2.bf16.msra.mxu0 0
      %1370 = vmatprep.subr.bf16.mxu0 0
      %1371 = vmatpush2.bf16.msra.mxu0 0
      %1372 = vmatprep.subr.bf16.mxu0 0
      %1373 = vmatpush2.bf16.msra.mxu0 0
      %1374 = vmatprep.subr.bf16.mxu0 0
      %1375 = vmatpush2.bf16.msra.mxu0 0
      %1376 = vmatprep.subr.bf16.mxu0 0
      %1377 = vmatpush2.bf16.msra.mxu0 0
      %1378 = vmatprep.subr.bf16.mxu0 0
      %1379 = vmatpush2.bf16.msra.mxu0 0
      %1380 = vmatprep.subr.bf16.mxu0 0
      %1381 = vmatpush2.bf16.msra.mxu0 0
      %1382 = vmatprep.mubr.bf16.mxu0 0
      %1383 = vmatmul.mubr.bf16.gmra.mxu0 %v1342
      %v1384 = vpop.f32.mrf.mxu0
      %v1385 = vadd.f32 0.0, %v1384
      %v1386 = vpop.f32.mrf.mxu0
      %v1387 = vpop.f32.mrf.mxu0
      %v1388 = vadd.f32 0.0, %v1387
      %v1389 = vpop.f32.mrf.mxu0
      %1390 = vmatprep.mubr.bf16.mxu0 0
      %1391 = vmatmul.mubr.bf16.gmra.mxu0 %v1345
      %v1392 = vpop.f32.mrf.mxu0
      %v1393 = vadd.f32 0.0, %v1392
      %v1394 = vpop.f32.mrf.mxu0
      %v1395 = vpop.f32.mrf.mxu0
      %v1396 = vadd.f32 0.0, %v1395
      %v1397 = vpop.f32.mrf.mxu0
      %1398 = vdwg.mxu0
      %v1399 = vadd.f32 %v1152, %v1385
      %v1400 = vadd.f32 %v1153, %v1388
      %v1401 = vadd.f32 %v1154, %v1393
      %v1402 = vadd.f32 %v1155, %v1396
      %s1403 = scalar_lea.vmem %s1, 512
      %v1404 = vld [vmem:[%s1403] sm:$0xf]
      %v1405 = vld [vmem:[%s1403 + $0x4] sm:$0xf]
      %v1406 = vld [vmem:[%s1403 + $0x8] sm:$0xf]
      %v1407 = vld [vmem:[%s1403 + $0xc] sm:$0xf]
      %v1408 = vld [vmem:[%s1403 + $0x10] sm:$0xf]
      %v1409 = vld [vmem:[%s1403 + $0x14] sm:$0xf]
      %v1410 = vld [vmem:[%s1403 + $0x18] sm:$0xf]
      %v1411 = vld [vmem:[%s1403 + $0x1c] sm:$0xf]
      %v1412 = vld [vmem:[%s1403 + $0x20] sm:$0xf]
      %v1413 = vld [vmem:[%s1403 + $0x24] sm:$0xf]
      %v1414 = vld [vmem:[%s1403 + $0x28] sm:$0xf]
      %v1415 = vld [vmem:[%s1403 + $0x2c] sm:$0xf]
      %v1416 = vld [vmem:[%s1403 + $0x30] sm:$0xf]
      %v1417 = vld [vmem:[%s1403 + $0x34] sm:$0xf]
      %v1418 = vld [vmem:[%s1403 + $0x38] sm:$0xf]
      %v1419 = vld [vmem:[%s1403 + $0x3c] sm:$0xf]
      %v1420 = vld [vmem:[%s1403 + $0x40] sm:$0xf]
      %v1421 = vld [vmem:[%s1403 + $0x44] sm:$0xf]
      %v1422 = vld [vmem:[%s1403 + $0x48] sm:$0xf]
      %v1423 = vld [vmem:[%s1403 + $0x4c] sm:$0xf]
      %v1424 = vld [vmem:[%s1403 + $0x50] sm:$0xf]
      %v1425 = vld [vmem:[%s1403 + $0x54] sm:$0xf]
      %v1426 = vld [vmem:[%s1403 + $0x58] sm:$0xf]
      %v1427 = vld [vmem:[%s1403 + $0x5c] sm:$0xf]
      %v1428 = vld [vmem:[%s1403 + $0x60] sm:$0xf]
      %v1429 = vld [vmem:[%s1403 + $0x64] sm:$0xf]
      %v1430 = vld [vmem:[%s1403 + $0x68] sm:$0xf]
      %v1431 = vld [vmem:[%s1403 + $0x6c] sm:$0xf]
      %v1432 = vld [vmem:[%s1403 + $0x70] sm:$0xf]
      %v1433 = vld [vmem:[%s1403 + $0x74] sm:$0xf]
      %v1434 = vld [vmem:[%s1403 + $0x78] sm:$0xf]
      %v1435 = vld [vmem:[%s1403 + $0x7c] sm:$0xf]
      %v1468 = vunpack.c.l.b16 %v1404
      %v1469 = vunpack.c.l.b16 %v1405
      %v1470 = vunpack.c.l.b16 %v1406
      %v1471 = vunpack.c.l.b16 %v1407
      %v1472 = vunpack.c.l.b16 %v1408
      %v1473 = vunpack.c.l.b16 %v1409
      %v1474 = vunpack.c.l.b16 %v1410
      %v1475 = vunpack.c.l.b16 %v1411
      %v1476 = vunpack.c.l.b16 %v1412
      %v1477 = vunpack.c.l.b16 %v1413
      %v1478 = vunpack.c.l.b16 %v1414
      %v1479 = vunpack.c.l.b16 %v1415
      %v1480 = vunpack.c.l.b16 %v1416
      %v1481 = vunpack.c.l.b16 %v1417
      %v1482 = vunpack.c.l.b16 %v1418
      %v1483 = vunpack.c.l.b16 %v1419
      %v1484 = vunpack.c.l.b16 %v1420
      %v1485 = vunpack.c.l.b16 %v1421
      %v1486 = vunpack.c.l.b16 %v1422
      %v1487 = vunpack.c.l.b16 %v1423
      %v1488 = vunpack.c.l.b16 %v1424
      %v1489 = vunpack.c.l.b16 %v1425
      %v1490 = vunpack.c.l.b16 %v1426
      %v1491 = vunpack.c.l.b16 %v1427
      %v1492 = vunpack.c.l.b16 %v1428
      %v1493 = vunpack.c.l.b16 %v1429
      %v1494 = vunpack.c.l.b16 %v1430
      %v1495 = vunpack.c.l.b16 %v1431
      %v1496 = vunpack.c.l.b16 %v1432
      %v1497 = vunpack.c.l.b16 %v1433
      %v1498 = vunpack.c.l.b16 %v1434
      %v1499 = vunpack.c.l.b16 %v1435
      %v1500 = vpack.c.b16 %v1469, %v1468
      %v1501 = vpack.c.b16 %v1471, %v1470
      %v1502 = vpack.c.b16 %v1473, %v1472
      %v1503 = vpack.c.b16 %v1475, %v1474
      %v1504 = vpack.c.b16 %v1477, %v1476
      %v1505 = vpack.c.b16 %v1479, %v1478
      %v1506 = vpack.c.b16 %v1481, %v1480
      %v1507 = vpack.c.b16 %v1483, %v1482
      %v1508 = vpack.c.b16 %v1485, %v1484
      %v1509 = vpack.c.b16 %v1487, %v1486
      %v1510 = vpack.c.b16 %v1489, %v1488
      %v1511 = vpack.c.b16 %v1491, %v1490
      %v1512 = vpack.c.b16 %v1493, %v1492
      %v1513 = vpack.c.b16 %v1495, %v1494
      %v1514 = vpack.c.b16 %v1497, %v1496
      %v1515 = vpack.c.b16 %v1499, %v1498
      %1532 = vmatprep.subr.bf16.mxu0 0
      %1533 = vmatpush1.bf16.msra.mxu0 %v1507
      %1534 = vmatprep.subr.bf16.mxu0 0
      %1535 = vmatpush1.bf16.msra.mxu0 %v1506
      %1536 = vmatprep.subr.bf16.mxu0 0
      %1537 = vmatpush1.bf16.msra.mxu0 %v1505
      %1538 = vmatprep.subr.bf16.mxu0 0
      %1539 = vmatpush1.bf16.msra.mxu0 %v1504
      %1540 = vmatprep.subr.bf16.mxu0 0
      %1541 = vmatpush1.bf16.msra.mxu0 %v1503
      %1542 = vmatprep.subr.bf16.mxu0 0
      %1543 = vmatpush1.bf16.msra.mxu0 %v1502
      %1544 = vmatprep.subr.bf16.mxu0 0
      %1545 = vmatpush1.bf16.msra.mxu0 %v1501
      %1546 = vmatprep.subr.bf16.mxu0 0
      %1547 = vmatpush1.bf16.msra.mxu0 %v1500
      %1548 = vmatprep.subr.bf16.mxu0 0
      %1549 = vmatpush2.bf16.msra.mxu0 %v1515
      %1550 = vmatprep.subr.bf16.mxu0 0
      %1551 = vmatpush2.bf16.msra.mxu0 %v1514
      %1552 = vmatprep.subr.bf16.mxu0 0
      %1553 = vmatpush2.bf16.msra.mxu0 %v1513
      %1554 = vmatprep.subr.bf16.mxu0 0
      %1555 = vmatpush2.bf16.msra.mxu0 %v1512
      %1556 = vmatprep.subr.bf16.mxu0 0
      %1557 = vmatpush2.bf16.msra.mxu0 %v1511
      %1558 = vmatprep.subr.bf16.mxu0 0
      %1559 = vmatpush2.bf16.msra.mxu0 %v1510
      %1560 = vmatprep.subr.bf16.mxu0 0
      %1561 = vmatpush2.bf16.msra.mxu0 %v1509
      %1562 = vmatprep.subr.bf16.mxu0 0
      %1563 = vmatpush2.bf16.msra.mxu0 %v1508
      %1564 = vmatprep.mubr.bf16.mxu0 %v452
      %1565 = vmatmul.mubr.bf16.gmra.mxu0 %v451
      %v1566 = vpop.f32.mrf.mxu0
      %v1567 = vadd.f32 0.0, %v1566
      %v1568 = vpop.f32.mrf.mxu0
      %v1569 = vpop.f32.mrf.mxu0
      %v1570 = vpop.f32.mrf.mxu0
      %1571 = vdwg.mxu0
      %s1572 = scalar_lea.vmem %s2, 64
      %v1573 = vld [vmem:[%s1572] sm:$0xf]
      %v1574 = vld [vmem:[%s1572 + $0x4] sm:$0xf]
      %v1575 = vld [vmem:[%s1572 + $0x8] sm:$0xf]
      %v1576 = vld [vmem:[%s1572 + $0xc] sm:$0xf]
      %v1577 = vpack.c.bf16 %v1567, %v1567
      %v1582 = vunpack.c.l.b16 %v1573
      %v1583 = vunpack.c.l.b16 %v1574
      %v1584 = vunpack.c.l.b16 %v1575
      %v1585 = vunpack.c.l.b16 %v1576
      %v1586 = vpack.c.b16 %v1583, %v1582
      %v1587 = vpack.c.b16 %v1585, %v1584
      %v1589 = vsel %vm781, %v1586, 0
      %v1592 = vsel %vm781, %v1587, 0
      %v1595 = vsel %vm788, %v1577, 0
      %1597 = vmatprep.subr.bf16.mxu0 0
      %1598 = vmatpush1.bf16.msra.mxu0 0
      %1599 = vmatprep.subr.bf16.mxu0 0
      %1600 = vmatpush1.bf16.msra.mxu0 0
      %1601 = vmatprep.subr.bf16.mxu0 0
      %1602 = vmatpush1.bf16.msra.mxu0 0
      %1603 = vmatprep.subr.bf16.mxu0 0
      %1604 = vmatpush1.bf16.msra.mxu0 0
      %1605 = vmatprep.subr.bf16.mxu0 0
      %1606 = vmatpush1.bf16.msra.mxu0 0
      %1607 = vmatprep.subr.bf16.mxu0 0
      %1608 = vmatpush1.bf16.msra.mxu0 0
      %1609 = vmatprep.subr.bf16.mxu0 0
      %1610 = vmatpush1.bf16.msra.mxu0 0
      %1611 = vmatprep.subr.bf16.mxu0 0
      %1612 = vmatpush1.bf16.msra.mxu0 %v1595
      %1613 = vmatprep.subr.bf16.mxu0 0
      %1614 = vmatpush2.bf16.msra.mxu0 0
      %1615 = vmatprep.subr.bf16.mxu0 0
      %1616 = vmatpush2.bf16.msra.mxu0 0
      %1617 = vmatprep.subr.bf16.mxu0 0
      %1618 = vmatpush2.bf16.msra.mxu0 0
      %1619 = vmatprep.subr.bf16.mxu0 0
      %1620 = vmatpush2.bf16.msra.mxu0 0
      %1621 = vmatprep.subr.bf16.mxu0 0
      %1622 = vmatpush2.bf16.msra.mxu0 0
      %1623 = vmatprep.subr.bf16.mxu0 0
      %1624 = vmatpush2.bf16.msra.mxu0 0
      %1625 = vmatprep.subr.bf16.mxu0 0
      %1626 = vmatpush2.bf16.msra.mxu0 0
      %1627 = vmatprep.subr.bf16.mxu0 0
      %1628 = vmatpush2.bf16.msra.mxu0 0
      %1629 = vmatprep.mubr.bf16.mxu0 0
      %1630 = vmatmul.mubr.bf16.gmra.mxu0 %v1589
      %v1631 = vpop.f32.mrf.mxu0
      %v1632 = vadd.f32 0.0, %v1631
      %v1633 = vpop.f32.mrf.mxu0
      %v1634 = vpop.f32.mrf.mxu0
      %v1635 = vadd.f32 0.0, %v1634
      %v1636 = vpop.f32.mrf.mxu0
      %1637 = vmatprep.mubr.bf16.mxu0 0
      %1638 = vmatmul.mubr.bf16.gmra.mxu0 %v1592
      %v1639 = vpop.f32.mrf.mxu0
      %v1640 = vadd.f32 0.0, %v1639
      %v1641 = vpop.f32.mrf.mxu0
      %v1642 = vpop.f32.mrf.mxu0
      %v1643 = vadd.f32 0.0, %v1642
      %v1644 = vpop.f32.mrf.mxu0
      %1645 = vdwg.mxu0
      %v1646 = vadd.f32 %v1399, %v1632
      %v1647 = vadd.f32 %v1400, %v1635
      %v1648 = vadd.f32 %v1401, %v1640
      %v1649 = vadd.f32 %v1402, %v1643
      %s1650 = scalar_lea.vmem %s1, 640
      %v1651 = vld [vmem:[%s1650] sm:$0xf]
      %v1652 = vld [vmem:[%s1650 + $0x4] sm:$0xf]
      %v1653 = vld [vmem:[%s1650 + $0x8] sm:$0xf]
      %v1654 = vld [vmem:[%s1650 + $0xc] sm:$0xf]
      %v1655 = vld [vmem:[%s1650 + $0x10] sm:$0xf]
      %v1656 = vld [vmem:[%s1650 + $0x14] sm:$0xf]
      %v1657 = vld [vmem:[%s1650 + $0x18] sm:$0xf]
      %v1658 = vld [vmem:[%s1650 + $0x1c] sm:$0xf]
      %v1659 = vld [vmem:[%s1650 + $0x20] sm:$0xf]
      %v1660 = vld [vmem:[%s1650 + $0x24] sm:$0xf]
      %v1661 = vld [vmem:[%s1650 + $0x28] sm:$0xf]
      %v1662 = vld [vmem:[%s1650 + $0x2c] sm:$0xf]
      %v1663 = vld [vmem:[%s1650 + $0x30] sm:$0xf]
      %v1664 = vld [vmem:[%s1650 + $0x34] sm:$0xf]
      %v1665 = vld [vmem:[%s1650 + $0x38] sm:$0xf]
      %v1666 = vld [vmem:[%s1650 + $0x3c] sm:$0xf]
      %v1667 = vld [vmem:[%s1650 + $0x40] sm:$0xf]
      %v1668 = vld [vmem:[%s1650 + $0x44] sm:$0xf]
      %v1669 = vld [vmem:[%s1650 + $0x48] sm:$0xf]
      %v1670 = vld [vmem:[%s1650 + $0x4c] sm:$0xf]
      %v1671 = vld [vmem:[%s1650 + $0x50] sm:$0xf]
      %v1672 = vld [vmem:[%s1650 + $0x54] sm:$0xf]
      %v1673 = vld [vmem:[%s1650 + $0x58] sm:$0xf]
      %v1674 = vld [vmem:[%s1650 + $0x5c] sm:$0xf]
      %v1675 = vld [vmem:[%s1650 + $0x60] sm:$0xf]
      %v1676 = vld [vmem:[%s1650 + $0x64] sm:$0xf]
      %v1677 = vld [vmem:[%s1650 + $0x68] sm:$0xf]
      %v1678 = vld [vmem:[%s1650 + $0x6c] sm:$0xf]
      %v1679 = vld [vmem:[%s1650 + $0x70] sm:$0xf]
      %v1680 = vld [vmem:[%s1650 + $0x74] sm:$0xf]
      %v1681 = vld [vmem:[%s1650 + $0x78] sm:$0xf]
      %v1682 = vld [vmem:[%s1650 + $0x7c] sm:$0xf]
      %v1715 = vunpack.c.l.b16 %v1651
      %v1716 = vunpack.c.l.b16 %v1652
      %v1717 = vunpack.c.l.b16 %v1653
      %v1718 = vunpack.c.l.b16 %v1654
      %v1719 = vunpack.c.l.b16 %v1655
      %v1720 = vunpack.c.l.b16 %v1656
      %v1721 = vunpack.c.l.b16 %v1657
      %v1722 = vunpack.c.l.b16 %v1658
      %v1723 = vunpack.c.l.b16 %v1659
      %v1724 = vunpack.c.l.b16 %v1660
      %v1725 = vunpack.c.l.b16 %v1661
      %v1726 = vunpack.c.l.b16 %v1662
      %v1727 = vunpack.c.l.b16 %v1663
      %v1728 = vunpack.c.l.b16 %v1664
      %v1729 = vunpack.c.l.b16 %v1665
      %v1730 = vunpack.c.l.b16 %v1666
      %v1731 = vunpack.c.l.b16 %v1667
      %v1732 = vunpack.c.l.b16 %v1668
      %v1733 = vunpack.c.l.b16 %v1669
      %v1734 = vunpack.c.l.b16 %v1670
      %v1735 = vunpack.c.l.b16 %v1671
      %v1736 = vunpack.c.l.b16 %v1672
      %v1737 = vunpack.c.l.b16 %v1673
      %v1738 = vunpack.c.l.b16 %v1674
      %v1739 = vunpack.c.l.b16 %v1675
      %v1740 = vunpack.c.l.b16 %v1676
      %v1741 = vunpack.c.l.b16 %v1677
      %v1742 = vunpack.c.l.b16 %v1678
      %v1743 = vunpack.c.l.b16 %v1679
      %v1744 = vunpack.c.l.b16 %v1680
      %v1745 = vunpack.c.l.b16 %v1681
      %v1746 = vunpack.c.l.b16 %v1682
      %v1747 = vpack.c.b16 %v1716, %v1715
      %v1748 = vpack.c.b16 %v1718, %v1717
      %v1749 = vpack.c.b16 %v1720, %v1719
      %v1750 = vpack.c.b16 %v1722, %v1721
      %v1751 = vpack.c.b16 %v1724, %v1723
      %v1752 = vpack.c.b16 %v1726, %v1725
      %v1753 = vpack.c.b16 %v1728, %v1727
      %v1754 = vpack.c.b16 %v1730, %v1729
      %v1755 = vpack.c.b16 %v1732, %v1731
      %v1756 = vpack.c.b16 %v1734, %v1733
      %v1757 = vpack.c.b16 %v1736, %v1735
      %v1758 = vpack.c.b16 %v1738, %v1737
      %v1759 = vpack.c.b16 %v1740, %v1739
      %v1760 = vpack.c.b16 %v1742, %v1741
      %v1761 = vpack.c.b16 %v1744, %v1743
      %v1762 = vpack.c.b16 %v1746, %v1745
      %1779 = vmatprep.subr.bf16.mxu0 0
      %1780 = vmatpush1.bf16.msra.mxu0 %v1754
      %1781 = vmatprep.subr.bf16.mxu0 0
      %1782 = vmatpush1.bf16.msra.mxu0 %v1753
      %1783 = vmatprep.subr.bf16.mxu0 0
      %1784 = vmatpush1.bf16.msra.mxu0 %v1752
      %1785 = vmatprep.subr.bf16.mxu0 0
      %1786 = vmatpush1.bf16.msra.mxu0 %v1751
      %1787 = vmatprep.subr.bf16.mxu0 0
      %1788 = vmatpush1.bf16.msra.mxu0 %v1750
      %1789 = vmatprep.subr.bf16.mxu0 0
      %1790 = vmatpush1.bf16.msra.mxu0 %v1749
      %1791 = vmatprep.subr.bf16.mxu0 0
      %1792 = vmatpush1.bf16.msra.mxu0 %v1748
      %1793 = vmatprep.subr.bf16.mxu0 0
      %1794 = vmatpush1.bf16.msra.mxu0 %v1747
      %1795 = vmatprep.subr.bf16.mxu0 0
      %1796 = vmatpush2.bf16.msra.mxu0 %v1762
      %1797 = vmatprep.subr.bf16.mxu0 0
      %1798 = vmatpush2.bf16.msra.mxu0 %v1761
      %1799 = vmatprep.subr.bf16.mxu0 0
      %1800 = vmatpush2.bf16.msra.mxu0 %v1760
      %1801 = vmatprep.subr.bf16.mxu0 0
      %1802 = vmatpush2.bf16.msra.mxu0 %v1759
      %1803 = vmatprep.subr.bf16.mxu0 0
      %1804 = vmatpush2.bf16.msra.mxu0 %v1758
      %1805 = vmatprep.subr.bf16.mxu0 0
      %1806 = vmatpush2.bf16.msra.mxu0 %v1757
      %1807 = vmatprep.subr.bf16.mxu0 0
      %1808 = vmatpush2.bf16.msra.mxu0 %v1756
      %1809 = vmatprep.subr.bf16.mxu0 0
      %1810 = vmatpush2.bf16.msra.mxu0 %v1755
      %1811 = vmatprep.mubr.bf16.mxu0 %v452
      %1812 = vmatmul.mubr.bf16.gmra.mxu0 %v451
      %v1813 = vpop.f32.mrf.mxu0
      %v1814 = vadd.f32 0.0, %v1813
      %v1815 = vpop.f32.mrf.mxu0
      %v1816 = vpop.f32.mrf.mxu0
      %v1817 = vpop.f32.mrf.mxu0
      %1818 = vdwg.mxu0
      %s1819 = scalar_lea.vmem %s2, 80
      %v1820 = vld [vmem:[%s1819] sm:$0xf]
      %v1821 = vld [vmem:[%s1819 + $0x4] sm:$0xf]
      %v1822 = vld [vmem:[%s1819 + $0x8] sm:$0xf]
      %v1823 = vld [vmem:[%s1819 + $0xc] sm:$0xf]
      %v1824 = vpack.c.bf16 %v1814, %v1814
      %v1829 = vunpack.c.l.b16 %v1820
      %v1830 = vunpack.c.l.b16 %v1821
      %v1831 = vunpack.c.l.b16 %v1822
      %v1832 = vunpack.c.l.b16 %v1823
      %v1833 = vpack.c.b16 %v1830, %v1829
      %v1834 = vpack.c.b16 %v1832, %v1831
      %v1836 = vsel %vm781, %v1833, 0
      %v1839 = vsel %vm781, %v1834, 0
      %v1842 = vsel %vm788, %v1824, 0
      %1844 = vmatprep.subr.bf16.mxu0 0
      %1845 = vmatpush1.bf16.msra.mxu0 0
      %1846 = vmatprep.subr.bf16.mxu0 0
      %1847 = vmatpush1.bf16.msra.mxu0 0
      %1848 = vmatprep.subr.bf16.mxu0 0
      %1849 = vmatpush1.bf16.msra.mxu0 0
      %1850 = vmatprep.subr.bf16.mxu0 0
      %1851 = vmatpush1.bf16.msra.mxu0 0
      %1852 = vmatprep.subr.bf16.mxu0 0
      %1853 = vmatpush1.bf16.msra.mxu0 0
      %1854 = vmatprep.subr.bf16.mxu0 0
      %1855 = vmatpush1.bf16.msra.mxu0 0
      %1856 = vmatprep.subr.bf16.mxu0 0
      %1857 = vmatpush1.bf16.msra.mxu0 0
      %1858 = vmatprep.subr.bf16.mxu0 0
      %1859 = vmatpush1.bf16.msra.mxu0 %v1842
      %1860 = vmatprep.subr.bf16.mxu0 0
      %1861 = vmatpush2.bf16.msra.mxu0 0
      %1862 = vmatprep.subr.bf16.mxu0 0
      %1863 = vmatpush2.bf16.msra.mxu0 0
      %1864 = vmatprep.subr.bf16.mxu0 0
      %1865 = vmatpush2.bf16.msra.mxu0 0
      %1866 = vmatprep.subr.bf16.mxu0 0
      %1867 = vmatpush2.bf16.msra.mxu0 0
      %1868 = vmatprep.subr.bf16.mxu0 0
      %1869 = vmatpush2.bf16.msra.mxu0 0
      %1870 = vmatprep.subr.bf16.mxu0 0
      %1871 = vmatpush2.bf16.msra.mxu0 0
      %1872 = vmatprep.subr.bf16.mxu0 0
      %1873 = vmatpush2.bf16.msra.mxu0 0
      %1874 = vmatprep.subr.bf16.mxu0 0
      %1875 = vmatpush2.bf16.msra.mxu0 0
      %1876 = vmatprep.mubr.bf16.mxu0 0
      %1877 = vmatmul.mubr.bf16.gmra.mxu0 %v1836
      %v1878 = vpop.f32.mrf.mxu0
      %v1879 = vadd.f32 0.0, %v1878
      %v1880 = vpop.f32.mrf.mxu0
      %v1881 = vpop.f32.mrf.mxu0
      %v1882 = vadd.f32 0.0, %v1881
      %v1883 = vpop.f32.mrf.mxu0
      %1884 = vmatprep.mubr.bf16.mxu0 0
      %1885 = vmatmul.mubr.bf16.gmra.mxu0 %v1839
      %v1886 = vpop.f32.mrf.mxu0
      %v1887 = vadd.f32 0.0, %v1886
      %v1888 = vpop.f32.mrf.mxu0
      %v1889 = vpop.f32.mrf.mxu0
      %v1890 = vadd.f32 0.0, %v1889
      %v1891 = vpop.f32.mrf.mxu0
      %1892 = vdwg.mxu0
      %v1893 = vadd.f32 %v1646, %v1879
      %v1894 = vadd.f32 %v1647, %v1882
      %v1895 = vadd.f32 %v1648, %v1887
      %v1896 = vadd.f32 %v1649, %v1890
      %s1897 = scalar_lea.vmem %s1, 768
      %v1898 = vld [vmem:[%s1897] sm:$0xf]
      %v1899 = vld [vmem:[%s1897 + $0x4] sm:$0xf]
      %v1900 = vld [vmem:[%s1897 + $0x8] sm:$0xf]
      %v1901 = vld [vmem:[%s1897 + $0xc] sm:$0xf]
      %v1902 = vld [vmem:[%s1897 + $0x10] sm:$0xf]
      %v1903 = vld [vmem:[%s1897 + $0x14] sm:$0xf]
      %v1904 = vld [vmem:[%s1897 + $0x18] sm:$0xf]
      %v1905 = vld [vmem:[%s1897 + $0x1c] sm:$0xf]
      %v1906 = vld [vmem:[%s1897 + $0x20] sm:$0xf]
      %v1907 = vld [vmem:[%s1897 + $0x24] sm:$0xf]
      %v1908 = vld [vmem:[%s1897 + $0x28] sm:$0xf]
      %v1909 = vld [vmem:[%s1897 + $0x2c] sm:$0xf]
      %v1910 = vld [vmem:[%s1897 + $0x30] sm:$0xf]
      %v1911 = vld [vmem:[%s1897 + $0x34] sm:$0xf]
      %v1912 = vld [vmem:[%s1897 + $0x38] sm:$0xf]
      %v1913 = vld [vmem:[%s1897 + $0x3c] sm:$0xf]
      %v1914 = vld [vmem:[%s1897 + $0x40] sm:$0xf]
      %v1915 = vld [vmem:[%s1897 + $0x44] sm:$0xf]
      %v1916 = vld [vmem:[%s1897 + $0x48] sm:$0xf]
      %v1917 = vld [vmem:[%s1897 + $0x4c] sm:$0xf]
      %v1918 = vld [vmem:[%s1897 + $0x50] sm:$0xf]
      %v1919 = vld [vmem:[%s1897 + $0x54] sm:$0xf]
      %v1920 = vld [vmem:[%s1897 + $0x58] sm:$0xf]
      %v1921 = vld [vmem:[%s1897 + $0x5c] sm:$0xf]
      %v1922 = vld [vmem:[%s1897 + $0x60] sm:$0xf]
      %v1923 = vld [vmem:[%s1897 + $0x64] sm:$0xf]
      %v1924 = vld [vmem:[%s1897 + $0x68] sm:$0xf]
      %v1925 = vld [vmem:[%s1897 + $0x6c] sm:$0xf]
      %v1926 = vld [vmem:[%s1897 + $0x70] sm:$0xf]
      %v1927 = vld [vmem:[%s1897 + $0x74] sm:$0xf]
      %v1928 = vld [vmem:[%s1897 + $0x78] sm:$0xf]
      %v1929 = vld [vmem:[%s1897 + $0x7c] sm:$0xf]
      %v1962 = vunpack.c.l.b16 %v1898
      %v1963 = vunpack.c.l.b16 %v1899
      %v1964 = vunpack.c.l.b16 %v1900
      %v1965 = vunpack.c.l.b16 %v1901
      %v1966 = vunpack.c.l.b16 %v1902
      %v1967 = vunpack.c.l.b16 %v1903
      %v1968 = vunpack.c.l.b16 %v1904
      %v1969 = vunpack.c.l.b16 %v1905
      %v1970 = vunpack.c.l.b16 %v1906
      %v1971 = vunpack.c.l.b16 %v1907
      %v1972 = vunpack.c.l.b16 %v1908
      %v1973 = vunpack.c.l.b16 %v1909
      %v1974 = vunpack.c.l.b16 %v1910
      %v1975 = vunpack.c.l.b16 %v1911
      %v1976 = vunpack.c.l.b16 %v1912
      %v1977 = vunpack.c.l.b16 %v1913
      %v1978 = vunpack.c.l.b16 %v1914
      %v1979 = vunpack.c.l.b16 %v1915
      %v1980 = vunpack.c.l.b16 %v1916
      %v1981 = vunpack.c.l.b16 %v1917
      %v1982 = vunpack.c.l.b16 %v1918
      %v1983 = vunpack.c.l.b16 %v1919
      %v1984 = vunpack.c.l.b16 %v1920
      %v1985 = vunpack.c.l.b16 %v1921
      %v1986 = vunpack.c.l.b16 %v1922
      %v1987 = vunpack.c.l.b16 %v1923
      %v1988 = vunpack.c.l.b16 %v1924
      %v1989 = vunpack.c.l.b16 %v1925
      %v1990 = vunpack.c.l.b16 %v1926
      %v1991 = vunpack.c.l.b16 %v1927
      %v1992 = vunpack.c.l.b16 %v1928
      %v1993 = vunpack.c.l.b16 %v1929
      %v1994 = vpack.c.b16 %v1963, %v1962
      %v1995 = vpack.c.b16 %v1965, %v1964
      %v1996 = vpack.c.b16 %v1967, %v1966
      %v1997 = vpack.c.b16 %v1969, %v1968
      %v1998 = vpack.c.b16 %v1971, %v1970
      %v1999 = vpack.c.b16 %v1973, %v1972
      %v2000 = vpack.c.b16 %v1975, %v1974
      %v2001 = vpack.c.b16 %v1977, %v1976
      %v2002 = vpack.c.b16 %v1979, %v1978
      %v2003 = vpack.c.b16 %v1981, %v1980
      %v2004 = vpack.c.b16 %v1983, %v1982
      %v2005 = vpack.c.b16 %v1985, %v1984
      %v2006 = vpack.c.b16 %v1987, %v1986
      %v2007 = vpack.c.b16 %v1989, %v1988
      %v2008 = vpack.c.b16 %v1991, %v1990
      %v2009 = vpack.c.b16 %v1993, %v1992
      %2026 = vmatprep.subr.bf16.mxu0 0
      %2027 = vmatpush1.bf16.msra.mxu0 %v2001
      %2028 = vmatprep.subr.bf16.mxu0 0
      %2029 = vmatpush1.bf16.msra.mxu0 %v2000
      %2030 = vmatprep.subr.bf16.mxu0 0
      %2031 = vmatpush1.bf16.msra.mxu0 %v1999
      %2032 = vmatprep.subr.bf16.mxu0 0
      %2033 = vmatpush1.bf16.msra.mxu0 %v1998
      %2034 = vmatprep.subr.bf16.mxu0 0
      %2035 = vmatpush1.bf16.msra.mxu0 %v1997
      %2036 = vmatprep.subr.bf16.mxu0 0
      %2037 = vmatpush1.bf16.msra.mxu0 %v1996
      %2038 = vmatprep.subr.bf16.mxu0 0
      %2039 = vmatpush1.bf16.msra.mxu0 %v1995
      %2040 = vmatprep.subr.bf16.mxu0 0
      %2041 = vmatpush1.bf16.msra.mxu0 %v1994
      %2042 = vmatprep.subr.bf16.mxu0 0
      %2043 = vmatpush2.bf16.msra.mxu0 %v2009
      %2044 = vmatprep.subr.bf16.mxu0 0
      %2045 = vmatpush2.bf16.msra.mxu0 %v2008
      %2046 = vmatprep.subr.bf16.mxu0 0
      %2047 = vmatpush2.bf16.msra.mxu0 %v2007
      %2048 = vmatprep.subr.bf16.mxu0 0
      %2049 = vmatpush2.bf16.msra.mxu0 %v2006
      %2050 = vmatprep.subr.bf16.mxu0 0
      %2051 = vmatpush2.bf16.msra.mxu0 %v2005
      %2052 = vmatprep.subr.bf16.mxu0 0
      %2053 = vmatpush2.bf16.msra.mxu0 %v2004
      %2054 = vmatprep.subr.bf16.mxu0 0
      %2055 = vmatpush2.bf16.msra.mxu0 %v2003
      %2056 = vmatprep.subr.bf16.mxu0 0
      %2057 = vmatpush2.bf16.msra.mxu0 %v2002
      %2058 = vmatprep.mubr.bf16.mxu0 %v452
      %2059 = vmatmul.mubr.bf16.gmra.mxu0 %v451
      %v2060 = vpop.f32.mrf.mxu0
      %v2061 = vadd.f32 0.0, %v2060
      %v2062 = vpop.f32.mrf.mxu0
      %v2063 = vpop.f32.mrf.mxu0
      %v2064 = vpop.f32.mrf.mxu0
      %2065 = vdwg.mxu0
      %s2066 = scalar_lea.vmem %s2, 96
      %v2067 = vld [vmem:[%s2066] sm:$0xf]
      %v2068 = vld [vmem:[%s2066 + $0x4] sm:$0xf]
      %v2069 = vld [vmem:[%s2066 + $0x8] sm:$0xf]
      %v2070 = vld [vmem:[%s2066 + $0xc] sm:$0xf]
      %v2071 = vpack.c.bf16 %v2061, %v2061
      %v2076 = vunpack.c.l.b16 %v2067
      %v2077 = vunpack.c.l.b16 %v2068
      %v2078 = vunpack.c.l.b16 %v2069
      %v2079 = vunpack.c.l.b16 %v2070
      %v2080 = vpack.c.b16 %v2077, %v2076
      %v2081 = vpack.c.b16 %v2079, %v2078
      %v2083 = vsel %vm781, %v2080, 0
      %v2086 = vsel %vm781, %v2081, 0
      %v2089 = vsel %vm788, %v2071, 0
      %2091 = vmatprep.subr.bf16.mxu0 0
      %2092 = vmatpush1.bf16.msra.mxu0 0
      %2093 = vmatprep.subr.bf16.mxu0 0
      %2094 = vmatpush1.bf16.msra.mxu0 0
      %2095 = vmatprep.subr.bf16.mxu0 0
      %2096 = vmatpush1.bf16.msra.mxu0 0
      %2097 = vmatprep.subr.bf16.mxu0 0
      %2098 = vmatpush1.bf16.msra.mxu0 0
      %2099 = vmatprep.subr.bf16.mxu0 0
      %2100 = vmatpush1.bf16.msra.mxu0 0
      %2101 = vmatprep.subr.bf16.mxu0 0
      %2102 = vmatpush1.bf16.msra.mxu0 0
      %2103 = vmatprep.subr.bf16.mxu0 0
      %2104 = vmatpush1.bf16.msra.mxu0 0
      %2105 = vmatprep.subr.bf16.mxu0 0
      %2106 = vmatpush1.bf16.msra.mxu0 %v2089
      %2107 = vmatprep.subr.bf16.mxu0 0
      %2108 = vmatpush2.bf16.msra.mxu0 0
      %2109 = vmatprep.subr.bf16.mxu0 0
      %2110 = vmatpush2.bf16.msra.mxu0 0
      %2111 = vmatprep.subr.bf16.mxu0 0
      %2112 = vmatpush2.bf16.msra.mxu0 0
      %2113 = vmatprep.subr.bf16.mxu0 0
      %2114 = vmatpush2.bf16.msra.mxu0 0
      %2115 = vmatprep.subr.bf16.mxu0 0
      %2116 = vmatpush2.bf16.msra.mxu0 0
      %2117 = vmatprep.subr.bf16.mxu0 0
      %2118 = vmatpush2.bf16.msra.mxu0 0
      %2119 = vmatprep.subr.bf16.mxu0 0
      %2120 = vmatpush2.bf16.msra.mxu0 0
      %2121 = vmatprep.subr.bf16.mxu0 0
      %2122 = vmatpush2.bf16.msra.mxu0 0
      %2123 = vmatprep.mubr.bf16.mxu0 0
      %2124 = vmatmul.mubr.bf16.gmra.mxu0 %v2083
      %v2125 = vpop.f32.mrf.mxu0
      %v2126 = vadd.f32 0.0, %v2125
      %v2127 = vpop.f32.mrf.mxu0
      %v2128 = vpop.f32.mrf.mxu0
      %v2129 = vadd.f32 0.0, %v2128
      %v2130 = vpop.f32.mrf.mxu0
      %2131 = vmatprep.mubr.bf16.mxu0 0
      %2132 = vmatmul.mubr.bf16.gmra.mxu0 %v2086
      %v2133 = vpop.f32.mrf.mxu0
      %v2134 = vadd.f32 0.0, %v2133
      %v2135 = vpop.f32.mrf.mxu0
      %v2136 = vpop.f32.mrf.mxu0
      %v2137 = vadd.f32 0.0, %v2136
      %v2138 = vpop.f32.mrf.mxu0
      %2139 = vdwg.mxu0
      %v2140 = vadd.f32 %v1893, %v2126
      %v2141 = vadd.f32 %v1894, %v2129
      %v2142 = vadd.f32 %v1895, %v2134
      %v2143 = vadd.f32 %v1896, %v2137
      %s2144 = scalar_lea.vmem %s1, 896
      %v2145 = vld [vmem:[%s2144] sm:$0xf]
      %v2146 = vld [vmem:[%s2144 + $0x4] sm:$0xf]
      %v2147 = vld [vmem:[%s2144 + $0x8] sm:$0xf]
      %v2148 = vld [vmem:[%s2144 + $0xc] sm:$0xf]
      %v2149 = vld [vmem:[%s2144 + $0x10] sm:$0xf]
      %v2150 = vld [vmem:[%s2144 + $0x14] sm:$0xf]
      %v2151 = vld [vmem:[%s2144 + $0x18] sm:$0xf]
      %v2152 = vld [vmem:[%s2144 + $0x1c] sm:$0xf]
      %v2153 = vld [vmem:[%s2144 + $0x20] sm:$0xf]
      %v2154 = vld [vmem:[%s2144 + $0x24] sm:$0xf]
      %v2155 = vld [vmem:[%s2144 + $0x28] sm:$0xf]
      %v2156 = vld [vmem:[%s2144 + $0x2c] sm:$0xf]
      %v2157 = vld [vmem:[%s2144 + $0x30] sm:$0xf]
      %v2158 = vld [vmem:[%s2144 + $0x34] sm:$0xf]
      %v2159 = vld [vmem:[%s2144 + $0x38] sm:$0xf]
      %v2160 = vld [vmem:[%s2144 + $0x3c] sm:$0xf]
      %v2161 = vld [vmem:[%s2144 + $0x40] sm:$0xf]
      %v2162 = vld [vmem:[%s2144 + $0x44] sm:$0xf]
      %v2163 = vld [vmem:[%s2144 + $0x48] sm:$0xf]
      %v2164 = vld [vmem:[%s2144 + $0x4c] sm:$0xf]
      %v2165 = vld [vmem:[%s2144 + $0x50] sm:$0xf]
      %v2166 = vld [vmem:[%s2144 + $0x54] sm:$0xf]
      %v2167 = vld [vmem:[%s2144 + $0x58] sm:$0xf]
      %v2168 = vld [vmem:[%s2144 + $0x5c] sm:$0xf]
      %v2169 = vld [vmem:[%s2144 + $0x60] sm:$0xf]
      %v2170 = vld [vmem:[%s2144 + $0x64] sm:$0xf]
      %v2171 = vld [vmem:[%s2144 + $0x68] sm:$0xf]
      %v2172 = vld [vmem:[%s2144 + $0x6c] sm:$0xf]
      %v2173 = vld [vmem:[%s2144 + $0x70] sm:$0xf]
      %v2174 = vld [vmem:[%s2144 + $0x74] sm:$0xf]
      %v2175 = vld [vmem:[%s2144 + $0x78] sm:$0xf]
      %v2176 = vld [vmem:[%s2144 + $0x7c] sm:$0xf]
      %v2209 = vunpack.c.l.b16 %v2145
      %v2210 = vunpack.c.l.b16 %v2146
      %v2211 = vunpack.c.l.b16 %v2147
      %v2212 = vunpack.c.l.b16 %v2148
      %v2213 = vunpack.c.l.b16 %v2149
      %v2214 = vunpack.c.l.b16 %v2150
      %v2215 = vunpack.c.l.b16 %v2151
      %v2216 = vunpack.c.l.b16 %v2152
      %v2217 = vunpack.c.l.b16 %v2153
      %v2218 = vunpack.c.l.b16 %v2154
      %v2219 = vunpack.c.l.b16 %v2155
      %v2220 = vunpack.c.l.b16 %v2156
      %v2221 = vunpack.c.l.b16 %v2157
      %v2222 = vunpack.c.l.b16 %v2158
      %v2223 = vunpack.c.l.b16 %v2159
      %v2224 = vunpack.c.l.b16 %v2160
      %v2225 = vunpack.c.l.b16 %v2161
      %v2226 = vunpack.c.l.b16 %v2162
      %v2227 = vunpack.c.l.b16 %v2163
      %v2228 = vunpack.c.l.b16 %v2164
      %v2229 = vunpack.c.l.b16 %v2165
      %v2230 = vunpack.c.l.b16 %v2166
      %v2231 = vunpack.c.l.b16 %v2167
      %v2232 = vunpack.c.l.b16 %v2168
      %v2233 = vunpack.c.l.b16 %v2169
      %v2234 = vunpack.c.l.b16 %v2170
      %v2235 = vunpack.c.l.b16 %v2171
      %v2236 = vunpack.c.l.b16 %v2172
      %v2237 = vunpack.c.l.b16 %v2173
      %v2238 = vunpack.c.l.b16 %v2174
      %v2239 = vunpack.c.l.b16 %v2175
      %v2240 = vunpack.c.l.b16 %v2176
      %v2241 = vpack.c.b16 %v2210, %v2209
      %v2242 = vpack.c.b16 %v2212, %v2211
      %v2243 = vpack.c.b16 %v2214, %v2213
      %v2244 = vpack.c.b16 %v2216, %v2215
      %v2245 = vpack.c.b16 %v2218, %v2217
      %v2246 = vpack.c.b16 %v2220, %v2219
      %v2247 = vpack.c.b16 %v2222, %v2221
      %v2248 = vpack.c.b16 %v2224, %v2223
      %v2249 = vpack.c.b16 %v2226, %v2225
      %v2250 = vpack.c.b16 %v2228, %v2227
      %v2251 = vpack.c.b16 %v2230, %v2229
      %v2252 = vpack.c.b16 %v2232, %v2231
      %v2253 = vpack.c.b16 %v2234, %v2233
      %v2254 = vpack.c.b16 %v2236, %v2235
      %v2255 = vpack.c.b16 %v2238, %v2237
      %v2256 = vpack.c.b16 %v2240, %v2239
      %2273 = vmatprep.subr.bf16.mxu0 0
      %2274 = vmatpush1.bf16.msra.mxu0 %v2248
      %2275 = vmatprep.subr.bf16.mxu0 0
      %2276 = vmatpush1.bf16.msra.mxu0 %v2247
      %2277 = vmatprep.subr.bf16.mxu0 0
      %2278 = vmatpush1.bf16.msra.mxu0 %v2246
      %2279 = vmatprep.subr.bf16.mxu0 0
      %2280 = vmatpush1.bf16.msra.mxu0 %v2245
      %2281 = vmatprep.subr.bf16.mxu0 0
      %2282 = vmatpush1.bf16.msra.mxu0 %v2244
      %2283 = vmatprep.subr.bf16.mxu0 0
      %2284 = vmatpush1.bf16.msra.mxu0 %v2243
      %2285 = vmatprep.subr.bf16.mxu0 0
      %2286 = vmatpush1.bf16.msra.mxu0 %v2242
      %2287 = vmatprep.subr.bf16.mxu0 0
      %2288 = vmatpush1.bf16.msra.mxu0 %v2241
      %2289 = vmatprep.subr.bf16.mxu0 0
      %2290 = vmatpush2.bf16.msra.mxu0 %v2256
      %2291 = vmatprep.subr.bf16.mxu0 0
      %2292 = vmatpush2.bf16.msra.mxu0 %v2255
      %2293 = vmatprep.subr.bf16.mxu0 0
      %2294 = vmatpush2.bf16.msra.mxu0 %v2254
      %2295 = vmatprep.subr.bf16.mxu0 0
      %2296 = vmatpush2.bf16.msra.mxu0 %v2253
      %2297 = vmatprep.subr.bf16.mxu0 0
      %2298 = vmatpush2.bf16.msra.mxu0 %v2252
      %2299 = vmatprep.subr.bf16.mxu0 0
      %2300 = vmatpush2.bf16.msra.mxu0 %v2251
      %2301 = vmatprep.subr.bf16.mxu0 0
      %2302 = vmatpush2.bf16.msra.mxu0 %v2250
      %2303 = vmatprep.subr.bf16.mxu0 0
      %2304 = vmatpush2.bf16.msra.mxu0 %v2249
      %2305 = vmatprep.mubr.bf16.mxu0 %v452
      %2306 = vmatmul.mubr.bf16.gmra.mxu0 %v451
      %v2307 = vpop.f32.mrf.mxu0
      %v2308 = vadd.f32 0.0, %v2307
      %v2309 = vpop.f32.mrf.mxu0
      %v2310 = vpop.f32.mrf.mxu0
      %v2311 = vpop.f32.mrf.mxu0
      %2312 = vdwg.mxu0
      %s2313 = scalar_lea.vmem %s2, 112
      %v2314 = vld [vmem:[%s2313] sm:$0xf]
      %v2315 = vld [vmem:[%s2313 + $0x4] sm:$0xf]
      %v2316 = vld [vmem:[%s2313 + $0x8] sm:$0xf]
      %v2317 = vld [vmem:[%s2313 + $0xc] sm:$0xf]
      %v2318 = vpack.c.bf16 %v2308, %v2308
      %v2323 = vunpack.c.l.b16 %v2314
      %v2324 = vunpack.c.l.b16 %v2315
      %v2325 = vunpack.c.l.b16 %v2316
      %v2326 = vunpack.c.l.b16 %v2317
      %v2327 = vpack.c.b16 %v2324, %v2323
      %v2328 = vpack.c.b16 %v2326, %v2325
      %v2330 = vsel %vm781, %v2327, 0
      %v2333 = vsel %vm781, %v2328, 0
      %v2336 = vsel %vm788, %v2318, 0
      %2338 = vmatprep.subr.bf16.mxu0 0
      %2339 = vmatpush1.bf16.msra.mxu0 0
      %2340 = vmatprep.subr.bf16.mxu0 0
      %2341 = vmatpush1.bf16.msra.mxu0 0
      %2342 = vmatprep.subr.bf16.mxu0 0
      %2343 = vmatpush1.bf16.msra.mxu0 0
      %2344 = vmatprep.subr.bf16.mxu0 0
      %2345 = vmatpush1.bf16.msra.mxu0 0
      %2346 = vmatprep.subr.bf16.mxu0 0
      %2347 = vmatpush1.bf16.msra.mxu0 0
      %2348 = vmatprep.subr.bf16.mxu0 0
      %2349 = vmatpush1.bf16.msra.mxu0 0
      %2350 = vmatprep.subr.bf16.mxu0 0
      %2351 = vmatpush1.bf16.msra.mxu0 0
      %2352 = vmatprep.subr.bf16.mxu0 0
      %2353 = vmatpush1.bf16.msra.mxu0 %v2336
      %2354 = vmatprep.subr.bf16.mxu0 0
      %2355 = vmatpush2.bf16.msra.mxu0 0
      %2356 = vmatprep.subr.bf16.mxu0 0
      %2357 = vmatpush2.bf16.msra.mxu0 0
      %2358 = vmatprep.subr.bf16.mxu0 0
      %2359 = vmatpush2.bf16.msra.mxu0 0
      %2360 = vmatprep.subr.bf16.mxu0 0
      %2361 = vmatpush2.bf16.msra.mxu0 0
      %2362 = vmatprep.subr.bf16.mxu0 0
      %2363 = vmatpush2.bf16.msra.mxu0 0
      %2364 = vmatprep.subr.bf16.mxu0 0
      %2365 = vmatpush2.bf16.msra.mxu0 0
      %2366 = vmatprep.subr.bf16.mxu0 0
      %2367 = vmatpush2.bf16.msra.mxu0 0
      %2368 = vmatprep.subr.bf16.mxu0 0
      %2369 = vmatpush2.bf16.msra.mxu0 0
      %2370 = vmatprep.mubr.bf16.mxu0 0
      %2371 = vmatmul.mubr.bf16.gmra.mxu0 %v2330
      %v2372 = vpop.f32.mrf.mxu0
      %v2373 = vadd.f32 0.0, %v2372
      %v2374 = vpop.f32.mrf.mxu0
      %v2375 = vpop.f32.mrf.mxu0
      %v2376 = vadd.f32 0.0, %v2375
      %v2377 = vpop.f32.mrf.mxu0
      %2378 = vmatprep.mubr.bf16.mxu0 0
      %2379 = vmatmul.mubr.bf16.gmra.mxu0 %v2333
      %v2380 = vpop.f32.mrf.mxu0
      %v2381 = vadd.f32 0.0, %v2380
      %v2382 = vpop.f32.mrf.mxu0
      %v2383 = vpop.f32.mrf.mxu0
      %v2384 = vadd.f32 0.0, %v2383
      %v2385 = vpop.f32.mrf.mxu0
      %2386 = vdwg.mxu0
      %v2387 = vadd.f32 %v2140, %v2373
      %v2388 = vadd.f32 %v2141, %v2376
      %v2389 = vadd.f32 %v2142, %v2381
      %v2390 = vadd.f32 %v2143, %v2384
      %s2391 = scalar_lea.vmem %s1, 1024
      %v2392 = vld [vmem:[%s2391] sm:$0xf]
      %v2393 = vld [vmem:[%s2391 + $0x4] sm:$0xf]
      %v2394 = vld [vmem:[%s2391 + $0x8] sm:$0xf]
      %v2395 = vld [vmem:[%s2391 + $0xc] sm:$0xf]
      %v2396 = vld [vmem:[%s2391 + $0x10] sm:$0xf]
      %v2397 = vld [vmem:[%s2391 + $0x14] sm:$0xf]
      %v2398 = vld [vmem:[%s2391 + $0x18] sm:$0xf]
      %v2399 = vld [vmem:[%s2391 + $0x1c] sm:$0xf]
      %v2400 = vld [vmem:[%s2391 + $0x20] sm:$0xf]
      %v2401 = vld [vmem:[%s2391 + $0x24] sm:$0xf]
      %v2402 = vld [vmem:[%s2391 + $0x28] sm:$0xf]
      %v2403 = vld [vmem:[%s2391 + $0x2c] sm:$0xf]
      %v2404 = vld [vmem:[%s2391 + $0x30] sm:$0xf]
      %v2405 = vld [vmem:[%s2391 + $0x34] sm:$0xf]
      %v2406 = vld [vmem:[%s2391 + $0x38] sm:$0xf]
      %v2407 = vld [vmem:[%s2391 + $0x3c] sm:$0xf]
      %v2408 = vld [vmem:[%s2391 + $0x40] sm:$0xf]
      %v2409 = vld [vmem:[%s2391 + $0x44] sm:$0xf]
      %v2410 = vld [vmem:[%s2391 + $0x48] sm:$0xf]
      %v2411 = vld [vmem:[%s2391 + $0x4c] sm:$0xf]
      %v2412 = vld [vmem:[%s2391 + $0x50] sm:$0xf]
      %v2413 = vld [vmem:[%s2391 + $0x54] sm:$0xf]
      %v2414 = vld [vmem:[%s2391 + $0x58] sm:$0xf]
      %v2415 = vld [vmem:[%s2391 + $0x5c] sm:$0xf]
      %v2416 = vld [vmem:[%s2391 + $0x60] sm:$0xf]
      %v2417 = vld [vmem:[%s2391 + $0x64] sm:$0xf]
      %v2418 = vld [vmem:[%s2391 + $0x68] sm:$0xf]
      %v2419 = vld [vmem:[%s2391 + $0x6c] sm:$0xf]
      %v2420 = vld [vmem:[%s2391 + $0x70] sm:$0xf]
      %v2421 = vld [vmem:[%s2391 + $0x74] sm:$0xf]
      %v2422 = vld [vmem:[%s2391 + $0x78] sm:$0xf]
      %v2423 = vld [vmem:[%s2391 + $0x7c] sm:$0xf]
      %v2456 = vunpack.c.l.b16 %v2392
      %v2457 = vunpack.c.l.b16 %v2393
      %v2458 = vunpack.c.l.b16 %v2394
      %v2459 = vunpack.c.l.b16 %v2395
      %v2460 = vunpack.c.l.b16 %v2396
      %v2461 = vunpack.c.l.b16 %v2397
      %v2462 = vunpack.c.l.b16 %v2398
      %v2463 = vunpack.c.l.b16 %v2399
      %v2464 = vunpack.c.l.b16 %v2400
      %v2465 = vunpack.c.l.b16 %v2401
      %v2466 = vunpack.c.l.b16 %v2402
      %v2467 = vunpack.c.l.b16 %v2403
      %v2468 = vunpack.c.l.b16 %v2404
      %v2469 = vunpack.c.l.b16 %v2405
      %v2470 = vunpack.c.l.b16 %v2406
      %v2471 = vunpack.c.l.b16 %v2407
      %v2472 = vunpack.c.l.b16 %v2408
      %v2473 = vunpack.c.l.b16 %v2409
      %v2474 = vunpack.c.l.b16 %v2410
      %v2475 = vunpack.c.l.b16 %v2411
      %v2476 = vunpack.c.l.b16 %v2412
      %v2477 = vunpack.c.l.b16 %v2413
      %v2478 = vunpack.c.l.b16 %v2414
      %v2479 = vunpack.c.l.b16 %v2415
      %v2480 = vunpack.c.l.b16 %v2416
      %v2481 = vunpack.c.l.b16 %v2417
      %v2482 = vunpack.c.l.b16 %v2418
      %v2483 = vunpack.c.l.b16 %v2419
      %v2484 = vunpack.c.l.b16 %v2420
      %v2485 = vunpack.c.l.b16 %v2421
      %v2486 = vunpack.c.l.b16 %v2422
      %v2487 = vunpack.c.l.b16 %v2423
      %v2488 = vpack.c.b16 %v2457, %v2456
      %v2489 = vpack.c.b16 %v2459, %v2458
      %v2490 = vpack.c.b16 %v2461, %v2460
      %v2491 = vpack.c.b16 %v2463, %v2462
      %v2492 = vpack.c.b16 %v2465, %v2464
      %v2493 = vpack.c.b16 %v2467, %v2466
      %v2494 = vpack.c.b16 %v2469, %v2468
      %v2495 = vpack.c.b16 %v2471, %v2470
      %v2496 = vpack.c.b16 %v2473, %v2472
      %v2497 = vpack.c.b16 %v2475, %v2474
      %v2498 = vpack.c.b16 %v2477, %v2476
      %v2499 = vpack.c.b16 %v2479, %v2478
      %v2500 = vpack.c.b16 %v2481, %v2480
      %v2501 = vpack.c.b16 %v2483, %v2482
      %v2502 = vpack.c.b16 %v2485, %v2484
      %v2503 = vpack.c.b16 %v2487, %v2486
      %2520 = vmatprep.subr.bf16.mxu0 0
      %2521 = vmatpush1.bf16.msra.mxu0 %v2495
      %2522 = vmatprep.subr.bf16.mxu0 0
      %2523 = vmatpush1.bf16.msra.mxu0 %v2494
      %2524 = vmatprep.subr.bf16.mxu0 0
      %2525 = vmatpush1.bf16.msra.mxu0 %v2493
      %2526 = vmatprep.subr.bf16.mxu0 0
      %2527 = vmatpush1.bf16.msra.mxu0 %v2492
      %2528 = vmatprep.subr.bf16.mxu0 0
      %2529 = vmatpush1.bf16.msra.mxu0 %v2491
      %2530 = vmatprep.subr.bf16.mxu0 0
      %2531 = vmatpush1.bf16.msra.mxu0 %v2490
      %2532 = vmatprep.subr.bf16.mxu0 0
      %2533 = vmatpush1.bf16.msra.mxu0 %v2489
      %2534 = vmatprep.subr.bf16.mxu0 0
      %2535 = vmatpush1.bf16.msra.mxu0 %v2488
      %2536 = vmatprep.subr.bf16.mxu0 0
      %2537 = vmatpush2.bf16.msra.mxu0 %v2503
      %2538 = vmatprep.subr.bf16.mxu0 0
      %2539 = vmatpush2.bf16.msra.mxu0 %v2502
      %2540 = vmatprep.subr.bf16.mxu0 0
      %2541 = vmatpush2.bf16.msra.mxu0 %v2501
      %2542 = vmatprep.subr.bf16.mxu0 0
      %2543 = vmatpush2.bf16.msra.mxu0 %v2500
      %2544 = vmatprep.subr.bf16.mxu0 0
      %2545 = vmatpush2.bf16.msra.mxu0 %v2499
      %2546 = vmatprep.subr.bf16.mxu0 0
      %2547 = vmatpush2.bf16.msra.mxu0 %v2498
      %2548 = vmatprep.subr.bf16.mxu0 0
      %2549 = vmatpush2.bf16.msra.mxu0 %v2497
      %2550 = vmatprep.subr.bf16.mxu0 0
      %2551 = vmatpush2.bf16.msra.mxu0 %v2496
      %2552 = vmatprep.mubr.bf16.mxu0 %v452
      %2553 = vmatmul.mubr.bf16.gmra.mxu0 %v451
      %v2554 = vpop.f32.mrf.mxu0
      %v2555 = vadd.f32 0.0, %v2554
      %v2556 = vpop.f32.mrf.mxu0
      %v2557 = vpop.f32.mrf.mxu0
      %v2558 = vpop.f32.mrf.mxu0
      %2559 = vdwg.mxu0
      %s2560 = scalar_lea.vmem %s2, 128
      %v2561 = vld [vmem:[%s2560] sm:$0xf]
      %v2562 = vld [vmem:[%s2560 + $0x4] sm:$0xf]
      %v2563 = vld [vmem:[%s2560 + $0x8] sm:$0xf]
      %v2564 = vld [vmem:[%s2560 + $0xc] sm:$0xf]
      %v2565 = vpack.c.bf16 %v2555, %v2555
      %v2570 = vunpack.c.l.b16 %v2561
      %v2571 = vunpack.c.l.b16 %v2562
      %v2572 = vunpack.c.l.b16 %v2563
      %v2573 = vunpack.c.l.b16 %v2564
      %v2574 = vpack.c.b16 %v2571, %v2570
      %v2575 = vpack.c.b16 %v2573, %v2572
      %v2577 = vsel %vm781, %v2574, 0
      %v2580 = vsel %vm781, %v2575, 0
      %v2583 = vsel %vm788, %v2565, 0
      %2585 = vmatprep.subr.bf16.mxu0 0
      %2586 = vmatpush1.bf16.msra.mxu0 0
      %2587 = vmatprep.subr.bf16.mxu0 0
      %2588 = vmatpush1.bf16.msra.mxu0 0
      %2589 = vmatprep.subr.bf16.mxu0 0
      %2590 = vmatpush1.bf16.msra.mxu0 0
      %2591 = vmatprep.subr.bf16.mxu0 0
      %2592 = vmatpush1.bf16.msra.mxu0 0
      %2593 = vmatprep.subr.bf16.mxu0 0
      %2594 = vmatpush1.bf16.msra.mxu0 0
      %2595 = vmatprep.subr.bf16.mxu0 0
      %2596 = vmatpush1.bf16.msra.mxu0 0
      %2597 = vmatprep.subr.bf16.mxu0 0
      %2598 = vmatpush1.bf16.msra.mxu0 0
      %2599 = vmatprep.subr.bf16.mxu0 0
      %2600 = vmatpush1.bf16.msra.mxu0 %v2583
      %2601 = vmatprep.subr.bf16.mxu0 0
      %2602 = vmatpush2.bf16.msra.mxu0 0
      %2603 = vmatprep.subr.bf16.mxu0 0
      %2604 = vmatpush2.bf16.msra.mxu0 0
      %2605 = vmatprep.subr.bf16.mxu0 0
      %2606 = vmatpush2.bf16.msra.mxu0 0
      %2607 = vmatprep.subr.bf16.mxu0 0
      %2608 = vmatpush2.bf16.msra.mxu0 0
      %2609 = vmatprep.subr.bf16.mxu0 0
      %2610 = vmatpush2.bf16.msra.mxu0 0
      %2611 = vmatprep.subr.bf16.mxu0 0
      %2612 = vmatpush2.bf16.msra.mxu0 0
      %2613 = vmatprep.subr.bf16.mxu0 0
      %2614 = vmatpush2.bf16.msra.mxu0 0
      %2615 = vmatprep.subr.bf16.mxu0 0
      %2616 = vmatpush2.bf16.msra.mxu0 0
      %2617 = vmatprep.mubr.bf16.mxu0 0
      %2618 = vmatmul.mubr.bf16.gmra.mxu0 %v2577
      %v2619 = vpop.f32.mrf.mxu0
      %v2620 = vadd.f32 0.0, %v2619
      %v2621 = vpop.f32.mrf.mxu0
      %v2622 = vpop.f32.mrf.mxu0
      %v2623 = vadd.f32 0.0, %v2622
      %v2624 = vpop.f32.mrf.mxu0
      %2625 = vmatprep.mubr.bf16.mxu0 0
      %2626 = vmatmul.mubr.bf16.gmra.mxu0 %v2580
      %v2627 = vpop.f32.mrf.mxu0
      %v2628 = vadd.f32 0.0, %v2627
      %v2629 = vpop.f32.mrf.mxu0
      %v2630 = vpop.f32.mrf.mxu0
      %v2631 = vadd.f32 0.0, %v2630
      %v2632 = vpop.f32.mrf.mxu0
      %2633 = vdwg.mxu0
      %v2634 = vadd.f32 %v2387, %v2620
      %v2635 = vadd.f32 %v2388, %v2623
      %v2636 = vadd.f32 %v2389, %v2628
      %v2637 = vadd.f32 %v2390, %v2631
      %v2638 = vld [vmem:[%s3] sm:$0xff]
      %v2639 = vld [vmem:[%s3 + $0x8] sm:$0xff]
      %v2640 = vld [vmem:[%s3 + $0x10] sm:$0xff]
      %v2641 = vld [vmem:[%s3 + $0x18] sm:$0xff]
      %2643 = vset.pattern.permute.xlu0 0
      %2644 = vperm.xlu0 %2643, %v2638
      %v2645 = vpop.permute.xlu0 %2644
      %2648 = vset.pattern.permute.xlu0 0
      %2649 = vperm.xlu0 %2648, %v2639
      %v2650 = vpop.permute.xlu0 %2649
      %2653 = vset.pattern.permute.xlu0 0
      %2654 = vperm.xlu0 %2653, %v2640
      %v2655 = vpop.permute.xlu0 %2654
      %2658 = vset.pattern.permute.xlu0 0
      %2659 = vperm.xlu0 %2658, %v2641
      %v2660 = vpop.permute.xlu0 %2659
      %v2662 = vadd.f32 %v2634, %v2645
      %v2663 = vadd.f32 %v2635, %v2650
      %v2664 = vadd.f32 %v2636, %v2655
      %v2665 = vadd.f32 %v2637, %v2660
      %v2666 = vmax.f32 %v2662, 0.0
      %v2667 = vmax.f32 %v2663, 0.0
      %v2668 = vmax.f32 %v2664, 0.0
      %v2669 = vmax.f32 %v2665, 0.0
      %v2670 = vpack.c.bf16 %v2667, %v2666
      %v2671 = vpack.c.bf16 %v2669, %v2668
      %v2672 = vld [vmem:[%s4] sm:$0xf]
      %v2673 = vld [vmem:[%s4 + $0x4] sm:$0xf]
      %v2674 = vld [vmem:[%s4 + $0x8] sm:$0xf]
      %v2675 = vld [vmem:[%s4 + $0xc] sm:$0xf]
      %v2676 = vld [vmem:[%s4 + $0x10] sm:$0xf]
      %v2677 = vld [vmem:[%s4 + $0x14] sm:$0xf]
      %v2678 = vld [vmem:[%s4 + $0x18] sm:$0xf]
      %v2679 = vld [vmem:[%s4 + $0x1c] sm:$0xf]
      %v2688 = vunpack.c.l.b16 %v2672
      %v2689 = vunpack.c.l.b16 %v2673
      %v2690 = vunpack.c.l.b16 %v2674
      %v2691 = vunpack.c.l.b16 %v2675
      %v2692 = vunpack.c.l.b16 %v2676
      %v2693 = vunpack.c.l.b16 %v2677
      %v2694 = vunpack.c.l.b16 %v2678
      %v2695 = vunpack.c.l.b16 %v2679
      %v2696 = vpack.c.b16 %v2689, %v2688
      %v2697 = vpack.c.b16 %v2691, %v2690
      %v2698 = vpack.c.b16 %v2693, %v2692
      %v2699 = vpack.c.b16 %v2695, %v2694
      %vm2704 = vcmask 523264
      %v2706 = vsel %vm2704, %v2670, 0
      %v2709 = vsel %vm2704, %v2671, 0
      %2711 = vmatprep.subr.bf16.mxu0 0
      %2712 = vmatpush1.bf16.msra.mxu0 0
      %2713 = vmatprep.subr.bf16.mxu0 0
      %2714 = vmatpush1.bf16.msra.mxu0 0
      %2715 = vmatprep.subr.bf16.mxu0 0
      %2716 = vmatpush1.bf16.msra.mxu0 0
      %2717 = vmatprep.subr.bf16.mxu0 0
      %2718 = vmatpush1.bf16.msra.mxu0 0
      %2719 = vmatprep.subr.bf16.mxu0 0
      %2720 = vmatpush1.bf16.msra.mxu0 %v2699
      %2721 = vmatprep.subr.bf16.mxu0 0
      %2722 = vmatpush1.bf16.msra.mxu0 %v2698
      %2723 = vmatprep.subr.bf16.mxu0 0
      %2724 = vmatpush1.bf16.msra.mxu0 %v2697
      %2725 = vmatprep.subr.bf16.mxu0 0
      %2726 = vmatpush1.bf16.msra.mxu0 %v2696
      %2727 = vmatprep.subr.bf16.mxu0 0
      %2728 = vmatpush2.bf16.msra.mxu0 0
      %2729 = vmatprep.subr.bf16.mxu0 0
      %2730 = vmatpush2.bf16.msra.mxu0 0
      %2731 = vmatprep.subr.bf16.mxu0 0
      %2732 = vmatpush2.bf16.msra.mxu0 0
      %2733 = vmatprep.subr.bf16.mxu0 0
      %2734 = vmatpush2.bf16.msra.mxu0 0
      %2735 = vmatprep.subr.bf16.mxu0 0
      %2736 = vmatpush2.bf16.msra.mxu0 0
      %2737 = vmatprep.subr.bf16.mxu0 0
      %2738 = vmatpush2.bf16.msra.mxu0 0
      %2739 = vmatprep.subr.bf16.mxu0 0
      %2740 = vmatpush2.bf16.msra.mxu0 0
      %2741 = vmatprep.subr.bf16.mxu0 0
      %2742 = vmatpush2.bf16.msra.mxu0 0
      %2743 = vmatprep.mubr.bf16.mxu0 0
      %2744 = vmatmul.mubr.bf16.gmra.mxu0 %v2706
      %v2745 = vpop.f32.mrf.mxu0
      %v2746 = vadd.f32 0.0, %v2745
      %v2747 = vpop.f32.mrf.mxu0
      %v2748 = vpop.f32.mrf.mxu0
      %v2749 = vadd.f32 0.0, %v2748
      %v2750 = vpop.f32.mrf.mxu0
      %2751 = vmatprep.mubr.bf16.mxu0 0
      %2752 = vmatmul.mubr.bf16.gmra.mxu0 %v2709
      %v2753 = vpop.f32.mrf.mxu0
      %v2754 = vadd.f32 0.0, %v2753
      %v2755 = vpop.f32.mrf.mxu0
      %v2756 = vpop.f32.mrf.mxu0
      %v2757 = vadd.f32 0.0, %v2756
      %v2758 = vpop.f32.mrf.mxu0
      %2759 = vdwg.mxu0
      %v2760 = vld [vmem:[%s5] sm:$0xf]
      %v2761 = vld [vmem:[%s5 + $0x4] sm:$0xf]
      %v2762 = vld [vmem:[%s5 + $0x8] sm:$0xf]
      %v2763 = vld [vmem:[%s5 + $0xc] sm:$0xf]
      %v2764 = vpack.c.bf16 %v2749, %v2746
      %v2765 = vpack.c.bf16 %v2757, %v2754
      %s2766 = scalar_lea.vmem %s4, 32
      %v2767 = vld [vmem:[%s2766] sm:$0xf]
      %v2768 = vld [vmem:[%s2766 + $0x4] sm:$0xf]
      %v2769 = vld [vmem:[%s2766 + $0x8] sm:$0xf]
      %v2770 = vld [vmem:[%s2766 + $0xc] sm:$0xf]
      %v2771 = vld [vmem:[%s2766 + $0x10] sm:$0xf]
      %v2772 = vld [vmem:[%s2766 + $0x14] sm:$0xf]
      %v2773 = vld [vmem:[%s2766 + $0x18] sm:$0xf]
      %v2774 = vld [vmem:[%s2766 + $0x1c] sm:$0xf]
      %v2783 = vunpack.c.l.b16 %v2767
      %v2784 = vunpack.c.l.b16 %v2768
      %v2785 = vunpack.c.l.b16 %v2769
      %v2786 = vunpack.c.l.b16 %v2770
      %v2787 = vunpack.c.l.b16 %v2771
      %v2788 = vunpack.c.l.b16 %v2772
      %v2789 = vunpack.c.l.b16 %v2773
      %v2790 = vunpack.c.l.b16 %v2774
      %v2791 = vpack.c.b16 %v2784, %v2783
      %v2792 = vpack.c.b16 %v2786, %v2785
      %v2793 = vpack.c.b16 %v2788, %v2787
      %v2794 = vpack.c.b16 %v2790, %v2789
      %2799 = vmatprep.subr.bf16.mxu0 0
      %2800 = vmatpush1.bf16.msra.mxu0 0
      %2801 = vmatprep.subr.bf16.mxu0 0
      %2802 = vmatpush1.bf16.msra.mxu0 0
      %2803 = vmatprep.subr.bf16.mxu0 0
      %2804 = vmatpush1.bf16.msra.mxu0 0
      %2805 = vmatprep.subr.bf16.mxu0 0
      %2806 = vmatpush1.bf16.msra.mxu0 0
      %2807 = vmatprep.subr.bf16.mxu0 0
      %2808 = vmatpush1.bf16.msra.mxu0 %v2794
      %2809 = vmatprep.subr.bf16.mxu0 0
      %2810 = vmatpush1.bf16.msra.mxu0 %v2793
      %2811 = vmatprep.subr.bf16.mxu0 0
      %2812 = vmatpush1.bf16.msra.mxu0 %v2792
      %2813 = vmatprep.subr.bf16.mxu0 0
      %2814 = vmatpush1.bf16.msra.mxu0 %v2791
      %2815 = vmatprep.subr.bf16.mxu0 0
      %2816 = vmatpush2.bf16.msra.mxu0 0
      %2817 = vmatprep.subr.bf16.mxu0 0
      %2818 = vmatpush2.bf16.msra.mxu0 0
      %2819 = vmatprep.subr.bf16.mxu0 0
      %2820 = vmatpush2.bf16.msra.mxu0 0
      %2821 = vmatprep.subr.bf16.mxu0 0
      %2822 = vmatpush2.bf16.msra.mxu0 0
      %2823 = vmatprep.subr.bf16.mxu0 0
      %2824 = vmatpush2.bf16.msra.mxu0 0
      %2825 = vmatprep.subr.bf16.mxu0 0
      %2826 = vmatpush2.bf16.msra.mxu0 0
      %2827 = vmatprep.subr.bf16.mxu0 0
      %2828 = vmatpush2.bf16.msra.mxu0 0
      %2829 = vmatprep.subr.bf16.mxu0 0
      %2830 = vmatpush2.bf16.msra.mxu0 0
      %2831 = vmatprep.mubr.bf16.mxu0 0
      %2832 = vmatmul.mubr.bf16.gmra.mxu0 %v2706
      %v2833 = vpop.f32.mrf.mxu0
      %v2834 = vadd.f32 0.0, %v2833
      %v2835 = vpop.f32.mrf.mxu0
      %v2836 = vpop.f32.mrf.mxu0
      %v2837 = vadd.f32 0.0, %v2836
      %v2838 = vpop.f32.mrf.mxu0
      %2839 = vmatprep.mubr.bf16.mxu0 0
      %2840 = vmatmul.mubr.bf16.gmra.mxu0 %v2709
      %v2841 = vpop.f32.mrf.mxu0
      %v2842 = vadd.f32 0.0, %v2841
      %v2843 = vpop.f32.mrf.mxu0
      %v2844 = vpop.f32.mrf.mxu0
      %v2845 = vadd.f32 0.0, %v2844
      %v2846 = vpop.f32.mrf.mxu0
      %2847 = vdwg.mxu0
      %s2848 = scalar_lea.vmem %s5, 16
      %v2849 = vld [vmem:[%s2848] sm:$0xf]
      %v2850 = vld [vmem:[%s2848 + $0x4] sm:$0xf]
      %v2851 = vld [vmem:[%s2848 + $0x8] sm:$0xf]
      %v2852 = vld [vmem:[%s2848 + $0xc] sm:$0xf]
      %v2853 = vpack.c.bf16 %v2837, %v2834
      %v2854 = vpack.c.bf16 %v2845, %v2842
      %v2859 = vunpack.c.l.b16 %v2849
      %v2860 = vunpack.c.l.b16 %v2850
      %v2861 = vunpack.c.l.b16 %v2851
      %v2862 = vunpack.c.l.b16 %v2852
      %v2863 = vpack.c.b16 %v2860, %v2859
      %v2864 = vpack.c.b16 %v2862, %v2861
      %vm2865 = vcmask 261120
      %v2867 = vsel %vm2865, %v2863, 0
      %v2870 = vsel %vm2865, %v2864, 0
      %2872 = vmatprep.subr.bf16.mxu0 0
      %2873 = vmatpush1.bf16.msra.mxu0 0
      %2874 = vmatprep.subr.bf16.mxu0 0
      %2875 = vmatpush1.bf16.msra.mxu0 0
      %2876 = vmatprep.subr.bf16.mxu0 0
      %2877 = vmatpush1.bf16.msra.mxu0 0
      %2878 = vmatprep.subr.bf16.mxu0 0
      %2879 = vmatpush1.bf16.msra.mxu0 0
      %2880 = vmatprep.subr.bf16.mxu0 0
      %2881 = vmatpush1.bf16.msra.mxu0 0
      %2882 = vmatprep.subr.bf16.mxu0 0
      %2883 = vmatpush1.bf16.msra.mxu0 0
      %2884 = vmatprep.subr.bf16.mxu0 0
      %2885 = vmatpush1.bf16.msra.mxu0 %v2854
      %2886 = vmatprep.subr.bf16.mxu0 0
      %2887 = vmatpush1.bf16.msra.mxu0 %v2853
      %2888 = vmatprep.subr.bf16.mxu0 0
      %2889 = vmatpush2.bf16.msra.mxu0 0
      %2890 = vmatprep.subr.bf16.mxu0 0
      %2891 = vmatpush2.bf16.msra.mxu0 0
      %2892 = vmatprep.subr.bf16.mxu0 0
      %2893 = vmatpush2.bf16.msra.mxu0 0
      %2894 = vmatprep.subr.bf16.mxu0 0
      %2895 = vmatpush2.bf16.msra.mxu0 0
      %2896 = vmatprep.subr.bf16.mxu0 0
      %2897 = vmatpush2.bf16.msra.mxu0 0
      %2898 = vmatprep.subr.bf16.mxu0 0
      %2899 = vmatpush2.bf16.msra.mxu0 0
      %2900 = vmatprep.subr.bf16.mxu0 0
      %2901 = vmatpush2.bf16.msra.mxu0 0
      %2902 = vmatprep.subr.bf16.mxu0 0
      %2903 = vmatpush2.bf16.msra.mxu0 0
      %2904 = vmatprep.mubr.bf16.mxu0 0
      %2905 = vmatmul.mubr.bf16.gmra.mxu0 %v2867
      %v2906 = vpop.f32.mrf.mxu0
      %v2907 = vadd.f32 0.0, %v2906
      %v2908 = vpop.f32.mrf.mxu0
      %v2909 = vpop.f32.mrf.mxu0
      %v2910 = vadd.f32 0.0, %v2909
      %v2911 = vpop.f32.mrf.mxu0
      %2912 = vmatprep.mubr.bf16.mxu0 0
      %2913 = vmatmul.mubr.bf16.gmra.mxu0 %v2870
      %v2914 = vpop.f32.mrf.mxu0
      %v2915 = vadd.f32 0.0, %v2914
      %v2916 = vpop.f32.mrf.mxu0
      %v2917 = vpop.f32.mrf.mxu0
      %v2918 = vadd.f32 0.0, %v2917
      %v2919 = vpop.f32.mrf.mxu0
      %2920 = vdwg.mxu0
      %v2925 = vunpack.c.l.b16 %v2760
      %v2926 = vunpack.c.l.b16 %v2761
      %v2927 = vunpack.c.l.b16 %v2762
      %v2928 = vunpack.c.l.b16 %v2763
      %v2929 = vpack.c.b16 %v2926, %v2925
      %v2930 = vpack.c.b16 %v2928, %v2927
      %v2932 = vsel %vm2865, %v2929, 0
      %v2935 = vsel %vm2865, %v2930, 0
      %2937 = vmatprep.subr.bf16.mxu0 0
      %2938 = vmatpush1.bf16.msra.mxu0 0
      %2939 = vmatprep.subr.bf16.mxu0 0
      %2940 = vmatpush1.bf16.msra.mxu0 0
      %2941 = vmatprep.subr.bf16.mxu0 0
      %2942 = vmatpush1.bf16.msra.mxu0 0
      %2943 = vmatprep.subr.bf16.mxu0 0
      %2944 = vmatpush1.bf16.msra.mxu0 0
      %2945 = vmatprep.subr.bf16.mxu0 0
      %2946 = vmatpush1.bf16.msra.mxu0 0
      %2947 = vmatprep.subr.bf16.mxu0 0
      %2948 = vmatpush1.bf16.msra.mxu0 0
      %2949 = vmatprep.subr.bf16.mxu0 0
      %2950 = vmatpush1.bf16.msra.mxu0 %v2765
      %2951 = vmatprep.subr.bf16.mxu0 0
      %2952 = vmatpush1.bf16.msra.mxu0 %v2764
      %2953 = vmatprep.subr.bf16.mxu0 0
      %2954 = vmatpush2.bf16.msra.mxu0 0
      %2955 = vmatprep.subr.bf16.mxu0 0
      %2956 = vmatpush2.bf16.msra.mxu0 0
      %2957 = vmatprep.subr.bf16.mxu0 0
      %2958 = vmatpush2.bf16.msra.mxu0 0
      %2959 = vmatprep.subr.bf16.mxu0 0
      %2960 = vmatpush2.bf16.msra.mxu0 0
      %2961 = vmatprep.subr.bf16.mxu0 0
      %2962 = vmatpush2.bf16.msra.mxu0 0
      %2963 = vmatprep.subr.bf16.mxu0 0
      %2964 = vmatpush2.bf16.msra.mxu0 0
      %2965 = vmatprep.subr.bf16.mxu0 0
      %2966 = vmatpush2.bf16.msra.mxu0 0
      %2967 = vmatprep.subr.bf16.mxu0 0
      %2968 = vmatpush2.bf16.msra.mxu0 0
      %2969 = vmatprep.mubr.bf16.mxu0 0
      %2970 = vmatmul.mubr.bf16.gmra.mxu0 %v2932
      %v2971 = vpop.f32.mrf.mxu0
      %v2972 = vadd.f32 %v2907, %v2971
      %v2973 = vpop.f32.mrf.mxu0
      %v2974 = vpop.f32.mrf.mxu0
      %v2975 = vadd.f32 %v2910, %v2974
      %v2976 = vpop.f32.mrf.mxu0
      %2977 = vmatprep.mubr.bf16.mxu0 0
      %2978 = vmatmul.mubr.bf16.gmra.mxu0 %v2935
      %v2979 = vpop.f32.mrf.mxu0
      %v2980 = vadd.f32 %v2915, %v2979
      %v2981 = vpop.f32.mrf.mxu0
      %v2982 = vpop.f32.mrf.mxu0
      %v2983 = vadd.f32 %v2918, %v2982
      %v2984 = vpop.f32.mrf.mxu0
      %2985 = vdwg.mxu0
      %s2986 = scalar_lea.vmem %s4, 64
      %v2987 = vld [vmem:[%s2986] sm:$0xf]
      %v2988 = vld [vmem:[%s2986 + $0x4] sm:$0xf]
      %v2989 = vld [vmem:[%s2986 + $0x8] sm:$0xf]
      %v2990 = vld [vmem:[%s2986 + $0xc] sm:$0xf]
      %v2991 = vld [vmem:[%s2986 + $0x10] sm:$0xf]
      %v2992 = vld [vmem:[%s2986 + $0x14] sm:$0xf]
      %v2993 = vld [vmem:[%s2986 + $0x18] sm:$0xf]
      %v2994 = vld [vmem:[%s2986 + $0x1c] sm:$0xf]
      %v3003 = vunpack.c.l.b16 %v2987
      %v3004 = vunpack.c.l.b16 %v2988
      %v3005 = vunpack.c.l.b16 %v2989
      %v3006 = vunpack.c.l.b16 %v2990
      %v3007 = vunpack.c.l.b16 %v2991
      %v3008 = vunpack.c.l.b16 %v2992
      %v3009 = vunpack.c.l.b16 %v2993
      %v3010 = vunpack.c.l.b16 %v2994
      %v3011 = vpack.c.b16 %v3004, %v3003
      %v3012 = vpack.c.b16 %v3006, %v3005
      %v3013 = vpack.c.b16 %v3008, %v3007
      %v3014 = vpack.c.b16 %v3010, %v3009
      %3019 = vmatprep.subr.bf16.mxu0 0
      %3020 = vmatpush1.bf16.msra.mxu0 0
      %3021 = vmatprep.subr.bf16.mxu0 0
      %3022 = vmatpush1.bf16.msra.mxu0 0
      %3023 = vmatprep.subr.bf16.mxu0 0
      %3024 = vmatpush1.bf16.msra.mxu0 0
      %3025 = vmatprep.subr.bf16.mxu0 0
      %3026 = vmatpush1.bf16.msra.mxu0 0
      %3027 = vmatprep.subr.bf16.mxu0 0
      %3028 = vmatpush1.bf16.msra.mxu0 %v3014
      %3029 = vmatprep.subr.bf16.mxu0 0
      %3030 = vmatpush1.bf16.msra.mxu0 %v3013
      %3031 = vmatprep.subr.bf16.mxu0 0
      %3032 = vmatpush1.bf16.msra.mxu0 %v3012
      %3033 = vmatprep.subr.bf16.mxu0 0
      %3034 = vmatpush1.bf16.msra.mxu0 %v3011
      %3035 = vmatprep.subr.bf16.mxu0 0
      %3036 = vmatpush2.bf16.msra.mxu0 0
      %3037 = vmatprep.subr.bf16.mxu0 0
      %3038 = vmatpush2.bf16.msra.mxu0 0
      %3039 = vmatprep.subr.bf16.mxu0 0
      %3040 = vmatpush2.bf16.msra.mxu0 0
      %3041 = vmatprep.subr.bf16.mxu0 0
      %3042 = vmatpush2.bf16.msra.mxu0 0
      %3043 = vmatprep.subr.bf16.mxu0 0
      %3044 = vmatpush2.bf16.msra.mxu0 0
      %3045 = vmatprep.subr.bf16.mxu0 0
      %3046 = vmatpush2.bf16.msra.mxu0 0
      %3047 = vmatprep.subr.bf16.mxu0 0
      %3048 = vmatpush2.bf16.msra.mxu0 0
      %3049 = vmatprep.subr.bf16.mxu0 0
      %3050 = vmatpush2.bf16.msra.mxu0 0
      %3051 = vmatprep.mubr.bf16.mxu0 0
      %3052 = vmatmul.mubr.bf16.gmra.mxu0 %v2706
      %v3053 = vpop.f32.mrf.mxu0
      %v3054 = vadd.f32 0.0, %v3053
      %v3055 = vpop.f32.mrf.mxu0
      %v3056 = vpop.f32.mrf.mxu0
      %v3057 = vadd.f32 0.0, %v3056
      %v3058 = vpop.f32.mrf.mxu0
      %3059 = vmatprep.mubr.bf16.mxu0 0
      %3060 = vmatmul.mubr.bf16.gmra.mxu0 %v2709
      %v3061 = vpop.f32.mrf.mxu0
      %v3062 = vadd.f32 0.0, %v3061
      %v3063 = vpop.f32.mrf.mxu0
      %v3064 = vpop.f32.mrf.mxu0
      %v3065 = vadd.f32 0.0, %v3064
      %v3066 = vpop.f32.mrf.mxu0
      %3067 = vdwg.mxu0
      %s3068 = scalar_lea.vmem %s5, 32
      %v3069 = vld [vmem:[%s3068] sm:$0xf]
      %v3070 = vld [vmem:[%s3068 + $0x4] sm:$0xf]
      %v3071 = vld [vmem:[%s3068 + $0x8] sm:$0xf]
      %v3072 = vld [vmem:[%s3068 + $0xc] sm:$0xf]
      %v3073 = vpack.c.bf16 %v3057, %v3054
      %v3074 = vpack.c.bf16 %v3065, %v3062
      %v3079 = vunpack.c.l.b16 %v3069
      %v3080 = vunpack.c.l.b16 %v3070
      %v3081 = vunpack.c.l.b16 %v3071
      %v3082 = vunpack.c.l.b16 %v3072
      %v3083 = vpack.c.b16 %v3080, %v3079
      %v3084 = vpack.c.b16 %v3082, %v3081
      %v3086 = vsel %vm2865, %v3083, 0
      %v3089 = vsel %vm2865, %v3084, 0
      %3091 = vmatprep.subr.bf16.mxu0 0
      %3092 = vmatpush1.bf16.msra.mxu0 0
      %3093 = vmatprep.subr.bf16.mxu0 0
      %3094 = vmatpush1.bf16.msra.mxu0 0
      %3095 = vmatprep.subr.bf16.mxu0 0
      %3096 = vmatpush1.bf16.msra.mxu0 0
      %3097 = vmatprep.subr.bf16.mxu0 0
      %3098 = vmatpush1.bf16.msra.mxu0 0
      %3099 = vmatprep.subr.bf16.mxu0 0
      %3100 = vmatpush1.bf16.msra.mxu0 0
      %3101 = vmatprep.subr.bf16.mxu0 0
      %3102 = vmatpush1.bf16.msra.mxu0 0
      %3103 = vmatprep.subr.bf16.mxu0 0
      %3104 = vmatpush1.bf16.msra.mxu0 %v3074
      %3105 = vmatprep.subr.bf16.mxu0 0
      %3106 = vmatpush1.bf16.msra.mxu0 %v3073
      %3107 = vmatprep.subr.bf16.mxu0 0
      %3108 = vmatpush2.bf16.msra.mxu0 0
      %3109 = vmatprep.subr.bf16.mxu0 0
      %3110 = vmatpush2.bf16.msra.mxu0 0
      %3111 = vmatprep.subr.bf16.mxu0 0
      %3112 = vmatpush2.bf16.msra.mxu0 0
      %3113 = vmatprep.subr.bf16.mxu0 0
      %3114 = vmatpush2.bf16.msra.mxu0 0
      %3115 = vmatprep.subr.bf16.mxu0 0
      %3116 = vmatpush2.bf16.msra.mxu0 0
      %3117 = vmatprep.subr.bf16.mxu0 0
      %3118 = vmatpush2.bf16.msra.mxu0 0
      %3119 = vmatprep.subr.bf16.mxu0 0
      %3120 = vmatpush2.bf16.msra.mxu0 0
      %3121 = vmatprep.subr.bf16.mxu0 0
      %3122 = vmatpush2.bf16.msra.mxu0 0
      %3123 = vmatprep.mubr.bf16.mxu0 0
      %3124 = vmatmul.mubr.bf16.gmra.mxu0 %v3086
      %v3125 = vpop.f32.mrf.mxu0
      %v3126 = vadd.f32 0.0, %v3125
      %v3127 = vpop.f32.mrf.mxu0
      %v3128 = vpop.f32.mrf.mxu0
      %v3129 = vadd.f32 0.0, %v3128
      %v3130 = vpop.f32.mrf.mxu0
      %3131 = vmatprep.mubr.bf16.mxu0 0
      %3132 = vmatmul.mubr.bf16.gmra.mxu0 %v3089
      %v3133 = vpop.f32.mrf.mxu0
      %v3134 = vadd.f32 0.0, %v3133
      %v3135 = vpop.f32.mrf.mxu0
      %v3136 = vpop.f32.mrf.mxu0
      %v3137 = vadd.f32 0.0, %v3136
      %v3138 = vpop.f32.mrf.mxu0
      %3139 = vdwg.mxu0
      %v3140 = vadd.f32 %v2972, %v3126
      %v3141 = vadd.f32 %v2975, %v3129
      %v3142 = vadd.f32 %v2980, %v3134
      %v3143 = vadd.f32 %v2983, %v3137
      %s3144 = scalar_lea.vmem %s4, 96
      %v3145 = vld [vmem:[%s3144] sm:$0xf]
      %v3146 = vld [vmem:[%s3144 + $0x4] sm:$0xf]
      %v3147 = vld [vmem:[%s3144 + $0x8] sm:$0xf]
      %v3148 = vld [vmem:[%s3144 + $0xc] sm:$0xf]
      %v3149 = vld [vmem:[%s3144 + $0x10] sm:$0xf]
      %v3150 = vld [vmem:[%s3144 + $0x14] sm:$0xf]
      %v3151 = vld [vmem:[%s3144 + $0x18] sm:$0xf]
      %v3152 = vld [vmem:[%s3144 + $0x1c] sm:$0xf]
      %v3161 = vunpack.c.l.b16 %v3145
      %v3162 = vunpack.c.l.b16 %v3146
      %v3163 = vunpack.c.l.b16 %v3147
      %v3164 = vunpack.c.l.b16 %v3148
      %v3165 = vunpack.c.l.b16 %v3149
      %v3166 = vunpack.c.l.b16 %v3150
      %v3167 = vunpack.c.l.b16 %v3151
      %v3168 = vunpack.c.l.b16 %v3152
      %v3169 = vpack.c.b16 %v3162, %v3161
      %v3170 = vpack.c.b16 %v3164, %v3163
      %v3171 = vpack.c.b16 %v3166, %v3165
      %v3172 = vpack.c.b16 %v3168, %v3167
      %3177 = vmatprep.subr.bf16.mxu0 0
      %3178 = vmatpush1.bf16.msra.mxu0 0
      %3179 = vmatprep.subr.bf16.mxu0 0
      %3180 = vmatpush1.bf16.msra.mxu0 0
      %3181 = vmatprep.subr.bf16.mxu0 0
      %3182 = vmatpush1.bf16.msra.mxu0 0
      %3183 = vmatprep.subr.bf16.mxu0 0
      %3184 = vmatpush1.bf16.msra.mxu0 0
      %3185 = vmatprep.subr.bf16.mxu0 0
      %3186 = vmatpush1.bf16.msra.mxu0 %v3172
      %3187 = vmatprep.subr.bf16.mxu0 0
      %3188 = vmatpush1.bf16.msra.mxu0 %v3171
      %3189 = vmatprep.subr.bf16.mxu0 0
      %3190 = vmatpush1.bf16.msra.mxu0 %v3170
      %3191 = vmatprep.subr.bf16.mxu0 0
      %3192 = vmatpush1.bf16.msra.mxu0 %v3169
      %3193 = vmatprep.subr.bf16.mxu0 0
      %3194 = vmatpush2.bf16.msra.mxu0 0
      %3195 = vmatprep.subr.bf16.mxu0 0
      %3196 = vmatpush2.bf16.msra.mxu0 0
      %3197 = vmatprep.subr.bf16.mxu0 0
      %3198 = vmatpush2.bf16.msra.mxu0 0
      %3199 = vmatprep.subr.bf16.mxu0 0
      %3200 = vmatpush2.bf16.msra.mxu0 0
      %3201 = vmatprep.subr.bf16.mxu0 0
      %3202 = vmatpush2.bf16.msra.mxu0 0
      %3203 = vmatprep.subr.bf16.mxu0 0
      %3204 = vmatpush2.bf16.msra.mxu0 0
      %3205 = vmatprep.subr.bf16.mxu0 0
      %3206 = vmatpush2.bf16.msra.mxu0 0
      %3207 = vmatprep.subr.bf16.mxu0 0
      %3208 = vmatpush2.bf16.msra.mxu0 0
      %3209 = vmatprep.mubr.bf16.mxu0 0
      %3210 = vmatmul.mubr.bf16.gmra.mxu0 %v2706
      %v3211 = vpop.f32.mrf.mxu0
      %v3212 = vadd.f32 0.0, %v3211
      %v3213 = vpop.f32.mrf.mxu0
      %v3214 = vpop.f32.mrf.mxu0
      %v3215 = vadd.f32 0.0, %v3214
      %v3216 = vpop.f32.mrf.mxu0
      %3217 = vmatprep.mubr.bf16.mxu0 0
      %3218 = vmatmul.mubr.bf16.gmra.mxu0 %v2709
      %v3219 = vpop.f32.mrf.mxu0
      %v3220 = vadd.f32 0.0, %v3219
      %v3221 = vpop.f32.mrf.mxu0
      %v3222 = vpop.f32.mrf.mxu0
      %v3223 = vadd.f32 0.0, %v3222
      %v3224 = vpop.f32.mrf.mxu0
      %3225 = vdwg.mxu0
      %s3226 = scalar_lea.vmem %s5, 48
      %v3227 = vld [vmem:[%s3226] sm:$0xf]
      %v3228 = vld [vmem:[%s3226 + $0x4] sm:$0xf]
      %v3229 = vld [vmem:[%s3226 + $0x8] sm:$0xf]
      %v3230 = vld [vmem:[%s3226 + $0xc] sm:$0xf]
      %v3231 = vpack.c.bf16 %v3215, %v3212
      %v3232 = vpack.c.bf16 %v3223, %v3220
      %v3237 = vunpack.c.l.b16 %v3227
      %v3238 = vunpack.c.l.b16 %v3228
      %v3239 = vunpack.c.l.b16 %v3229
      %v3240 = vunpack.c.l.b16 %v3230
      %v3241 = vpack.c.b16 %v3238, %v3237
      %v3242 = vpack.c.b16 %v3240, %v3239
      %v3244 = vsel %vm2865, %v3241, 0
      %v3247 = vsel %vm2865, %v3242, 0
      %3249 = vmatprep.subr.bf16.mxu0 0
      %3250 = vmatpush1.bf16.msra.mxu0 0
      %3251 = vmatprep.subr.bf16.mxu0 0
      %3252 = vmatpush1.bf16.msra.mxu0 0
      %3253 = vmatprep.subr.bf16.mxu0 0
      %3254 = vmatpush1.bf16.msra.mxu0 0
      %3255 = vmatprep.subr.bf16.mxu0 0
      %3256 = vmatpush1.bf16.msra.mxu0 0
      %3257 = vmatprep.subr.bf16.mxu0 0
      %3258 = vmatpush1.bf16.msra.mxu0 0
      %3259 = vmatprep.subr.bf16.mxu0 0
      %3260 = vmatpush1.bf16.msra.mxu0 0
      %3261 = vmatprep.subr.bf16.mxu0 0
      %3262 = vmatpush1.bf16.msra.mxu0 %v3232
      %3263 = vmatprep.subr.bf16.mxu0 0
      %3264 = vmatpush1.bf16.msra.mxu0 %v3231
      %3265 = vmatprep.subr.bf16.mxu0 0
      %3266 = vmatpush2.bf16.msra.mxu0 0
      %3267 = vmatprep.subr.bf16.mxu0 0
      %3268 = vmatpush2.bf16.msra.mxu0 0
      %3269 = vmatprep.subr.bf16.mxu0 0
      %3270 = vmatpush2.bf16.msra.mxu0 0
      %3271 = vmatprep.subr.bf16.mxu0 0
      %3272 = vmatpush2.bf16.msra.mxu0 0
      %3273 = vmatprep.subr.bf16.mxu0 0
      %3274 = vmatpush2.bf16.msra.mxu0 0
      %3275 = vmatprep.subr.bf16.mxu0 0
      %3276 = vmatpush2.bf16.msra.mxu0 0
      %3277 = vmatprep.subr.bf16.mxu0 0
      %3278 = vmatpush2.bf16.msra.mxu0 0
      %3279 = vmatprep.subr.bf16.mxu0 0
      %3280 = vmatpush2.bf16.msra.mxu0 0
      %3281 = vmatprep.mubr.bf16.mxu0 0
      %3282 = vmatmul.mubr.bf16.gmra.mxu0 %v3244
      %v3283 = vpop.f32.mrf.mxu0
      %v3284 = vadd.f32 0.0, %v3283
      %v3285 = vpop.f32.mrf.mxu0
      %v3286 = vpop.f32.mrf.mxu0
      %v3287 = vadd.f32 0.0, %v3286
      %v3288 = vpop.f32.mrf.mxu0
      %3289 = vmatprep.mubr.bf16.mxu0 0
      %3290 = vmatmul.mubr.bf16.gmra.mxu0 %v3247
      %v3291 = vpop.f32.mrf.mxu0
      %v3292 = vadd.f32 0.0, %v3291
      %v3293 = vpop.f32.mrf.mxu0
      %v3294 = vpop.f32.mrf.mxu0
      %v3295 = vadd.f32 0.0, %v3294
      %v3296 = vpop.f32.mrf.mxu0
      %3297 = vdwg.mxu0
      %v3298 = vadd.f32 %v3140, %v3284
      %v3299 = vadd.f32 %v3141, %v3287
      %v3300 = vadd.f32 %v3142, %v3292
      %v3301 = vadd.f32 %v3143, %v3295
      %s3302 = scalar_lea.vmem %s4, 128
      %v3303 = vld [vmem:[%s3302] sm:$0xf]
      %v3304 = vld [vmem:[%s3302 + $0x4] sm:$0xf]
      %v3305 = vld [vmem:[%s3302 + $0x8] sm:$0xf]
      %v3306 = vld [vmem:[%s3302 + $0xc] sm:$0xf]
      %v3307 = vld [vmem:[%s3302 + $0x10] sm:$0xf]
      %v3308 = vld [vmem:[%s3302 + $0x14] sm:$0xf]
      %v3309 = vld [vmem:[%s3302 + $0x18] sm:$0xf]
      %v3310 = vld [vmem:[%s3302 + $0x1c] sm:$0xf]
      %v3319 = vunpack.c.l.b16 %v3303
      %v3320 = vunpack.c.l.b16 %v3304
      %v3321 = vunpack.c.l.b16 %v3305
      %v3322 = vunpack.c.l.b16 %v3306
      %v3323 = vunpack.c.l.b16 %v3307
      %v3324 = vunpack.c.l.b16 %v3308
      %v3325 = vunpack.c.l.b16 %v3309
      %v3326 = vunpack.c.l.b16 %v3310
      %v3327 = vpack.c.b16 %v3320, %v3319
      %v3328 = vpack.c.b16 %v3322, %v3321
      %v3329 = vpack.c.b16 %v3324, %v3323
      %v3330 = vpack.c.b16 %v3326, %v3325
      %3335 = vmatprep.subr.bf16.mxu0 0
      %3336 = vmatpush1.bf16.msra.mxu0 0
      %3337 = vmatprep.subr.bf16.mxu0 0
      %3338 = vmatpush1.bf16.msra.mxu0 0
      %3339 = vmatprep.subr.bf16.mxu0 0
      %3340 = vmatpush1.bf16.msra.mxu0 0
      %3341 = vmatprep.subr.bf16.mxu0 0
      %3342 = vmatpush1.bf16.msra.mxu0 0
      %3343 = vmatprep.subr.bf16.mxu0 0
      %3344 = vmatpush1.bf16.msra.mxu0 %v3330
      %3345 = vmatprep.subr.bf16.mxu0 0
      %3346 = vmatpush1.bf16.msra.mxu0 %v3329
      %3347 = vmatprep.subr.bf16.mxu0 0
      %3348 = vmatpush1.bf16.msra.mxu0 %v3328
      %3349 = vmatprep.subr.bf16.mxu0 0
      %3350 = vmatpush1.bf16.msra.mxu0 %v3327
      %3351 = vmatprep.subr.bf16.mxu0 0
      %3352 = vmatpush2.bf16.msra.mxu0 0
      %3353 = vmatprep.subr.bf16.mxu0 0
      %3354 = vmatpush2.bf16.msra.mxu0 0
      %3355 = vmatprep.subr.bf16.mxu0 0
      %3356 = vmatpush2.bf16.msra.mxu0 0
      %3357 = vmatprep.subr.bf16.mxu0 0
      %3358 = vmatpush2.bf16.msra.mxu0 0
      %3359 = vmatprep.subr.bf16.mxu0 0
      %3360 = vmatpush2.bf16.msra.mxu0 0
      %3361 = vmatprep.subr.bf16.mxu0 0
      %3362 = vmatpush2.bf16.msra.mxu0 0
      %3363 = vmatprep.subr.bf16.mxu0 0
      %3364 = vmatpush2.bf16.msra.mxu0 0
      %3365 = vmatprep.subr.bf16.mxu0 0
      %3366 = vmatpush2.bf16.msra.mxu0 0
      %3367 = vmatprep.mubr.bf16.mxu0 0
      %3368 = vmatmul.mubr.bf16.gmra.mxu0 %v2706
      %v3369 = vpop.f32.mrf.mxu0
      %v3370 = vadd.f32 0.0, %v3369
      %v3371 = vpop.f32.mrf.mxu0
      %v3372 = vpop.f32.mrf.mxu0
      %v3373 = vadd.f32 0.0, %v3372
      %v3374 = vpop.f32.mrf.mxu0
      %3375 = vmatprep.mubr.bf16.mxu0 0
      %3376 = vmatmul.mubr.bf16.gmra.mxu0 %v2709
      %v3377 = vpop.f32.mrf.mxu0
      %v3378 = vadd.f32 0.0, %v3377
      %v3379 = vpop.f32.mrf.mxu0
      %v3380 = vpop.f32.mrf.mxu0
      %v3381 = vadd.f32 0.0, %v3380
      %v3382 = vpop.f32.mrf.mxu0
      %3383 = vdwg.mxu0
      %s3384 = scalar_lea.vmem %s5, 64
      %v3385 = vld [vmem:[%s3384] sm:$0xf]
      %v3386 = vld [vmem:[%s3384 + $0x4] sm:$0xf]
      %v3387 = vld [vmem:[%s3384 + $0x8] sm:$0xf]
      %v3388 = vld [vmem:[%s3384 + $0xc] sm:$0xf]
      %v3389 = vpack.c.bf16 %v3373, %v3370
      %v3390 = vpack.c.bf16 %v3381, %v3378
      %v3395 = vunpack.c.l.b16 %v3385
      %v3396 = vunpack.c.l.b16 %v3386
      %v3397 = vunpack.c.l.b16 %v3387
      %v3398 = vunpack.c.l.b16 %v3388
      %v3399 = vpack.c.b16 %v3396, %v3395
      %v3400 = vpack.c.b16 %v3398, %v3397
      %v3402 = vsel %vm2865, %v3399, 0
      %v3405 = vsel %vm2865, %v3400, 0
      %3407 = vmatprep.subr.bf16.mxu0 0
      %3408 = vmatpush1.bf16.msra.mxu0 0
      %3409 = vmatprep.subr.bf16.mxu0 0
      %3410 = vmatpush1.bf16.msra.mxu0 0
      %3411 = vmatprep.subr.bf16.mxu0 0
      %3412 = vmatpush1.bf16.msra.mxu0 0
      %3413 = vmatprep.subr.bf16.mxu0 0
      %3414 = vmatpush1.bf16.msra.mxu0 0
      %3415 = vmatprep.subr.bf16.mxu0 0
      %3416 = vmatpush1.bf16.msra.mxu0 0
      %3417 = vmatprep.subr.bf16.mxu0 0
      %3418 = vmatpush1.bf16.msra.mxu0 0
      %3419 = vmatprep.subr.bf16.mxu0 0
      %3420 = vmatpush1.bf16.msra.mxu0 %v3390
      %3421 = vmatprep.subr.bf16.mxu0 0
      %3422 = vmatpush1.bf16.msra.mxu0 %v3389
      %3423 = vmatprep.subr.bf16.mxu0 0
      %3424 = vmatpush2.bf16.msra.mxu0 0
      %3425 = vmatprep.subr.bf16.mxu0 0
      %3426 = vmatpush2.bf16.msra.mxu0 0
      %3427 = vmatprep.subr.bf16.mxu0 0
      %3428 = vmatpush2.bf16.msra.mxu0 0
      %3429 = vmatprep.subr.bf16.mxu0 0
      %3430 = vmatpush2.bf16.msra.mxu0 0
      %3431 = vmatprep.subr.bf16.mxu0 0
      %3432 = vmatpush2.bf16.msra.mxu0 0
      %3433 = vmatprep.subr.bf16.mxu0 0
      %3434 = vmatpush2.bf16.msra.mxu0 0
      %3435 = vmatprep.subr.bf16.mxu0 0
      %3436 = vmatpush2.bf16.msra.mxu0 0
      %3437 = vmatprep.subr.bf16.mxu0 0
      %3438 = vmatpush2.bf16.msra.mxu0 0
      %3439 = vmatprep.mubr.bf16.mxu0 0
      %3440 = vmatmul.mubr.bf16.gmra.mxu0 %v3402
      %v3441 = vpop.f32.mrf.mxu0
      %v3442 = vadd.f32 0.0, %v3441
      %v3443 = vpop.f32.mrf.mxu0
      %v3444 = vpop.f32.mrf.mxu0
      %v3445 = vadd.f32 0.0, %v3444
      %v3446 = vpop.f32.mrf.mxu0
      %3447 = vmatprep.mubr.bf16.mxu0 0
      %3448 = vmatmul.mubr.bf16.gmra.mxu0 %v3405
      %v3449 = vpop.f32.mrf.mxu0
      %v3450 = vadd.f32 0.0, %v3449
      %v3451 = vpop.f32.mrf.mxu0
      %v3452 = vpop.f32.mrf.mxu0
      %v3453 = vadd.f32 0.0, %v3452
      %v3454 = vpop.f32.mrf.mxu0
      %3455 = vdwg.mxu0
      %v3456 = vadd.f32 %v3298, %v3442
      %v3457 = vadd.f32 %v3299, %v3445
      %v3458 = vadd.f32 %v3300, %v3450
      %v3459 = vadd.f32 %v3301, %v3453
      %s3460 = scalar_lea.vmem %s4, 160
      %v3461 = vld [vmem:[%s3460] sm:$0xf]
      %v3462 = vld [vmem:[%s3460 + $0x4] sm:$0xf]
      %v3463 = vld [vmem:[%s3460 + $0x8] sm:$0xf]
      %v3464 = vld [vmem:[%s3460 + $0xc] sm:$0xf]
      %v3465 = vld [vmem:[%s3460 + $0x10] sm:$0xf]
      %v3466 = vld [vmem:[%s3460 + $0x14] sm:$0xf]
      %v3467 = vld [vmem:[%s3460 + $0x18] sm:$0xf]
      %v3468 = vld [vmem:[%s3460 + $0x1c] sm:$0xf]
      %v3477 = vunpack.c.l.b16 %v3461
      %v3478 = vunpack.c.l.b16 %v3462
      %v3479 = vunpack.c.l.b16 %v3463
      %v3480 = vunpack.c.l.b16 %v3464
      %v3481 = vunpack.c.l.b16 %v3465
      %v3482 = vunpack.c.l.b16 %v3466
      %v3483 = vunpack.c.l.b16 %v3467
      %v3484 = vunpack.c.l.b16 %v3468
      %v3485 = vpack.c.b16 %v3478, %v3477
      %v3486 = vpack.c.b16 %v3480, %v3479
      %v3487 = vpack.c.b16 %v3482, %v3481
      %v3488 = vpack.c.b16 %v3484, %v3483
      %3493 = vmatprep.subr.bf16.mxu0 0
      %3494 = vmatpush1.bf16.msra.mxu0 0
      %3495 = vmatprep.subr.bf16.mxu0 0
      %3496 = vmatpush1.bf16.msra.mxu0 0
      %3497 = vmatprep.subr.bf16.mxu0 0
      %3498 = vmatpush1.bf16.msra.mxu0 0
      %3499 = vmatprep.subr.bf16.mxu0 0
      %3500 = vmatpush1.bf16.msra.mxu0 0
      %3501 = vmatprep.subr.bf16.mxu0 0
      %3502 = vmatpush1.bf16.msra.mxu0 %v3488
      %3503 = vmatprep.subr.bf16.mxu0 0
      %3504 = vmatpush1.bf16.msra.mxu0 %v3487
      %3505 = vmatprep.subr.bf16.mxu0 0
      %3506 = vmatpush1.bf16.msra.mxu0 %v3486
      %3507 = vmatprep.subr.bf16.mxu0 0
      %3508 = vmatpush1.bf16.msra.mxu0 %v3485
      %3509 = vmatprep.subr.bf16.mxu0 0
      %3510 = vmatpush2.bf16.msra.mxu0 0
      %3511 = vmatprep.subr.bf16.mxu0 0
      %3512 = vmatpush2.bf16.msra.mxu0 0
      %3513 = vmatprep.subr.bf16.mxu0 0
      %3514 = vmatpush2.bf16.msra.mxu0 0
      %3515 = vmatprep.subr.bf16.mxu0 0
      %3516 = vmatpush2.bf16.msra.mxu0 0
      %3517 = vmatprep.subr.bf16.mxu0 0
      %3518 = vmatpush2.bf16.msra.mxu0 0
      %3519 = vmatprep.subr.bf16.mxu0 0
      %3520 = vmatpush2.bf16.msra.mxu0 0
      %3521 = vmatprep.subr.bf16.mxu0 0
      %3522 = vmatpush2.bf16.msra.mxu0 0
      %3523 = vmatprep.subr.bf16.mxu0 0
      %3524 = vmatpush2.bf16.msra.mxu0 0
      %3525 = vmatprep.mubr.bf16.mxu0 0
      %3526 = vmatmul.mubr.bf16.gmra.mxu0 %v2706
      %v3527 = vpop.f32.mrf.mxu0
      %v3528 = vadd.f32 0.0, %v3527
      %v3529 = vpop.f32.mrf.mxu0
      %v3530 = vpop.f32.mrf.mxu0
      %v3531 = vadd.f32 0.0, %v3530
      %v3532 = vpop.f32.mrf.mxu0
      %3533 = vmatprep.mubr.bf16.mxu0 0
      %3534 = vmatmul.mubr.bf16.gmra.mxu0 %v2709
      %v3535 = vpop.f32.mrf.mxu0
      %v3536 = vadd.f32 0.0, %v3535
      %v3537 = vpop.f32.mrf.mxu0
      %v3538 = vpop.f32.mrf.mxu0
      %v3539 = vadd.f32 0.0, %v3538
      %v3540 = vpop.f32.mrf.mxu0
      %3541 = vdwg.mxu0
      %s3542 = scalar_lea.vmem %s5, 80
      %v3543 = vld [vmem:[%s3542] sm:$0xf]
      %v3544 = vld [vmem:[%s3542 + $0x4] sm:$0xf]
      %v3545 = vld [vmem:[%s3542 + $0x8] sm:$0xf]
      %v3546 = vld [vmem:[%s3542 + $0xc] sm:$0xf]
      %v3547 = vpack.c.bf16 %v3531, %v3528
      %v3548 = vpack.c.bf16 %v3539, %v3536
      %v3553 = vunpack.c.l.b16 %v3543
      %v3554 = vunpack.c.l.b16 %v3544
      %v3555 = vunpack.c.l.b16 %v3545
      %v3556 = vunpack.c.l.b16 %v3546
      %v3557 = vpack.c.b16 %v3554, %v3553
      %v3558 = vpack.c.b16 %v3556, %v3555
      %v3560 = vsel %vm2865, %v3557, 0
      %v3563 = vsel %vm2865, %v3558, 0
      %3565 = vmatprep.subr.bf16.mxu0 0
      %3566 = vmatpush1.bf16.msra.mxu0 0
      %3567 = vmatprep.subr.bf16.mxu0 0
      %3568 = vmatpush1.bf16.msra.mxu0 0
      %3569 = vmatprep.subr.bf16.mxu0 0
      %3570 = vmatpush1.bf16.msra.mxu0 0
      %3571 = vmatprep.subr.bf16.mxu0 0
      %3572 = vmatpush1.bf16.msra.mxu0 0
      %3573 = vmatprep.subr.bf16.mxu0 0
      %3574 = vmatpush1.bf16.msra.mxu0 0
      %3575 = vmatprep.subr.bf16.mxu0 0
      %3576 = vmatpush1.bf16.msra.mxu0 0
      %3577 = vmatprep.subr.bf16.mxu0 0
      %3578 = vmatpush1.bf16.msra.mxu0 %v3548
      %3579 = vmatprep.subr.bf16.mxu0 0
      %3580 = vmatpush1.bf16.msra.mxu0 %v3547
      %3581 = vmatprep.subr.bf16.mxu0 0
      %3582 = vmatpush2.bf16.msra.mxu0 0
      %3583 = vmatprep.subr.bf16.mxu0 0
      %3584 = vmatpush2.bf16.msra.mxu0 0
      %3585 = vmatprep.subr.bf16.mxu0 0
      %3586 = vmatpush2.bf16.msra.mxu0 0
      %3587 = vmatprep.subr.bf16.mxu0 0
      %3588 = vmatpush2.bf16.msra.mxu0 0
      %3589 = vmatprep.subr.bf16.mxu0 0
      %3590 = vmatpush2.bf16.msra.mxu0 0
      %3591 = vmatprep.subr.bf16.mxu0 0
      %3592 = vmatpush2.bf16.msra.mxu0 0
      %3593 = vmatprep.subr.bf16.mxu0 0
      %3594 = vmatpush2.bf16.msra.mxu0 0
      %3595 = vmatprep.subr.bf16.mxu0 0
      %3596 = vmatpush2.bf16.msra.mxu0 0
      %3597 = vmatprep.mubr.bf16.mxu0 0
      %3598 = vmatmul.mubr.bf16.gmra.mxu0 %v3560
      %v3599 = vpop.f32.mrf.mxu0
      %v3600 = vadd.f32 0.0, %v3599
      %v3601 = vpop.f32.mrf.mxu0
      %v3602 = vpop.f32.mrf.mxu0
      %v3603 = vadd.f32 0.0, %v3602
      %v3604 = vpop.f32.mrf.mxu0
      %3605 = vmatprep.mubr.bf16.mxu0 0
      %3606 = vmatmul.mubr.bf16.gmra.mxu0 %v3563
      %v3607 = vpop.f32.mrf.mxu0
      %v3608 = vadd.f32 0.0, %v3607
      %v3609 = vpop.f32.mrf.mxu0
      %v3610 = vpop.f32.mrf.mxu0
      %v3611 = vadd.f32 0.0, %v3610
      %v3612 = vpop.f32.mrf.mxu0
      %3613 = vdwg.mxu0
      %v3614 = vadd.f32 %v3456, %v3600
      %v3615 = vadd.f32 %v3457, %v3603
      %v3616 = vadd.f32 %v3458, %v3608
      %v3617 = vadd.f32 %v3459, %v3611
      %s3618 = scalar_lea.vmem %s4, 192
      %v3619 = vld [vmem:[%s3618] sm:$0xf]
      %v3620 = vld [vmem:[%s3618 + $0x4] sm:$0xf]
      %v3621 = vld [vmem:[%s3618 + $0x8] sm:$0xf]
      %v3622 = vld [vmem:[%s3618 + $0xc] sm:$0xf]
      %v3623 = vld [vmem:[%s3618 + $0x10] sm:$0xf]
      %v3624 = vld [vmem:[%s3618 + $0x14] sm:$0xf]
      %v3625 = vld [vmem:[%s3618 + $0x18] sm:$0xf]
      %v3626 = vld [vmem:[%s3618 + $0x1c] sm:$0xf]
      %v3635 = vunpack.c.l.b16 %v3619
      %v3636 = vunpack.c.l.b16 %v3620
      %v3637 = vunpack.c.l.b16 %v3621
      %v3638 = vunpack.c.l.b16 %v3622
      %v3639 = vunpack.c.l.b16 %v3623
      %v3640 = vunpack.c.l.b16 %v3624
      %v3641 = vunpack.c.l.b16 %v3625
      %v3642 = vunpack.c.l.b16 %v3626
      %v3643 = vpack.c.b16 %v3636, %v3635
      %v3644 = vpack.c.b16 %v3638, %v3637
      %v3645 = vpack.c.b16 %v3640, %v3639
      %v3646 = vpack.c.b16 %v3642, %v3641
      %3651 = vmatprep.subr.bf16.mxu0 0
      %3652 = vmatpush1.bf16.msra.mxu0 0
      %3653 = vmatprep.subr.bf16.mxu0 0
      %3654 = vmatpush1.bf16.msra.mxu0 0
      %3655 = vmatprep.subr.bf16.mxu0 0
      %3656 = vmatpush1.bf16.msra.mxu0 0
      %3657 = vmatprep.subr.bf16.mxu0 0
      %3658 = vmatpush1.bf16.msra.mxu0 0
      %3659 = vmatprep.subr.bf16.mxu0 0
      %3660 = vmatpush1.bf16.msra.mxu0 %v3646
      %3661 = vmatprep.subr.bf16.mxu0 0
      %3662 = vmatpush1.bf16.msra.mxu0 %v3645
      %3663 = vmatprep.subr.bf16.mxu0 0
      %3664 = vmatpush1.bf16.msra.mxu0 %v3644
      %3665 = vmatprep.subr.bf16.mxu0 0
      %3666 = vmatpush1.bf16.msra.mxu0 %v3643
      %3667 = vmatprep.subr.bf16.mxu0 0
      %3668 = vmatpush2.bf16.msra.mxu0 0
      %3669 = vmatprep.subr.bf16.mxu0 0
      %3670 = vmatpush2.bf16.msra.mxu0 0
      %3671 = vmatprep.subr.bf16.mxu0 0
      %3672 = vmatpush2.bf16.msra.mxu0 0
      %3673 = vmatprep.subr.bf16.mxu0 0
      %3674 = vmatpush2.bf16.msra.mxu0 0
      %3675 = vmatprep.subr.bf16.mxu0 0
      %3676 = vmatpush2.bf16.msra.mxu0 0
      %3677 = vmatprep.subr.bf16.mxu0 0
      %3678 = vmatpush2.bf16.msra.mxu0 0
      %3679 = vmatprep.subr.bf16.mxu0 0
      %3680 = vmatpush2.bf16.msra.mxu0 0
      %3681 = vmatprep.subr.bf16.mxu0 0
      %3682 = vmatpush2.bf16.msra.mxu0 0
      %3683 = vmatprep.mubr.bf16.mxu0 0
      %3684 = vmatmul.mubr.bf16.gmra.mxu0 %v2706
      %v3685 = vpop.f32.mrf.mxu0
      %v3686 = vadd.f32 0.0, %v3685
      %v3687 = vpop.f32.mrf.mxu0
      %v3688 = vpop.f32.mrf.mxu0
      %v3689 = vadd.f32 0.0, %v3688
      %v3690 = vpop.f32.mrf.mxu0
      %3691 = vmatprep.mubr.bf16.mxu0 0
      %3692 = vmatmul.mubr.bf16.gmra.mxu0 %v2709
      %v3693 = vpop.f32.mrf.mxu0
      %v3694 = vadd.f32 0.0, %v3693
      %v3695 = vpop.f32.mrf.mxu0
      %v3696 = vpop.f32.mrf.mxu0
      %v3697 = vadd.f32 0.0, %v3696
      %v3698 = vpop.f32.mrf.mxu0
      %3699 = vdwg.mxu0
      %s3700 = scalar_lea.vmem %s5, 96
      %v3701 = vld [vmem:[%s3700] sm:$0xf]
      %v3702 = vld [vmem:[%s3700 + $0x4] sm:$0xf]
      %v3703 = vld [vmem:[%s3700 + $0x8] sm:$0xf]
      %v3704 = vld [vmem:[%s3700 + $0xc] sm:$0xf]
      %v3705 = vpack.c.bf16 %v3689, %v3686
      %v3706 = vpack.c.bf16 %v3697, %v3694
      %v3711 = vunpack.c.l.b16 %v3701
      %v3712 = vunpack.c.l.b16 %v3702
      %v3713 = vunpack.c.l.b16 %v3703
      %v3714 = vunpack.c.l.b16 %v3704
      %v3715 = vpack.c.b16 %v3712, %v3711
      %v3716 = vpack.c.b16 %v3714, %v3713
      %v3718 = vsel %vm2865, %v3715, 0
      %v3721 = vsel %vm2865, %v3716, 0
      %3723 = vmatprep.subr.bf16.mxu0 0
      %3724 = vmatpush1.bf16.msra.mxu0 0
      %3725 = vmatprep.subr.bf16.mxu0 0
      %3726 = vmatpush1.bf16.msra.mxu0 0
      %3727 = vmatprep.subr.bf16.mxu0 0
      %3728 = vmatpush1.bf16.msra.mxu0 0
      %3729 = vmatprep.subr.bf16.mxu0 0
      %3730 = vmatpush1.bf16.msra.mxu0 0
      %3731 = vmatprep.subr.bf16.mxu0 0
      %3732 = vmatpush1.bf16.msra.mxu0 0
      %3733 = vmatprep.subr.bf16.mxu0 0
      %3734 = vmatpush1.bf16.msra.mxu0 0
      %3735 = vmatprep.subr.bf16.mxu0 0
      %3736 = vmatpush1.bf16.msra.mxu0 %v3706
      %3737 = vmatprep.subr.bf16.mxu0 0
      %3738 = vmatpush1.bf16.msra.mxu0 %v3705
      %3739 = vmatprep.subr.bf16.mxu0 0
      %3740 = vmatpush2.bf16.msra.mxu0 0
      %3741 = vmatprep.subr.bf16.mxu0 0
      %3742 = vmatpush2.bf16.msra.mxu0 0
      %3743 = vmatprep.subr.bf16.mxu0 0
      %3744 = vmatpush2.bf16.msra.mxu0 0
      %3745 = vmatprep.subr.bf16.mxu0 0
      %3746 = vmatpush2.bf16.msra.mxu0 0
      %3747 = vmatprep.subr.bf16.mxu0 0
      %3748 = vmatpush2.bf16.msra.mxu0 0
      %3749 = vmatprep.subr.bf16.mxu0 0
      %3750 = vmatpush2.bf16.msra.mxu0 0
      %3751 = vmatprep.subr.bf16.mxu0 0
      %3752 = vmatpush2.bf16.msra.mxu0 0
      %3753 = vmatprep.subr.bf16.mxu0 0
      %3754 = vmatpush2.bf16.msra.mxu0 0
      %3755 = vmatprep.mubr.bf16.mxu0 0
      %3756 = vmatmul.mubr.bf16.gmra.mxu0 %v3718
      %v3757 = vpop.f32.mrf.mxu0
      %v3758 = vadd.f32 0.0, %v3757
      %v3759 = vpop.f32.mrf.mxu0
      %v3760 = vpop.f32.mrf.mxu0
      %v3761 = vadd.f32 0.0, %v3760
      %v3762 = vpop.f32.mrf.mxu0
      %3763 = vmatprep.mubr.bf16.mxu0 0
      %3764 = vmatmul.mubr.bf16.gmra.mxu0 %v3721
      %v3765 = vpop.f32.mrf.mxu0
      %v3766 = vadd.f32 0.0, %v3765
      %v3767 = vpop.f32.mrf.mxu0
      %v3768 = vpop.f32.mrf.mxu0
      %v3769 = vadd.f32 0.0, %v3768
      %v3770 = vpop.f32.mrf.mxu0
      %3771 = vdwg.mxu0
      %v3772 = vadd.f32 %v3614, %v3758
      %v3773 = vadd.f32 %v3615, %v3761
      %v3774 = vadd.f32 %v3616, %v3766
      %v3775 = vadd.f32 %v3617, %v3769
      %s3776 = scalar_lea.vmem %s4, 224
      %v3777 = vld [vmem:[%s3776] sm:$0xf]
      %v3778 = vld [vmem:[%s3776 + $0x4] sm:$0xf]
      %v3779 = vld [vmem:[%s3776 + $0x8] sm:$0xf]
      %v3780 = vld [vmem:[%s3776 + $0xc] sm:$0xf]
      %v3781 = vld [vmem:[%s3776 + $0x10] sm:$0xf]
      %v3782 = vld [vmem:[%s3776 + $0x14] sm:$0xf]
      %v3783 = vld [vmem:[%s3776 + $0x18] sm:$0xf]
      %v3784 = vld [vmem:[%s3776 + $0x1c] sm:$0xf]
      %v3793 = vunpack.c.l.b16 %v3777
      %v3794 = vunpack.c.l.b16 %v3778
      %v3795 = vunpack.c.l.b16 %v3779
      %v3796 = vunpack.c.l.b16 %v3780
      %v3797 = vunpack.c.l.b16 %v3781
      %v3798 = vunpack.c.l.b16 %v3782
      %v3799 = vunpack.c.l.b16 %v3783
      %v3800 = vunpack.c.l.b16 %v3784
      %v3801 = vpack.c.b16 %v3794, %v3793
      %v3802 = vpack.c.b16 %v3796, %v3795
      %v3803 = vpack.c.b16 %v3798, %v3797
      %v3804 = vpack.c.b16 %v3800, %v3799
      %3809 = vmatprep.subr.bf16.mxu0 0
      %3810 = vmatpush1.bf16.msra.mxu0 0
      %3811 = vmatprep.subr.bf16.mxu0 0
      %3812 = vmatpush1.bf16.msra.mxu0 0
      %3813 = vmatprep.subr.bf16.mxu0 0
      %3814 = vmatpush1.bf16.msra.mxu0 0
      %3815 = vmatprep.subr.bf16.mxu0 0
      %3816 = vmatpush1.bf16.msra.mxu0 0
      %3817 = vmatprep.subr.bf16.mxu0 0
      %3818 = vmatpush1.bf16.msra.mxu0 %v3804
      %3819 = vmatprep.subr.bf16.mxu0 0
      %3820 = vmatpush1.bf16.msra.mxu0 %v3803
      %3821 = vmatprep.subr.bf16.mxu0 0
      %3822 = vmatpush1.bf16.msra.mxu0 %v3802
      %3823 = vmatprep.subr.bf16.mxu0 0
      %3824 = vmatpush1.bf16.msra.mxu0 %v3801
      %3825 = vmatprep.subr.bf16.mxu0 0
      %3826 = vmatpush2.bf16.msra.mxu0 0
      %3827 = vmatprep.subr.bf16.mxu0 0
      %3828 = vmatpush2.bf16.msra.mxu0 0
      %3829 = vmatprep.subr.bf16.mxu0 0
      %3830 = vmatpush2.bf16.msra.mxu0 0
      %3831 = vmatprep.subr.bf16.mxu0 0
      %3832 = vmatpush2.bf16.msra.mxu0 0
      %3833 = vmatprep.subr.bf16.mxu0 0
      %3834 = vmatpush2.bf16.msra.mxu0 0
      %3835 = vmatprep.subr.bf16.mxu0 0
      %3836 = vmatpush2.bf16.msra.mxu0 0
      %3837 = vmatprep.subr.bf16.mxu0 0
      %3838 = vmatpush2.bf16.msra.mxu0 0
      %3839 = vmatprep.subr.bf16.mxu0 0
      %3840 = vmatpush2.bf16.msra.mxu0 0
      %3841 = vmatprep.mubr.bf16.mxu0 0
      %3842 = vmatmul.mubr.bf16.gmra.mxu0 %v2706
      %v3843 = vpop.f32.mrf.mxu0
      %v3844 = vadd.f32 0.0, %v3843
      %v3845 = vpop.f32.mrf.mxu0
      %v3846 = vpop.f32.mrf.mxu0
      %v3847 = vadd.f32 0.0, %v3846
      %v3848 = vpop.f32.mrf.mxu0
      %3849 = vmatprep.mubr.bf16.mxu0 0
      %3850 = vmatmul.mubr.bf16.gmra.mxu0 %v2709
      %v3851 = vpop.f32.mrf.mxu0
      %v3852 = vadd.f32 0.0, %v3851
      %v3853 = vpop.f32.mrf.mxu0
      %v3854 = vpop.f32.mrf.mxu0
      %v3855 = vadd.f32 0.0, %v3854
      %v3856 = vpop.f32.mrf.mxu0
      %3857 = vdwg.mxu0
      %s3858 = scalar_lea.vmem %s5, 112
      %v3859 = vld [vmem:[%s3858] sm:$0xf]
      %v3860 = vld [vmem:[%s3858 + $0x4] sm:$0xf]
      %v3861 = vld [vmem:[%s3858 + $0x8] sm:$0xf]
      %v3862 = vld [vmem:[%s3858 + $0xc] sm:$0xf]
      %v3863 = vpack.c.bf16 %v3847, %v3844
      %v3864 = vpack.c.bf16 %v3855, %v3852
      %v3869 = vunpack.c.l.b16 %v3859
      %v3870 = vunpack.c.l.b16 %v3860
      %v3871 = vunpack.c.l.b16 %v3861
      %v3872 = vunpack.c.l.b16 %v3862
      %v3873 = vpack.c.b16 %v3870, %v3869
      %v3874 = vpack.c.b16 %v3872, %v3871
      %v3876 = vsel %vm2865, %v3873, 0
      %v3879 = vsel %vm2865, %v3874, 0
      %3881 = vmatprep.subr.bf16.mxu0 0
      %3882 = vmatpush1.bf16.msra.mxu0 0
      %3883 = vmatprep.subr.bf16.mxu0 0
      %3884 = vmatpush1.bf16.msra.mxu0 0
      %3885 = vmatprep.subr.bf16.mxu0 0
      %3886 = vmatpush1.bf16.msra.mxu0 0
      %3887 = vmatprep.subr.bf16.mxu0 0
      %3888 = vmatpush1.bf16.msra.mxu0 0
      %3889 = vmatprep.subr.bf16.mxu0 0
      %3890 = vmatpush1.bf16.msra.mxu0 0
      %3891 = vmatprep.subr.bf16.mxu0 0
      %3892 = vmatpush1.bf16.msra.mxu0 0
      %3893 = vmatprep.subr.bf16.mxu0 0
      %3894 = vmatpush1.bf16.msra.mxu0 %v3864
      %3895 = vmatprep.subr.bf16.mxu0 0
      %3896 = vmatpush1.bf16.msra.mxu0 %v3863
      %3897 = vmatprep.subr.bf16.mxu0 0
      %3898 = vmatpush2.bf16.msra.mxu0 0
      %3899 = vmatprep.subr.bf16.mxu0 0
      %3900 = vmatpush2.bf16.msra.mxu0 0
      %3901 = vmatprep.subr.bf16.mxu0 0
      %3902 = vmatpush2.bf16.msra.mxu0 0
      %3903 = vmatprep.subr.bf16.mxu0 0
      %3904 = vmatpush2.bf16.msra.mxu0 0
      %3905 = vmatprep.subr.bf16.mxu0 0
      %3906 = vmatpush2.bf16.msra.mxu0 0
      %3907 = vmatprep.subr.bf16.mxu0 0
      %3908 = vmatpush2.bf16.msra.mxu0 0
      %3909 = vmatprep.subr.bf16.mxu0 0
      %3910 = vmatpush2.bf16.msra.mxu0 0
      %3911 = vmatprep.subr.bf16.mxu0 0
      %3912 = vmatpush2.bf16.msra.mxu0 0
      %3913 = vmatprep.mubr.bf16.mxu0 0
      %3914 = vmatmul.mubr.bf16.gmra.mxu0 %v3876
      %v3915 = vpop.f32.mrf.mxu0
      %v3916 = vadd.f32 0.0, %v3915
      %v3917 = vpop.f32.mrf.mxu0
      %v3918 = vpop.f32.mrf.mxu0
      %v3919 = vadd.f32 0.0, %v3918
      %v3920 = vpop.f32.mrf.mxu0
      %3921 = vmatprep.mubr.bf16.mxu0 0
      %3922 = vmatmul.mubr.bf16.gmra.mxu0 %v3879
      %v3923 = vpop.f32.mrf.mxu0
      %v3924 = vadd.f32 0.0, %v3923
      %v3925 = vpop.f32.mrf.mxu0
      %v3926 = vpop.f32.mrf.mxu0
      %v3927 = vadd.f32 0.0, %v3926
      %v3928 = vpop.f32.mrf.mxu0
      %3929 = vdwg.mxu0
      %v3930 = vadd.f32 %v3772, %v3916
      %v3931 = vadd.f32 %v3773, %v3919
      %v3932 = vadd.f32 %v3774, %v3924
      %v3933 = vadd.f32 %v3775, %v3927
      %s3934 = scalar_lea.vmem %s4, 256
      %v3935 = vld [vmem:[%s3934] sm:$0xf]
      %v3936 = vld [vmem:[%s3934 + $0x4] sm:$0xf]
      %v3937 = vld [vmem:[%s3934 + $0x8] sm:$0xf]
      %v3938 = vld [vmem:[%s3934 + $0xc] sm:$0xf]
      %v3939 = vld [vmem:[%s3934 + $0x10] sm:$0xf]
      %v3940 = vld [vmem:[%s3934 + $0x14] sm:$0xf]
      %v3941 = vld [vmem:[%s3934 + $0x18] sm:$0xf]
      %v3942 = vld [vmem:[%s3934 + $0x1c] sm:$0xf]
      %v3951 = vunpack.c.l.b16 %v3935
      %v3952 = vunpack.c.l.b16 %v3936
      %v3953 = vunpack.c.l.b16 %v3937
      %v3954 = vunpack.c.l.b16 %v3938
      %v3955 = vunpack.c.l.b16 %v3939
      %v3956 = vunpack.c.l.b16 %v3940
      %v3957 = vunpack.c.l.b16 %v3941
      %v3958 = vunpack.c.l.b16 %v3942
      %v3959 = vpack.c.b16 %v3952, %v3951
      %v3960 = vpack.c.b16 %v3954, %v3953
      %v3961 = vpack.c.b16 %v3956, %v3955
      %v3962 = vpack.c.b16 %v3958, %v3957
      %3967 = vmatprep.subr.bf16.mxu0 0
      %3968 = vmatpush1.bf16.msra.mxu0 0
      %3969 = vmatprep.subr.bf16.mxu0 0
      %3970 = vmatpush1.bf16.msra.mxu0 0
      %3971 = vmatprep.subr.bf16.mxu0 0
      %3972 = vmatpush1.bf16.msra.mxu0 0
      %3973 = vmatprep.subr.bf16.mxu0 0
      %3974 = vmatpush1.bf16.msra.mxu0 0
      %3975 = vmatprep.subr.bf16.mxu0 0
      %3976 = vmatpush1.bf16.msra.mxu0 %v3962
      %3977 = vmatprep.subr.bf16.mxu0 0
      %3978 = vmatpush1.bf16.msra.mxu0 %v3961
      %3979 = vmatprep.subr.bf16.mxu0 0
      %3980 = vmatpush1.bf16.msra.mxu0 %v3960
      %3981 = vmatprep.subr.bf16.mxu0 0
      %3982 = vmatpush1.bf16.msra.mxu0 %v3959
      %3983 = vmatprep.subr.bf16.mxu0 0
      %3984 = vmatpush2.bf16.msra.mxu0 0
      %3985 = vmatprep.subr.bf16.mxu0 0
      %3986 = vmatpush2.bf16.msra.mxu0 0
      %3987 = vmatprep.subr.bf16.mxu0 0
      %3988 = vmatpush2.bf16.msra.mxu0 0
      %3989 = vmatprep.subr.bf16.mxu0 0
      %3990 = vmatpush2.bf16.msra.mxu0 0
      %3991 = vmatprep.subr.bf16.mxu0 0
      %3992 = vmatpush2.bf16.msra.mxu0 0
      %3993 = vmatprep.subr.bf16.mxu0 0
      %3994 = vmatpush2.bf16.msra.mxu0 0
      %3995 = vmatprep.subr.bf16.mxu0 0
      %3996 = vmatpush2.bf16.msra.mxu0 0
      %3997 = vmatprep.subr.bf16.mxu0 0
      %3998 = vmatpush2.bf16.msra.mxu0 0
      %3999 = vmatprep.mubr.bf16.mxu0 0
      %4000 = vmatmul.mubr.bf16.gmra.mxu0 %v2706
      %v4001 = vpop.f32.mrf.mxu0
      %v4002 = vadd.f32 0.0, %v4001
      %v4003 = vpop.f32.mrf.mxu0
      %v4004 = vpop.f32.mrf.mxu0
      %v4005 = vadd.f32 0.0, %v4004
      %v4006 = vpop.f32.mrf.mxu0
      %4007 = vmatprep.mubr.bf16.mxu0 0
      %4008 = vmatmul.mubr.bf16.gmra.mxu0 %v2709
      %v4009 = vpop.f32.mrf.mxu0
      %v4010 = vadd.f32 0.0, %v4009
      %v4011 = vpop.f32.mrf.mxu0
      %v4012 = vpop.f32.mrf.mxu0
      %v4013 = vadd.f32 0.0, %v4012
      %v4014 = vpop.f32.mrf.mxu0
      %4015 = vdwg.mxu0
      %s4016 = scalar_lea.vmem %s5, 128
      %v4017 = vld [vmem:[%s4016] sm:$0xf]
      %v4018 = vld [vmem:[%s4016 + $0x4] sm:$0xf]
      %v4019 = vld [vmem:[%s4016 + $0x8] sm:$0xf]
      %v4020 = vld [vmem:[%s4016 + $0xc] sm:$0xf]
      %v4021 = vpack.c.bf16 %v4005, %v4002
      %v4022 = vpack.c.bf16 %v4013, %v4010
      %v4027 = vunpack.c.l.b16 %v4017
      %v4028 = vunpack.c.l.b16 %v4018
      %v4029 = vunpack.c.l.b16 %v4019
      %v4030 = vunpack.c.l.b16 %v4020
      %v4031 = vpack.c.b16 %v4028, %v4027
      %v4032 = vpack.c.b16 %v4030, %v4029
      %v4034 = vsel %vm2865, %v4031, 0
      %v4037 = vsel %vm2865, %v4032, 0
      %4039 = vmatprep.subr.bf16.mxu0 0
      %4040 = vmatpush1.bf16.msra.mxu0 0
      %4041 = vmatprep.subr.bf16.mxu0 0
      %4042 = vmatpush1.bf16.msra.mxu0 0
      %4043 = vmatprep.subr.bf16.mxu0 0
      %4044 = vmatpush1.bf16.msra.mxu0 0
      %4045 = vmatprep.subr.bf16.mxu0 0
      %4046 = vmatpush1.bf16.msra.mxu0 0
      %4047 = vmatprep.subr.bf16.mxu0 0
      %4048 = vmatpush1.bf16.msra.mxu0 0
      %4049 = vmatprep.subr.bf16.mxu0 0
      %4050 = vmatpush1.bf16.msra.mxu0 0
      %4051 = vmatprep.subr.bf16.mxu0 0
      %4052 = vmatpush1.bf16.msra.mxu0 %v4022
      %4053 = vmatprep.subr.bf16.mxu0 0
      %4054 = vmatpush1.bf16.msra.mxu0 %v4021
      %4055 = vmatprep.subr.bf16.mxu0 0
      %4056 = vmatpush2.bf16.msra.mxu0 0
      %4057 = vmatprep.subr.bf16.mxu0 0
      %4058 = vmatpush2.bf16.msra.mxu0 0
      %4059 = vmatprep.subr.bf16.mxu0 0
      %4060 = vmatpush2.bf16.msra.mxu0 0
      %4061 = vmatprep.subr.bf16.mxu0 0
      %4062 = vmatpush2.bf16.msra.mxu0 0
      %4063 = vmatprep.subr.bf16.mxu0 0
      %4064 = vmatpush2.bf16.msra.mxu0 0
      %4065 = vmatprep.subr.bf16.mxu0 0
      %4066 = vmatpush2.bf16.msra.mxu0 0
      %4067 = vmatprep.subr.bf16.mxu0 0
      %4068 = vmatpush2.bf16.msra.mxu0 0
      %4069 = vmatprep.subr.bf16.mxu0 0
      %4070 = vmatpush2.bf16.msra.mxu0 0
      %4071 = vmatprep.mubr.bf16.mxu0 0
      %4072 = vmatmul.mubr.bf16.gmra.mxu0 %v4034
      %v4073 = vpop.f32.mrf.mxu0
      %v4074 = vadd.f32 0.0, %v4073
      %v4075 = vpop.f32.mrf.mxu0
      %v4076 = vpop.f32.mrf.mxu0
      %v4077 = vadd.f32 0.0, %v4076
      %v4078 = vpop.f32.mrf.mxu0
      %4079 = vmatprep.mubr.bf16.mxu0 0
      %4080 = vmatmul.mubr.bf16.gmra.mxu0 %v4037
      %v4081 = vpop.f32.mrf.mxu0
      %v4082 = vadd.f32 0.0, %v4081
      %v4083 = vpop.f32.mrf.mxu0
      %v4084 = vpop.f32.mrf.mxu0
      %v4085 = vadd.f32 0.0, %v4084
      %v4086 = vpop.f32.mrf.mxu0
      %4087 = vdwg.mxu0
      %v4088 = vadd.f32 %v3930, %v4074
      %v4089 = vadd.f32 %v3931, %v4077
      %v4090 = vadd.f32 %v3932, %v4082
      %v4091 = vadd.f32 %v3933, %v4085
      %v4092 = vld [vmem:[%s6] sm:$0xff]
      %v4093 = vld [vmem:[%s6 + $0x8] sm:$0xff]
      %v4094 = vld [vmem:[%s6 + $0x10] sm:$0xff]
      %v4095 = vld [vmem:[%s6 + $0x18] sm:$0xff]
      %4097 = vset.pattern.permute.xlu0 0
      %4098 = vperm.xlu0 %4097, %v4092
      %v4099 = vpop.permute.xlu0 %4098
      %4102 = vset.pattern.permute.xlu0 0
      %4103 = vperm.xlu0 %4102, %v4093
      %v4104 = vpop.permute.xlu0 %4103
      %4107 = vset.pattern.permute.xlu0 0
      %4108 = vperm.xlu0 %4107, %v4094
      %v4109 = vpop.permute.xlu0 %4108
      %4112 = vset.pattern.permute.xlu0 0
      %4113 = vperm.xlu0 %4112, %v4095
      %v4114 = vpop.permute.xlu0 %4113
      %v4116 = vadd.f32 %v4088, %v4099
      %v4117 = vadd.f32 %v4089, %v4104
      %v4118 = vadd.f32 %v4090, %v4109
      %v4119 = vadd.f32 %v4091, %v4114
      %v4120 = vmax.f32 %v4116, 0.0
      %v4121 = vmax.f32 %v4117, 0.0
      %v4122 = vmax.f32 %v4118, 0.0
      %v4123 = vmax.f32 %v4119, 0.0
      %v4124 = vpack.c.bf16 %v4121, %v4120
      %v4125 = vpack.c.bf16 %v4123, %v4122
      %v4126 = vld [vmem:[%s7] sm:$0xf]
      %v4127 = vld [vmem:[%s7 + $0x4] sm:$0xf]
      %v4130 = vunpack.c.l.b16 %v4126
      %v4131 = vunpack.c.l.b16 %v4127
      %v4132 = vpack.c.b16 %v4131, %v4130
      %vm4134 = vcmask 130048
      %v4136 = vsel %vm4134, %v4124, 0
      %v4139 = vsel %vm4134, %v4125, 0
      %4141 = vmatprep.subr.bf16.mxu0 0
      %4142 = vmatpush1.bf16.msra.mxu0 0
      %4143 = vmatprep.subr.bf16.mxu0 0
      %4144 = vmatpush1.bf16.msra.mxu0 0
      %4145 = vmatprep.subr.bf16.mxu0 0
      %4146 = vmatpush1.bf16.msra.mxu0 0
      %4147 = vmatprep.subr.bf16.mxu0 0
      %4148 = vmatpush1.bf16.msra.mxu0 0
      %4149 = vmatprep.subr.bf16.mxu0 0
      %4150 = vmatpush1.bf16.msra.mxu0 0
      %4151 = vmatprep.subr.bf16.mxu0 0
      %4152 = vmatpush1.bf16.msra.mxu0 0
      %4153 = vmatprep.subr.bf16.mxu0 0
      %4154 = vmatpush1.bf16.msra.mxu0 0
      %4155 = vmatprep.subr.bf16.mxu0 0
      %4156 = vmatpush1.bf16.msra.mxu0 %v4132
      %4157 = vmatprep.subr.bf16.mxu0 0
      %4158 = vmatpush2.bf16.msra.mxu0 0
      %4159 = vmatprep.subr.bf16.mxu0 0
      %4160 = vmatpush2.bf16.msra.mxu0 0
      %4161 = vmatprep.subr.bf16.mxu0 0
      %4162 = vmatpush2.bf16.msra.mxu0 0
      %4163 = vmatprep.subr.bf16.mxu0 0
      %4164 = vmatpush2.bf16.msra.mxu0 0
      %4165 = vmatprep.subr.bf16.mxu0 0
      %4166 = vmatpush2.bf16.msra.mxu0 0
      %4167 = vmatprep.subr.bf16.mxu0 0
      %4168 = vmatpush2.bf16.msra.mxu0 0
      %4169 = vmatprep.subr.bf16.mxu0 0
      %4170 = vmatpush2.bf16.msra.mxu0 0
      %4171 = vmatprep.subr.bf16.mxu0 0
      %4172 = vmatpush2.bf16.msra.mxu0 0
      %4173 = vmatprep.mubr.bf16.mxu0 0
      %4174 = vmatmul.mubr.bf16.gmra.mxu0 %v4136
      %v4175 = vpop.f32.mrf.mxu0
      %v4176 = vadd.f32 0.0, %v4175
      %v4177 = vpop.f32.mrf.mxu0
      %v4178 = vpop.f32.mrf.mxu0
      %v4179 = vadd.f32 0.0, %v4178
      %v4180 = vpop.f32.mrf.mxu0
      %4181 = vmatprep.mubr.bf16.mxu0 0
      %4182 = vmatmul.mubr.bf16.gmra.mxu0 %v4139
      %v4183 = vpop.f32.mrf.mxu0
      %v4184 = vadd.f32 0.0, %v4183
      %v4185 = vpop.f32.mrf.mxu0
      %v4186 = vpop.f32.mrf.mxu0
      %v4187 = vadd.f32 0.0, %v4186
      %v4188 = vpop.f32.mrf.mxu0
      %4189 = vdwg.mxu0
      %v4190 = vld [vmem:[%s8] sm:$0xf]
      %v4191 = vld [vmem:[%s8 + $0x4] sm:$0xf]
      %v4192 = vld [vmem:[%s8 + $0x8] sm:$0xf]
      %v4193 = vld [vmem:[%s8 + $0xc] sm:$0xf]
      %v4194 = vpack.c.bf16 %v4179, %v4176
      %v4195 = vpack.c.bf16 %v4187, %v4184
      %s4196 = scalar_lea.vmem %s7, 8
      %v4197 = vld [vmem:[%s4196] sm:$0xf]
      %v4198 = vld [vmem:[%s4196 + $0x4] sm:$0xf]
      %v4201 = vunpack.c.l.b16 %v4197
      %v4202 = vunpack.c.l.b16 %v4198
      %v4203 = vpack.c.b16 %v4202, %v4201
      %4205 = vmatprep.subr.bf16.mxu0 0
      %4206 = vmatpush1.bf16.msra.mxu0 0
      %4207 = vmatprep.subr.bf16.mxu0 0
      %4208 = vmatpush1.bf16.msra.mxu0 0
      %4209 = vmatprep.subr.bf16.mxu0 0
      %4210 = vmatpush1.bf16.msra.mxu0 0
      %4211 = vmatprep.subr.bf16.mxu0 0
      %4212 = vmatpush1.bf16.msra.mxu0 0
      %4213 = vmatprep.subr.bf16.mxu0 0
      %4214 = vmatpush1.bf16.msra.mxu0 0
      %4215 = vmatprep.subr.bf16.mxu0 0
      %4216 = vmatpush1.bf16.msra.mxu0 0
      %4217 = vmatprep.subr.bf16.mxu0 0
      %4218 = vmatpush1.bf16.msra.mxu0 0
      %4219 = vmatprep.subr.bf16.mxu0 0
      %4220 = vmatpush1.bf16.msra.mxu0 %v4203
      %4221 = vmatprep.subr.bf16.mxu0 0
      %4222 = vmatpush2.bf16.msra.mxu0 0
      %4223 = vmatprep.subr.bf16.mxu0 0
      %4224 = vmatpush2.bf16.msra.mxu0 0
      %4225 = vmatprep.subr.bf16.mxu0 0
      %4226 = vmatpush2.bf16.msra.mxu0 0
      %4227 = vmatprep.subr.bf16.mxu0 0
      %4228 = vmatpush2.bf16.msra.mxu0 0
      %4229 = vmatprep.subr.bf16.mxu0 0
      %4230 = vmatpush2.bf16.msra.mxu0 0
      %4231 = vmatprep.subr.bf16.mxu0 0
      %4232 = vmatpush2.bf16.msra.mxu0 0
      %4233 = vmatprep.subr.bf16.mxu0 0
      %4234 = vmatpush2.bf16.msra.mxu0 0
      %4235 = vmatprep.subr.bf16.mxu0 0
      %4236 = vmatpush2.bf16.msra.mxu0 0
      %4237 = vmatprep.mubr.bf16.mxu0 0
      %4238 = vmatmul.mubr.bf16.gmra.mxu0 %v4136
      %v4239 = vpop.f32.mrf.mxu0
      %v4240 = vadd.f32 0.0, %v4239
      %v4241 = vpop.f32.mrf.mxu0
      %v4242 = vpop.f32.mrf.mxu0
      %v4243 = vadd.f32 0.0, %v4242
      %v4244 = vpop.f32.mrf.mxu0
      %4245 = vmatprep.mubr.bf16.mxu0 0
      %4246 = vmatmul.mubr.bf16.gmra.mxu0 %v4139
      %v4247 = vpop.f32.mrf.mxu0
      %v4248 = vadd.f32 0.0, %v4247
      %v4249 = vpop.f32.mrf.mxu0
      %v4250 = vpop.f32.mrf.mxu0
      %v4251 = vadd.f32 0.0, %v4250
      %v4252 = vpop.f32.mrf.mxu0
      %4253 = vdwg.mxu0
      %s4254 = scalar_lea.vmem %s8, 16
      %v4255 = vld [vmem:[%s4254] sm:$0xf]
      %v4256 = vld [vmem:[%s4254 + $0x4] sm:$0xf]
      %v4257 = vld [vmem:[%s4254 + $0x8] sm:$0xf]
      %v4258 = vld [vmem:[%s4254 + $0xc] sm:$0xf]
      %v4259 = vpack.c.bf16 %v4243, %v4240
      %v4260 = vpack.c.bf16 %v4251, %v4248
      %v4265 = vunpack.c.l.b16 %v4255
      %v4266 = vunpack.c.l.b16 %v4256
      %v4267 = vunpack.c.l.b16 %v4257
      %v4268 = vunpack.c.l.b16 %v4258
      %v4269 = vpack.c.b16 %v4266, %v4265
      %v4270 = vpack.c.b16 %v4268, %v4267
      %v4272 = vsel %vm2865, %v4269, 0
      %v4275 = vsel %vm2865, %v4270, 0
      %4277 = vmatprep.subr.bf16.mxu0 0
      %4278 = vmatpush1.bf16.msra.mxu0 0
      %4279 = vmatprep.subr.bf16.mxu0 0
      %4280 = vmatpush1.bf16.msra.mxu0 0
      %4281 = vmatprep.subr.bf16.mxu0 0
      %4282 = vmatpush1.bf16.msra.mxu0 0
      %4283 = vmatprep.subr.bf16.mxu0 0
      %4284 = vmatpush1.bf16.msra.mxu0 0
      %4285 = vmatprep.subr.bf16.mxu0 0
      %4286 = vmatpush1.bf16.msra.mxu0 0
      %4287 = vmatprep.subr.bf16.mxu0 0
      %4288 = vmatpush1.bf16.msra.mxu0 0
      %4289 = vmatprep.subr.bf16.mxu0 0
      %4290 = vmatpush1.bf16.msra.mxu0 %v4260
      %4291 = vmatprep.subr.bf16.mxu0 0
      %4292 = vmatpush1.bf16.msra.mxu0 %v4259
      %4293 = vmatprep.subr.bf16.mxu0 0
      %4294 = vmatpush2.bf16.msra.mxu0 0
      %4295 = vmatprep.subr.bf16.mxu0 0
      %4296 = vmatpush2.bf16.msra.mxu0 0
      %4297 = vmatprep.subr.bf16.mxu0 0
      %4298 = vmatpush2.bf16.msra.mxu0 0
      %4299 = vmatprep.subr.bf16.mxu0 0
      %4300 = vmatpush2.bf16.msra.mxu0 0
      %4301 = vmatprep.subr.bf16.mxu0 0
      %4302 = vmatpush2.bf16.msra.mxu0 0
      %4303 = vmatprep.subr.bf16.mxu0 0
      %4304 = vmatpush2.bf16.msra.mxu0 0
      %4305 = vmatprep.subr.bf16.mxu0 0
      %4306 = vmatpush2.bf16.msra.mxu0 0
      %4307 = vmatprep.subr.bf16.mxu0 0
      %4308 = vmatpush2.bf16.msra.mxu0 0
      %4309 = vmatprep.mubr.bf16.mxu0 0
      %4310 = vmatmul.mubr.bf16.gmra.mxu0 %v4272
      %v4311 = vpop.f32.mrf.mxu0
      %v4312 = vadd.f32 0.0, %v4311
      %v4313 = vpop.f32.mrf.mxu0
      %v4314 = vpop.f32.mrf.mxu0
      %v4315 = vadd.f32 0.0, %v4314
      %v4316 = vpop.f32.mrf.mxu0
      %4317 = vmatprep.mubr.bf16.mxu0 0
      %4318 = vmatmul.mubr.bf16.gmra.mxu0 %v4275
      %v4319 = vpop.f32.mrf.mxu0
      %v4320 = vadd.f32 0.0, %v4319
      %v4321 = vpop.f32.mrf.mxu0
      %v4322 = vpop.f32.mrf.mxu0
      %v4323 = vadd.f32 0.0, %v4322
      %v4324 = vpop.f32.mrf.mxu0
      %4325 = vdwg.mxu0
      %v4330 = vunpack.c.l.b16 %v4190
      %v4331 = vunpack.c.l.b16 %v4191
      %v4332 = vunpack.c.l.b16 %v4192
      %v4333 = vunpack.c.l.b16 %v4193
      %v4334 = vpack.c.b16 %v4331, %v4330
      %v4335 = vpack.c.b16 %v4333, %v4332
      %v4337 = vsel %vm2865, %v4334, 0
      %v4340 = vsel %vm2865, %v4335, 0
      %4342 = vmatprep.subr.bf16.mxu0 0
      %4343 = vmatpush1.bf16.msra.mxu0 0
      %4344 = vmatprep.subr.bf16.mxu0 0
      %4345 = vmatpush1.bf16.msra.mxu0 0
      %4346 = vmatprep.subr.bf16.mxu0 0
      %4347 = vmatpush1.bf16.msra.mxu0 0
      %4348 = vmatprep.subr.bf16.mxu0 0
      %4349 = vmatpush1.bf16.msra.mxu0 0
      %4350 = vmatprep.subr.bf16.mxu0 0
      %4351 = vmatpush1.bf16.msra.mxu0 0
      %4352 = vmatprep.subr.bf16.mxu0 0
      %4353 = vmatpush1.bf16.msra.mxu0 0
      %4354 = vmatprep.subr.bf16.mxu0 0
      %4355 = vmatpush1.bf16.msra.mxu0 %v4195
      %4356 = vmatprep.subr.bf16.mxu0 0
      %4357 = vmatpush1.bf16.msra.mxu0 %v4194
      %4358 = vmatprep.subr.bf16.mxu0 0
      %4359 = vmatpush2.bf16.msra.mxu0 0
      %4360 = vmatprep.subr.bf16.mxu0 0
      %4361 = vmatpush2.bf16.msra.mxu0 0
      %4362 = vmatprep.subr.bf16.mxu0 0
      %4363 = vmatpush2.bf16.msra.mxu0 0
      %4364 = vmatprep.subr.bf16.mxu0 0
      %4365 = vmatpush2.bf16.msra.mxu0 0
      %4366 = vmatprep.subr.bf16.mxu0 0
      %4367 = vmatpush2.bf16.msra.mxu0 0
      %4368 = vmatprep.subr.bf16.mxu0 0
      %4369 = vmatpush2.bf16.msra.mxu0 0
      %4370 = vmatprep.subr.bf16.mxu0 0
      %4371 = vmatpush2.bf16.msra.mxu0 0
      %4372 = vmatprep.subr.bf16.mxu0 0
      %4373 = vmatpush2.bf16.msra.mxu0 0
      %4374 = vmatprep.mubr.bf16.mxu0 0
      %4375 = vmatmul.mubr.bf16.gmra.mxu0 %v4337
      %v4376 = vpop.f32.mrf.mxu0
      %v4377 = vadd.f32 %v4312, %v4376
      %v4378 = vpop.f32.mrf.mxu0
      %v4379 = vpop.f32.mrf.mxu0
      %v4380 = vadd.f32 %v4315, %v4379
      %v4381 = vpop.f32.mrf.mxu0
      %4382 = vmatprep.mubr.bf16.mxu0 0
      %4383 = vmatmul.mubr.bf16.gmra.mxu0 %v4340
      %v4384 = vpop.f32.mrf.mxu0
      %v4385 = vadd.f32 %v4320, %v4384
      %v4386 = vpop.f32.mrf.mxu0
      %v4387 = vpop.f32.mrf.mxu0
      %v4388 = vadd.f32 %v4323, %v4387
      %v4389 = vpop.f32.mrf.mxu0
      %4390 = vdwg.mxu0
      %s4391 = scalar_lea.vmem %s7, 16
      %v4392 = vld [vmem:[%s4391] sm:$0xf]
      %v4393 = vld [vmem:[%s4391 + $0x4] sm:$0xf]
      %v4396 = vunpack.c.l.b16 %v4392
      %v4397 = vunpack.c.l.b16 %v4393
      %v4398 = vpack.c.b16 %v4397, %v4396
      %4400 = vmatprep.subr.bf16.mxu0 0
      %4401 = vmatpush1.bf16.msra.mxu0 0
      %4402 = vmatprep.subr.bf16.mxu0 0
      %4403 = vmatpush1.bf16.msra.mxu0 0
      %4404 = vmatprep.subr.bf16.mxu0 0
      %4405 = vmatpush1.bf16.msra.mxu0 0
      %4406 = vmatprep.subr.bf16.mxu0 0
      %4407 = vmatpush1.bf16.msra.mxu0 0
      %4408 = vmatprep.subr.bf16.mxu0 0
      %4409 = vmatpush1.bf16.msra.mxu0 0
      %4410 = vmatprep.subr.bf16.mxu0 0
      %4411 = vmatpush1.bf16.msra.mxu0 0
      %4412 = vmatprep.subr.bf16.mxu0 0
      %4413 = vmatpush1.bf16.msra.mxu0 0
      %4414 = vmatprep.subr.bf16.mxu0 0
      %4415 = vmatpush1.bf16.msra.mxu0 %v4398
      %4416 = vmatprep.subr.bf16.mxu0 0
      %4417 = vmatpush2.bf16.msra.mxu0 0
      %4418 = vmatprep.subr.bf16.mxu0 0
      %4419 = vmatpush2.bf16.msra.mxu0 0
      %4420 = vmatprep.subr.bf16.mxu0 0
      %4421 = vmatpush2.bf16.msra.mxu0 0
      %4422 = vmatprep.subr.bf16.mxu0 0
      %4423 = vmatpush2.bf16.msra.mxu0 0
      %4424 = vmatprep.subr.bf16.mxu0 0
      %4425 = vmatpush2.bf16.msra.mxu0 0
      %4426 = vmatprep.subr.bf16.mxu0 0
      %4427 = vmatpush2.bf16.msra.mxu0 0
      %4428 = vmatprep.subr.bf16.mxu0 0
      %4429 = vmatpush2.bf16.msra.mxu0 0
      %4430 = vmatprep.subr.bf16.mxu0 0
      %4431 = vmatpush2.bf16.msra.mxu0 0
      %4432 = vmatprep.mubr.bf16.mxu0 0
      %4433 = vmatmul.mubr.bf16.gmra.mxu0 %v4136
      %v4434 = vpop.f32.mrf.mxu0
      %v4435 = vadd.f32 0.0, %v4434
      %v4436 = vpop.f32.mrf.mxu0
      %v4437 = vpop.f32.mrf.mxu0
      %v4438 = vadd.f32 0.0, %v4437
      %v4439 = vpop.f32.mrf.mxu0
      %4440 = vmatprep.mubr.bf16.mxu0 0
      %4441 = vmatmul.mubr.bf16.gmra.mxu0 %v4139
      %v4442 = vpop.f32.mrf.mxu0
      %v4443 = vadd.f32 0.0, %v4442
      %v4444 = vpop.f32.mrf.mxu0
      %v4445 = vpop.f32.mrf.mxu0
      %v4446 = vadd.f32 0.0, %v4445
      %v4447 = vpop.f32.mrf.mxu0
      %4448 = vdwg.mxu0
      %s4449 = scalar_lea.vmem %s8, 32
      %v4450 = vld [vmem:[%s4449] sm:$0xf]
      %v4451 = vld [vmem:[%s4449 + $0x4] sm:$0xf]
      %v4452 = vld [vmem:[%s4449 + $0x8] sm:$0xf]
      %v4453 = vld [vmem:[%s4449 + $0xc] sm:$0xf]
      %v4454 = vpack.c.bf16 %v4438, %v4435
      %v4455 = vpack.c.bf16 %v4446, %v4443
      %v4460 = vunpack.c.l.b16 %v4450
      %v4461 = vunpack.c.l.b16 %v4451
      %v4462 = vunpack.c.l.b16 %v4452
      %v4463 = vunpack.c.l.b16 %v4453
      %v4464 = vpack.c.b16 %v4461, %v4460
      %v4465 = vpack.c.b16 %v4463, %v4462
      %v4467 = vsel %vm2865, %v4464, 0
      %v4470 = vsel %vm2865, %v4465, 0
      %4472 = vmatprep.subr.bf16.mxu0 0
      %4473 = vmatpush1.bf16.msra.mxu0 0
      %4474 = vmatprep.subr.bf16.mxu0 0
      %4475 = vmatpush1.bf16.msra.mxu0 0
      %4476 = vmatprep.subr.bf16.mxu0 0
      %4477 = vmatpush1.bf16.msra.mxu0 0
      %4478 = vmatprep.subr.bf16.mxu0 0
      %4479 = vmatpush1.bf16.msra.mxu0 0
      %4480 = vmatprep.subr.bf16.mxu0 0
      %4481 = vmatpush1.bf16.msra.mxu0 0
      %4482 = vmatprep.subr.bf16.mxu0 0
      %4483 = vmatpush1.bf16.msra.mxu0 0
      %4484 = vmatprep.subr.bf16.mxu0 0
      %4485 = vmatpush1.bf16.msra.mxu0 %v4455
      %4486 = vmatprep.subr.bf16.mxu0 0
      %4487 = vmatpush1.bf16.msra.mxu0 %v4454
      %4488 = vmatprep.subr.bf16.mxu0 0
      %4489 = vmatpush2.bf16.msra.mxu0 0
      %4490 = vmatprep.subr.bf16.mxu0 0
      %4491 = vmatpush2.bf16.msra.mxu0 0
      %4492 = vmatprep.subr.bf16.mxu0 0
      %4493 = vmatpush2.bf16.msra.mxu0 0
      %4494 = vmatprep.subr.bf16.mxu0 0
      %4495 = vmatpush2.bf16.msra.mxu0 0
      %4496 = vmatprep.subr.bf16.mxu0 0
      %4497 = vmatpush2.bf16.msra.mxu0 0
      %4498 = vmatprep.subr.bf16.mxu0 0
      %4499 = vmatpush2.bf16.msra.mxu0 0
      %4500 = vmatprep.subr.bf16.mxu0 0
      %4501 = vmatpush2.bf16.msra.mxu0 0
      %4502 = vmatprep.subr.bf16.mxu0 0
      %4503 = vmatpush2.bf16.msra.mxu0 0
      %4504 = vmatprep.mubr.bf16.mxu0 0
      %4505 = vmatmul.mubr.bf16.gmra.mxu0 %v4467
      %v4506 = vpop.f32.mrf.mxu0
      %v4507 = vadd.f32 0.0, %v4506
      %v4508 = vpop.f32.mrf.mxu0
      %v4509 = vpop.f32.mrf.mxu0
      %v4510 = vadd.f32 0.0, %v4509
      %v4511 = vpop.f32.mrf.mxu0
      %4512 = vmatprep.mubr.bf16.mxu0 0
      %4513 = vmatmul.mubr.bf16.gmra.mxu0 %v4470
      %v4514 = vpop.f32.mrf.mxu0
      %v4515 = vadd.f32 0.0, %v4514
      %v4516 = vpop.f32.mrf.mxu0
      %v4517 = vpop.f32.mrf.mxu0
      %v4518 = vadd.f32 0.0, %v4517
      %v4519 = vpop.f32.mrf.mxu0
      %4520 = vdwg.mxu0
      %v4521 = vadd.f32 %v4377, %v4507
      %v4522 = vadd.f32 %v4380, %v4510
      %v4523 = vadd.f32 %v4385, %v4515
      %v4524 = vadd.f32 %v4388, %v4518
      %s4525 = scalar_lea.vmem %s7, 24
      %v4526 = vld [vmem:[%s4525] sm:$0xf]
      %v4527 = vld [vmem:[%s4525 + $0x4] sm:$0xf]
      %v4530 = vunpack.c.l.b16 %v4526
      %v4531 = vunpack.c.l.b16 %v4527
      %v4532 = vpack.c.b16 %v4531, %v4530
      %4534 = vmatprep.subr.bf16.mxu0 0
      %4535 = vmatpush1.bf16.msra.mxu0 0
      %4536 = vmatprep.subr.bf16.mxu0 0
      %4537 = vmatpush1.bf16.msra.mxu0 0
      %4538 = vmatprep.subr.bf16.mxu0 0
      %4539 = vmatpush1.bf16.msra.mxu0 0
      %4540 = vmatprep.subr.bf16.mxu0 0
      %4541 = vmatpush1.bf16.msra.mxu0 0
      %4542 = vmatprep.subr.bf16.mxu0 0
      %4543 = vmatpush1.bf16.msra.mxu0 0
      %4544 = vmatprep.subr.bf16.mxu0 0
      %4545 = vmatpush1.bf16.msra.mxu0 0
      %4546 = vmatprep.subr.bf16.mxu0 0
      %4547 = vmatpush1.bf16.msra.mxu0 0
      %4548 = vmatprep.subr.bf16.mxu0 0
      %4549 = vmatpush1.bf16.msra.mxu0 %v4532
      %4550 = vmatprep.subr.bf16.mxu0 0
      %4551 = vmatpush2.bf16.msra.mxu0 0
      %4552 = vmatprep.subr.bf16.mxu0 0
      %4553 = vmatpush2.bf16.msra.mxu0 0
      %4554 = vmatprep.subr.bf16.mxu0 0
      %4555 = vmatpush2.bf16.msra.mxu0 0
      %4556 = vmatprep.subr.bf16.mxu0 0
      %4557 = vmatpush2.bf16.msra.mxu0 0
      %4558 = vmatprep.subr.bf16.mxu0 0
      %4559 = vmatpush2.bf16.msra.mxu0 0
      %4560 = vmatprep.subr.bf16.mxu0 0
      %4561 = vmatpush2.bf16.msra.mxu0 0
      %4562 = vmatprep.subr.bf16.mxu0 0
      %4563 = vmatpush2.bf16.msra.mxu0 0
      %4564 = vmatprep.subr.bf16.mxu0 0
      %4565 = vmatpush2.bf16.msra.mxu0 0
      %4566 = vmatprep.mubr.bf16.mxu0 0
      %4567 = vmatmul.mubr.bf16.gmra.mxu0 %v4136
      %v4568 = vpop.f32.mrf.mxu0
      %v4569 = vadd.f32 0.0, %v4568
      %v4570 = vpop.f32.mrf.mxu0
      %v4571 = vpop.f32.mrf.mxu0
      %v4572 = vadd.f32 0.0, %v4571
      %v4573 = vpop.f32.mrf.mxu0
      %4574 = vmatprep.mubr.bf16.mxu0 0
      %4575 = vmatmul.mubr.bf16.gmra.mxu0 %v4139
      %v4576 = vpop.f32.mrf.mxu0
      %v4577 = vadd.f32 0.0, %v4576
      %v4578 = vpop.f32.mrf.mxu0
      %v4579 = vpop.f32.mrf.mxu0
      %v4580 = vadd.f32 0.0, %v4579
      %v4581 = vpop.f32.mrf.mxu0
      %4582 = vdwg.mxu0
      %s4583 = scalar_lea.vmem %s8, 48
      %v4584 = vld [vmem:[%s4583] sm:$0xf]
      %v4585 = vld [vmem:[%s4583 + $0x4] sm:$0xf]
      %v4586 = vld [vmem:[%s4583 + $0x8] sm:$0xf]
      %v4587 = vld [vmem:[%s4583 + $0xc] sm:$0xf]
      %v4588 = vpack.c.bf16 %v4572, %v4569
      %v4589 = vpack.c.bf16 %v4580, %v4577
      %v4594 = vunpack.c.l.b16 %v4584
      %v4595 = vunpack.c.l.b16 %v4585
      %v4596 = vunpack.c.l.b16 %v4586
      %v4597 = vunpack.c.l.b16 %v4587
      %v4598 = vpack.c.b16 %v4595, %v4594
      %v4599 = vpack.c.b16 %v4597, %v4596
      %v4601 = vsel %vm2865, %v4598, 0
      %v4604 = vsel %vm2865, %v4599, 0
      %4606 = vmatprep.subr.bf16.mxu0 0
      %4607 = vmatpush1.bf16.msra.mxu0 0
      %4608 = vmatprep.subr.bf16.mxu0 0
      %4609 = vmatpush1.bf16.msra.mxu0 0
      %4610 = vmatprep.subr.bf16.mxu0 0
      %4611 = vmatpush1.bf16.msra.mxu0 0
      %4612 = vmatprep.subr.bf16.mxu0 0
      %4613 = vmatpush1.bf16.msra.mxu0 0
      %4614 = vmatprep.subr.bf16.mxu0 0
      %4615 = vmatpush1.bf16.msra.mxu0 0
      %4616 = vmatprep.subr.bf16.mxu0 0
      %4617 = vmatpush1.bf16.msra.mxu0 0
      %4618 = vmatprep.subr.bf16.mxu0 0
      %4619 = vmatpush1.bf16.msra.mxu0 %v4589
      %4620 = vmatprep.subr.bf16.mxu0 0
      %4621 = vmatpush1.bf16.msra.mxu0 %v4588
      %4622 = vmatprep.subr.bf16.mxu0 0
      %4623 = vmatpush2.bf16.msra.mxu0 0
      %4624 = vmatprep.subr.bf16.mxu0 0
      %4625 = vmatpush2.bf16.msra.mxu0 0
      %4626 = vmatprep.subr.bf16.mxu0 0
      %4627 = vmatpush2.bf16.msra.mxu0 0
      %4628 = vmatprep.subr.bf16.mxu0 0
      %4629 = vmatpush2.bf16.msra.mxu0 0
      %4630 = vmatprep.subr.bf16.mxu0 0
      %4631 = vmatpush2.bf16.msra.mxu0 0
      %4632 = vmatprep.subr.bf16.mxu0 0
      %4633 = vmatpush2.bf16.msra.mxu0 0
      %4634 = vmatprep.subr.bf16.mxu0 0
      %4635 = vmatpush2.bf16.msra.mxu0 0
      %4636 = vmatprep.subr.bf16.mxu0 0
      %4637 = vmatpush2.bf16.msra.mxu0 0
      %4638 = vmatprep.mubr.bf16.mxu0 0
      %4639 = vmatmul.mubr.bf16.gmra.mxu0 %v4601
      %v4640 = vpop.f32.mrf.mxu0
      %v4641 = vadd.f32 0.0, %v4640
      %v4642 = vpop.f32.mrf.mxu0
      %v4643 = vpop.f32.mrf.mxu0
      %v4644 = vadd.f32 0.0, %v4643
      %v4645 = vpop.f32.mrf.mxu0
      %4646 = vmatprep.mubr.bf16.mxu0 0
      %4647 = vmatmul.mubr.bf16.gmra.mxu0 %v4604
      %v4648 = vpop.f32.mrf.mxu0
      %v4649 = vadd.f32 0.0, %v4648
      %v4650 = vpop.f32.mrf.mxu0
      %v4651 = vpop.f32.mrf.mxu0
      %v4652 = vadd.f32 0.0, %v4651
      %v4653 = vpop.f32.mrf.mxu0
      %4654 = vdwg.mxu0
      %v4655 = vadd.f32 %v4521, %v4641
      %v4656 = vadd.f32 %v4522, %v4644
      %v4657 = vadd.f32 %v4523, %v4649
      %v4658 = vadd.f32 %v4524, %v4652
      %s4659 = scalar_lea.vmem %s7, 32
      %v4660 = vld [vmem:[%s4659] sm:$0xf]
      %v4661 = vld [vmem:[%s4659 + $0x4] sm:$0xf]
      %v4664 = vunpack.c.l.b16 %v4660
      %v4665 = vunpack.c.l.b16 %v4661
      %v4666 = vpack.c.b16 %v4665, %v4664
      %4668 = vmatprep.subr.bf16.mxu0 0
      %4669 = vmatpush1.bf16.msra.mxu0 0
      %4670 = vmatprep.subr.bf16.mxu0 0
      %4671 = vmatpush1.bf16.msra.mxu0 0
      %4672 = vmatprep.subr.bf16.mxu0 0
      %4673 = vmatpush1.bf16.msra.mxu0 0
      %4674 = vmatprep.subr.bf16.mxu0 0
      %4675 = vmatpush1.bf16.msra.mxu0 0
      %4676 = vmatprep.subr.bf16.mxu0 0
      %4677 = vmatpush1.bf16.msra.mxu0 0
      %4678 = vmatprep.subr.bf16.mxu0 0
      %4679 = vmatpush1.bf16.msra.mxu0 0
      %4680 = vmatprep.subr.bf16.mxu0 0
      %4681 = vmatpush1.bf16.msra.mxu0 0
      %4682 = vmatprep.subr.bf16.mxu0 0
      %4683 = vmatpush1.bf16.msra.mxu0 %v4666
      %4684 = vmatprep.subr.bf16.mxu0 0
      %4685 = vmatpush2.bf16.msra.mxu0 0
      %4686 = vmatprep.subr.bf16.mxu0 0
      %4687 = vmatpush2.bf16.msra.mxu0 0
      %4688 = vmatprep.subr.bf16.mxu0 0
      %4689 = vmatpush2.bf16.msra.mxu0 0
      %4690 = vmatprep.subr.bf16.mxu0 0
      %4691 = vmatpush2.bf16.msra.mxu0 0
      %4692 = vmatprep.subr.bf16.mxu0 0
      %4693 = vmatpush2.bf16.msra.mxu0 0
      %4694 = vmatprep.subr.bf16.mxu0 0
      %4695 = vmatpush2.bf16.msra.mxu0 0
      %4696 = vmatprep.subr.bf16.mxu0 0
      %4697 = vmatpush2.bf16.msra.mxu0 0
      %4698 = vmatprep.subr.bf16.mxu0 0
      %4699 = vmatpush2.bf16.msra.mxu0 0
      %4700 = vmatprep.mubr.bf16.mxu0 0
      %4701 = vmatmul.mubr.bf16.gmra.mxu0 %v4136
      %v4702 = vpop.f32.mrf.mxu0
      %v4703 = vadd.f32 0.0, %v4702
      %v4704 = vpop.f32.mrf.mxu0
      %v4705 = vpop.f32.mrf.mxu0
      %v4706 = vadd.f32 0.0, %v4705
      %v4707 = vpop.f32.mrf.mxu0
      %4708 = vmatprep.mubr.bf16.mxu0 0
      %4709 = vmatmul.mubr.bf16.gmra.mxu0 %v4139
      %v4710 = vpop.f32.mrf.mxu0
      %v4711 = vadd.f32 0.0, %v4710
      %v4712 = vpop.f32.mrf.mxu0
      %v4713 = vpop.f32.mrf.mxu0
      %v4714 = vadd.f32 0.0, %v4713
      %v4715 = vpop.f32.mrf.mxu0
      %4716 = vdwg.mxu0
      %s4717 = scalar_lea.vmem %s8, 64
      %v4718 = vld [vmem:[%s4717] sm:$0xf]
      %v4719 = vld [vmem:[%s4717 + $0x4] sm:$0xf]
      %v4720 = vld [vmem:[%s4717 + $0x8] sm:$0xf]
      %v4721 = vld [vmem:[%s4717 + $0xc] sm:$0xf]
      %v4722 = vpack.c.bf16 %v4706, %v4703
      %v4723 = vpack.c.bf16 %v4714, %v4711
      %v4728 = vunpack.c.l.b16 %v4718
      %v4729 = vunpack.c.l.b16 %v4719
      %v4730 = vunpack.c.l.b16 %v4720
      %v4731 = vunpack.c.l.b16 %v4721
      %v4732 = vpack.c.b16 %v4729, %v4728
      %v4733 = vpack.c.b16 %v4731, %v4730
      %v4735 = vsel %vm2865, %v4732, 0
      %v4738 = vsel %vm2865, %v4733, 0
      %4740 = vmatprep.subr.bf16.mxu0 0
      %4741 = vmatpush1.bf16.msra.mxu0 0
      %4742 = vmatprep.subr.bf16.mxu0 0
      %4743 = vmatpush1.bf16.msra.mxu0 0
      %4744 = vmatprep.subr.bf16.mxu0 0
      %4745 = vmatpush1.bf16.msra.mxu0 0
      %4746 = vmatprep.subr.bf16.mxu0 0
      %4747 = vmatpush1.bf16.msra.mxu0 0
      %4748 = vmatprep.subr.bf16.mxu0 0
      %4749 = vmatpush1.bf16.msra.mxu0 0
      %4750 = vmatprep.subr.bf16.mxu0 0
      %4751 = vmatpush1.bf16.msra.mxu0 0
      %4752 = vmatprep.subr.bf16.mxu0 0
      %4753 = vmatpush1.bf16.msra.mxu0 %v4723
      %4754 = vmatprep.subr.bf16.mxu0 0
      %4755 = vmatpush1.bf16.msra.mxu0 %v4722
      %4756 = vmatprep.subr.bf16.mxu0 0
      %4757 = vmatpush2.bf16.msra.mxu0 0
      %4758 = vmatprep.subr.bf16.mxu0 0
      %4759 = vmatpush2.bf16.msra.mxu0 0
      %4760 = vmatprep.subr.bf16.mxu0 0
      %4761 = vmatpush2.bf16.msra.mxu0 0
      %4762 = vmatprep.subr.bf16.mxu0 0
      %4763 = vmatpush2.bf16.msra.mxu0 0
      %4764 = vmatprep.subr.bf16.mxu0 0
      %4765 = vmatpush2.bf16.msra.mxu0 0
      %4766 = vmatprep.subr.bf16.mxu0 0
      %4767 = vmatpush2.bf16.msra.mxu0 0
      %4768 = vmatprep.subr.bf16.mxu0 0
      %4769 = vmatpush2.bf16.msra.mxu0 0
      %4770 = vmatprep.subr.bf16.mxu0 0
      %4771 = vmatpush2.bf16.msra.mxu0 0
      %4772 = vmatprep.mubr.bf16.mxu0 0
      %4773 = vmatmul.mubr.bf16.gmra.mxu0 %v4735
      %v4774 = vpop.f32.mrf.mxu0
      %v4775 = vadd.f32 0.0, %v4774
      %v4776 = vpop.f32.mrf.mxu0
      %v4777 = vpop.f32.mrf.mxu0
      %v4778 = vadd.f32 0.0, %v4777
      %v4779 = vpop.f32.mrf.mxu0
      %4780 = vmatprep.mubr.bf16.mxu0 0
      %4781 = vmatmul.mubr.bf16.gmra.mxu0 %v4738
      %v4782 = vpop.f32.mrf.mxu0
      %v4783 = vadd.f32 0.0, %v4782
      %v4784 = vpop.f32.mrf.mxu0
      %v4785 = vpop.f32.mrf.mxu0
      %v4786 = vadd.f32 0.0, %v4785
      %v4787 = vpop.f32.mrf.mxu0
      %4788 = vdwg.mxu0
      %v4789 = vadd.f32 %v4655, %v4775
      %v4790 = vadd.f32 %v4656, %v4778
      %v4791 = vadd.f32 %v4657, %v4783
      %v4792 = vadd.f32 %v4658, %v4786
      %s4793 = scalar_lea.vmem %s7, 40
      %v4794 = vld [vmem:[%s4793] sm:$0xf]
      %v4795 = vld [vmem:[%s4793 + $0x4] sm:$0xf]
      %v4798 = vunpack.c.l.b16 %v4794
      %v4799 = vunpack.c.l.b16 %v4795
      %v4800 = vpack.c.b16 %v4799, %v4798
      %4802 = vmatprep.subr.bf16.mxu0 0
      %4803 = vmatpush1.bf16.msra.mxu0 0
      %4804 = vmatprep.subr.bf16.mxu0 0
      %4805 = vmatpush1.bf16.msra.mxu0 0
      %4806 = vmatprep.subr.bf16.mxu0 0
      %4807 = vmatpush1.bf16.msra.mxu0 0
      %4808 = vmatprep.subr.bf16.mxu0 0
      %4809 = vmatpush1.bf16.msra.mxu0 0
      %4810 = vmatprep.subr.bf16.mxu0 0
      %4811 = vmatpush1.bf16.msra.mxu0 0
      %4812 = vmatprep.subr.bf16.mxu0 0
      %4813 = vmatpush1.bf16.msra.mxu0 0
      %4814 = vmatprep.subr.bf16.mxu0 0
      %4815 = vmatpush1.bf16.msra.mxu0 0
      %4816 = vmatprep.subr.bf16.mxu0 0
      %4817 = vmatpush1.bf16.msra.mxu0 %v4800
      %4818 = vmatprep.subr.bf16.mxu0 0
      %4819 = vmatpush2.bf16.msra.mxu0 0
      %4820 = vmatprep.subr.bf16.mxu0 0
      %4821 = vmatpush2.bf16.msra.mxu0 0
      %4822 = vmatprep.subr.bf16.mxu0 0
      %4823 = vmatpush2.bf16.msra.mxu0 0
      %4824 = vmatprep.subr.bf16.mxu0 0
      %4825 = vmatpush2.bf16.msra.mxu0 0
      %4826 = vmatprep.subr.bf16.mxu0 0
      %4827 = vmatpush2.bf16.msra.mxu0 0
      %4828 = vmatprep.subr.bf16.mxu0 0
      %4829 = vmatpush2.bf16.msra.mxu0 0
      %4830 = vmatprep.subr.bf16.mxu0 0
      %4831 = vmatpush2.bf16.msra.mxu0 0
      %4832 = vmatprep.subr.bf16.mxu0 0
      %4833 = vmatpush2.bf16.msra.mxu0 0
      %4834 = vmatprep.mubr.bf16.mxu0 0
      %4835 = vmatmul.mubr.bf16.gmra.mxu0 %v4136
      %v4836 = vpop.f32.mrf.mxu0
      %v4837 = vadd.f32 0.0, %v4836
      %v4838 = vpop.f32.mrf.mxu0
      %v4839 = vpop.f32.mrf.mxu0
      %v4840 = vadd.f32 0.0, %v4839
      %v4841 = vpop.f32.mrf.mxu0
      %4842 = vmatprep.mubr.bf16.mxu0 0
      %4843 = vmatmul.mubr.bf16.gmra.mxu0 %v4139
      %v4844 = vpop.f32.mrf.mxu0
      %v4845 = vadd.f32 0.0, %v4844
      %v4846 = vpop.f32.mrf.mxu0
      %v4847 = vpop.f32.mrf.mxu0
      %v4848 = vadd.f32 0.0, %v4847
      %v4849 = vpop.f32.mrf.mxu0
      %4850 = vdwg.mxu0
      %s4851 = scalar_lea.vmem %s8, 80
      %v4852 = vld [vmem:[%s4851] sm:$0xf]
      %v4853 = vld [vmem:[%s4851 + $0x4] sm:$0xf]
      %v4854 = vld [vmem:[%s4851 + $0x8] sm:$0xf]
      %v4855 = vld [vmem:[%s4851 + $0xc] sm:$0xf]
      %v4856 = vpack.c.bf16 %v4840, %v4837
      %v4857 = vpack.c.bf16 %v4848, %v4845
      %v4862 = vunpack.c.l.b16 %v4852
      %v4863 = vunpack.c.l.b16 %v4853
      %v4864 = vunpack.c.l.b16 %v4854
      %v4865 = vunpack.c.l.b16 %v4855
      %v4866 = vpack.c.b16 %v4863, %v4862
      %v4867 = vpack.c.b16 %v4865, %v4864
      %v4869 = vsel %vm2865, %v4866, 0
      %v4872 = vsel %vm2865, %v4867, 0
      %4874 = vmatprep.subr.bf16.mxu0 0
      %4875 = vmatpush1.bf16.msra.mxu0 0
      %4876 = vmatprep.subr.bf16.mxu0 0
      %4877 = vmatpush1.bf16.msra.mxu0 0
      %4878 = vmatprep.subr.bf16.mxu0 0
      %4879 = vmatpush1.bf16.msra.mxu0 0
      %4880 = vmatprep.subr.bf16.mxu0 0
      %4881 = vmatpush1.bf16.msra.mxu0 0
      %4882 = vmatprep.subr.bf16.mxu0 0
      %4883 = vmatpush1.bf16.msra.mxu0 0
      %4884 = vmatprep.subr.bf16.mxu0 0
      %4885 = vmatpush1.bf16.msra.mxu0 0
      %4886 = vmatprep.subr.bf16.mxu0 0
      %4887 = vmatpush1.bf16.msra.mxu0 %v4857
      %4888 = vmatprep.subr.bf16.mxu0 0
      %4889 = vmatpush1.bf16.msra.mxu0 %v4856
      %4890 = vmatprep.subr.bf16.mxu0 0
      %4891 = vmatpush2.bf16.msra.mxu0 0
      %4892 = vmatprep.subr.bf16.mxu0 0
      %4893 = vmatpush2.bf16.msra.mxu0 0
      %4894 = vmatprep.subr.bf16.mxu0 0
      %4895 = vmatpush2.bf16.msra.mxu0 0
      %4896 = vmatprep.subr.bf16.mxu0 0
      %4897 = vmatpush2.bf16.msra.mxu0 0
      %4898 = vmatprep.subr.bf16.mxu0 0
      %4899 = vmatpush2.bf16.msra.mxu0 0
      %4900 = vmatprep.subr.bf16.mxu0 0
      %4901 = vmatpush2.bf16.msra.mxu0 0
      %4902 = vmatprep.subr.bf16.mxu0 0
      %4903 = vmatpush2.bf16.msra.mxu0 0
      %4904 = vmatprep.subr.bf16.mxu0 0
      %4905 = vmatpush2.bf16.msra.mxu0 0
      %4906 = vmatprep.mubr.bf16.mxu0 0
      %4907 = vmatmul.mubr.bf16.gmra.mxu0 %v4869
      %v4908 = vpop.f32.mrf.mxu0
      %v4909 = vadd.f32 0.0, %v4908
      %v4910 = vpop.f32.mrf.mxu0
      %v4911 = vpop.f32.mrf.mxu0
      %v4912 = vadd.f32 0.0, %v4911
      %v4913 = vpop.f32.mrf.mxu0
      %4914 = vmatprep.mubr.bf16.mxu0 0
      %4915 = vmatmul.mubr.bf16.gmra.mxu0 %v4872
      %v4916 = vpop.f32.mrf.mxu0
      %v4917 = vadd.f32 0.0, %v4916
      %v4918 = vpop.f32.mrf.mxu0
      %v4919 = vpop.f32.mrf.mxu0
      %v4920 = vadd.f32 0.0, %v4919
      %v4921 = vpop.f32.mrf.mxu0
      %4922 = vdwg.mxu0
      %v4923 = vadd.f32 %v4789, %v4909
      %v4924 = vadd.f32 %v4790, %v4912
      %v4925 = vadd.f32 %v4791, %v4917
      %v4926 = vadd.f32 %v4792, %v4920
      %s4927 = scalar_lea.vmem %s7, 48
      %v4928 = vld [vmem:[%s4927] sm:$0xf]
      %v4929 = vld [vmem:[%s4927 + $0x4] sm:$0xf]
      %v4932 = vunpack.c.l.b16 %v4928
      %v4933 = vunpack.c.l.b16 %v4929
      %v4934 = vpack.c.b16 %v4933, %v4932
      %4936 = vmatprep.subr.bf16.mxu0 0
      %4937 = vmatpush1.bf16.msra.mxu0 0
      %4938 = vmatprep.subr.bf16.mxu0 0
      %4939 = vmatpush1.bf16.msra.mxu0 0
      %4940 = vmatprep.subr.bf16.mxu0 0
      %4941 = vmatpush1.bf16.msra.mxu0 0
      %4942 = vmatprep.subr.bf16.mxu0 0
      %4943 = vmatpush1.bf16.msra.mxu0 0
      %4944 = vmatprep.subr.bf16.mxu0 0
      %4945 = vmatpush1.bf16.msra.mxu0 0
      %4946 = vmatprep.subr.bf16.mxu0 0
      %4947 = vmatpush1.bf16.msra.mxu0 0
      %4948 = vmatprep.subr.bf16.mxu0 0
      %4949 = vmatpush1.bf16.msra.mxu0 0
      %4950 = vmatprep.subr.bf16.mxu0 0
      %4951 = vmatpush1.bf16.msra.mxu0 %v4934
      %4952 = vmatprep.subr.bf16.mxu0 0
      %4953 = vmatpush2.bf16.msra.mxu0 0
      %4954 = vmatprep.subr.bf16.mxu0 0
      %4955 = vmatpush2.bf16.msra.mxu0 0
      %4956 = vmatprep.subr.bf16.mxu0 0
      %4957 = vmatpush2.bf16.msra.mxu0 0
      %4958 = vmatprep.subr.bf16.mxu0 0
      %4959 = vmatpush2.bf16.msra.mxu0 0
      %4960 = vmatprep.subr.bf16.mxu0 0
      %4961 = vmatpush2.bf16.msra.mxu0 0
      %4962 = vmatprep.subr.bf16.mxu0 0
      %4963 = vmatpush2.bf16.msra.mxu0 0
      %4964 = vmatprep.subr.bf16.mxu0 0
      %4965 = vmatpush2.bf16.msra.mxu0 0
      %4966 = vmatprep.subr.bf16.mxu0 0
      %4967 = vmatpush2.bf16.msra.mxu0 0
      %4968 = vmatprep.mubr.bf16.mxu0 0
      %4969 = vmatmul.mubr.bf16.gmra.mxu0 %v4136
      %v4970 = vpop.f32.mrf.mxu0
      %v4971 = vadd.f32 0.0, %v4970
      %v4972 = vpop.f32.mrf.mxu0
      %v4973 = vpop.f32.mrf.mxu0
      %v4974 = vadd.f32 0.0, %v4973
      %v4975 = vpop.f32.mrf.mxu0
      %4976 = vmatprep.mubr.bf16.mxu0 0
      %4977 = vmatmul.mubr.bf16.gmra.mxu0 %v4139
      %v4978 = vpop.f32.mrf.mxu0
      %v4979 = vadd.f32 0.0, %v4978
      %v4980 = vpop.f32.mrf.mxu0
      %v4981 = vpop.f32.mrf.mxu0
      %v4982 = vadd.f32 0.0, %v4981
      %v4983 = vpop.f32.mrf.mxu0
      %4984 = vdwg.mxu0
      %s4985 = scalar_lea.vmem %s8, 96
      %v4986 = vld [vmem:[%s4985] sm:$0xf]
      %v4987 = vld [vmem:[%s4985 + $0x4] sm:$0xf]
      %v4988 = vld [vmem:[%s4985 + $0x8] sm:$0xf]
      %v4989 = vld [vmem:[%s4985 + $0xc] sm:$0xf]
      %v4990 = vpack.c.bf16 %v4974, %v4971
      %v4991 = vpack.c.bf16 %v4982, %v4979
      %v4996 = vunpack.c.l.b16 %v4986
      %v4997 = vunpack.c.l.b16 %v4987
      %v4998 = vunpack.c.l.b16 %v4988
      %v4999 = vunpack.c.l.b16 %v4989
      %v5000 = vpack.c.b16 %v4997, %v4996
      %v5001 = vpack.c.b16 %v4999, %v4998
      %v5003 = vsel %vm2865, %v5000, 0
      %v5006 = vsel %vm2865, %v5001, 0
      %5008 = vmatprep.subr.bf16.mxu0 0
      %5009 = vmatpush1.bf16.msra.mxu0 0
      %5010 = vmatprep.subr.bf16.mxu0 0
      %5011 = vmatpush1.bf16.msra.mxu0 0
      %5012 = vmatprep.subr.bf16.mxu0 0
      %5013 = vmatpush1.bf16.msra.mxu0 0
      %5014 = vmatprep.subr.bf16.mxu0 0
      %5015 = vmatpush1.bf16.msra.mxu0 0
      %5016 = vmatprep.subr.bf16.mxu0 0
      %5017 = vmatpush1.bf16.msra.mxu0 0
      %5018 = vmatprep.subr.bf16.mxu0 0
      %5019 = vmatpush1.bf16.msra.mxu0 0
      %5020 = vmatprep.subr.bf16.mxu0 0
      %5021 = vmatpush1.bf16.msra.mxu0 %v4991
      %5022 = vmatprep.subr.bf16.mxu0 0
      %5023 = vmatpush1.bf16.msra.mxu0 %v4990
      %5024 = vmatprep.subr.bf16.mxu0 0
      %5025 = vmatpush2.bf16.msra.mxu0 0
      %5026 = vmatprep.subr.bf16.mxu0 0
      %5027 = vmatpush2.bf16.msra.mxu0 0
      %5028 = vmatprep.subr.bf16.mxu0 0
      %5029 = vmatpush2.bf16.msra.mxu0 0
      %5030 = vmatprep.subr.bf16.mxu0 0
      %5031 = vmatpush2.bf16.msra.mxu0 0
      %5032 = vmatprep.subr.bf16.mxu0 0
      %5033 = vmatpush2.bf16.msra.mxu0 0
      %5034 = vmatprep.subr.bf16.mxu0 0
      %5035 = vmatpush2.bf16.msra.mxu0 0
      %5036 = vmatprep.subr.bf16.mxu0 0
      %5037 = vmatpush2.bf16.msra.mxu0 0
      %5038 = vmatprep.subr.bf16.mxu0 0
      %5039 = vmatpush2.bf16.msra.mxu0 0
      %5040 = vmatprep.mubr.bf16.mxu0 0
      %5041 = vmatmul.mubr.bf16.gmra.mxu0 %v5003
      %v5042 = vpop.f32.mrf.mxu0
      %v5043 = vadd.f32 0.0, %v5042
      %v5044 = vpop.f32.mrf.mxu0
      %v5045 = vpop.f32.mrf.mxu0
      %v5046 = vadd.f32 0.0, %v5045
      %v5047 = vpop.f32.mrf.mxu0
      %5048 = vmatprep.mubr.bf16.mxu0 0
      %5049 = vmatmul.mubr.bf16.gmra.mxu0 %v5006
      %v5050 = vpop.f32.mrf.mxu0
      %v5051 = vadd.f32 0.0, %v5050
      %v5052 = vpop.f32.mrf.mxu0
      %v5053 = vpop.f32.mrf.mxu0
      %v5054 = vadd.f32 0.0, %v5053
      %v5055 = vpop.f32.mrf.mxu0
      %5056 = vdwg.mxu0
      %v5057 = vadd.f32 %v4923, %v5043
      %v5058 = vadd.f32 %v4924, %v5046
      %v5059 = vadd.f32 %v4925, %v5051
      %v5060 = vadd.f32 %v4926, %v5054
      %s5061 = scalar_lea.vmem %s7, 56
      %v5062 = vld [vmem:[%s5061] sm:$0xf]
      %v5063 = vld [vmem:[%s5061 + $0x4] sm:$0xf]
      %v5066 = vunpack.c.l.b16 %v5062
      %v5067 = vunpack.c.l.b16 %v5063
      %v5068 = vpack.c.b16 %v5067, %v5066
      %5070 = vmatprep.subr.bf16.mxu0 0
      %5071 = vmatpush1.bf16.msra.mxu0 0
      %5072 = vmatprep.subr.bf16.mxu0 0
      %5073 = vmatpush1.bf16.msra.mxu0 0
      %5074 = vmatprep.subr.bf16.mxu0 0
      %5075 = vmatpush1.bf16.msra.mxu0 0
      %5076 = vmatprep.subr.bf16.mxu0 0
      %5077 = vmatpush1.bf16.msra.mxu0 0
      %5078 = vmatprep.subr.bf16.mxu0 0
      %5079 = vmatpush1.bf16.msra.mxu0 0
      %5080 = vmatprep.subr.bf16.mxu0 0
      %5081 = vmatpush1.bf16.msra.mxu0 0
      %5082 = vmatprep.subr.bf16.mxu0 0
      %5083 = vmatpush1.bf16.msra.mxu0 0
      %5084 = vmatprep.subr.bf16.mxu0 0
      %5085 = vmatpush1.bf16.msra.mxu0 %v5068
      %5086 = vmatprep.subr.bf16.mxu0 0
      %5087 = vmatpush2.bf16.msra.mxu0 0
      %5088 = vmatprep.subr.bf16.mxu0 0
      %5089 = vmatpush2.bf16.msra.mxu0 0
      %5090 = vmatprep.subr.bf16.mxu0 0
      %5091 = vmatpush2.bf16.msra.mxu0 0
      %5092 = vmatprep.subr.bf16.mxu0 0
      %5093 = vmatpush2.bf16.msra.mxu0 0
      %5094 = vmatprep.subr.bf16.mxu0 0
      %5095 = vmatpush2.bf16.msra.mxu0 0
      %5096 = vmatprep.subr.bf16.mxu0 0
      %5097 = vmatpush2.bf16.msra.mxu0 0
      %5098 = vmatprep.subr.bf16.mxu0 0
      %5099 = vmatpush2.bf16.msra.mxu0 0
      %5100 = vmatprep.subr.bf16.mxu0 0
      %5101 = vmatpush2.bf16.msra.mxu0 0
      %5102 = vmatprep.mubr.bf16.mxu0 0
      %5103 = vmatmul.mubr.bf16.gmra.mxu0 %v4136
      %v5104 = vpop.f32.mrf.mxu0
      %v5105 = vadd.f32 0.0, %v5104
      %v5106 = vpop.f32.mrf.mxu0
      %v5107 = vpop.f32.mrf.mxu0
      %v5108 = vadd.f32 0.0, %v5107
      %v5109 = vpop.f32.mrf.mxu0
      %5110 = vmatprep.mubr.bf16.mxu0 0
      %5111 = vmatmul.mubr.bf16.gmra.mxu0 %v4139
      %v5112 = vpop.f32.mrf.mxu0
      %v5113 = vadd.f32 0.0, %v5112
      %v5114 = vpop.f32.mrf.mxu0
      %v5115 = vpop.f32.mrf.mxu0
      %v5116 = vadd.f32 0.0, %v5115
      %v5117 = vpop.f32.mrf.mxu0
      %5118 = vdwg.mxu0
      %s5119 = scalar_lea.vmem %s8, 112
      %v5120 = vld [vmem:[%s5119] sm:$0xf]
      %v5121 = vld [vmem:[%s5119 + $0x4] sm:$0xf]
      %v5122 = vld [vmem:[%s5119 + $0x8] sm:$0xf]
      %v5123 = vld [vmem:[%s5119 + $0xc] sm:$0xf]
      %v5124 = vpack.c.bf16 %v5108, %v5105
      %v5125 = vpack.c.bf16 %v5116, %v5113
      %v5130 = vunpack.c.l.b16 %v5120
      %v5131 = vunpack.c.l.b16 %v5121
      %v5132 = vunpack.c.l.b16 %v5122
      %v5133 = vunpack.c.l.b16 %v5123
      %v5134 = vpack.c.b16 %v5131, %v5130
      %v5135 = vpack.c.b16 %v5133, %v5132
      %v5137 = vsel %vm2865, %v5134, 0
      %v5140 = vsel %vm2865, %v5135, 0
      %5142 = vmatprep.subr.bf16.mxu0 0
      %5143 = vmatpush1.bf16.msra.mxu0 0
      %5144 = vmatprep.subr.bf16.mxu0 0
      %5145 = vmatpush1.bf16.msra.mxu0 0
      %5146 = vmatprep.subr.bf16.mxu0 0
      %5147 = vmatpush1.bf16.msra.mxu0 0
      %5148 = vmatprep.subr.bf16.mxu0 0
      %5149 = vmatpush1.bf16.msra.mxu0 0
      %5150 = vmatprep.subr.bf16.mxu0 0
      %5151 = vmatpush1.bf16.msra.mxu0 0
      %5152 = vmatprep.subr.bf16.mxu0 0
      %5153 = vmatpush1.bf16.msra.mxu0 0
      %5154 = vmatprep.subr.bf16.mxu0 0
      %5155 = vmatpush1.bf16.msra.mxu0 %v5125
      %5156 = vmatprep.subr.bf16.mxu0 0
      %5157 = vmatpush1.bf16.msra.mxu0 %v5124
      %5158 = vmatprep.subr.bf16.mxu0 0
      %5159 = vmatpush2.bf16.msra.mxu0 0
      %5160 = vmatprep.subr.bf16.mxu0 0
      %5161 = vmatpush2.bf16.msra.mxu0 0
      %5162 = vmatprep.subr.bf16.mxu0 0
      %5163 = vmatpush2.bf16.msra.mxu0 0
      %5164 = vmatprep.subr.bf16.mxu0 0
      %5165 = vmatpush2.bf16.msra.mxu0 0
      %5166 = vmatprep.subr.bf16.mxu0 0
      %5167 = vmatpush2.bf16.msra.mxu0 0
      %5168 = vmatprep.subr.bf16.mxu0 0
      %5169 = vmatpush2.bf16.msra.mxu0 0
      %5170 = vmatprep.subr.bf16.mxu0 0
      %5171 = vmatpush2.bf16.msra.mxu0 0
      %5172 = vmatprep.subr.bf16.mxu0 0
      %5173 = vmatpush2.bf16.msra.mxu0 0
      %5174 = vmatprep.mubr.bf16.mxu0 0
      %5175 = vmatmul.mubr.bf16.gmra.mxu0 %v5137
      %v5176 = vpop.f32.mrf.mxu0
      %v5177 = vadd.f32 0.0, %v5176
      %v5178 = vpop.f32.mrf.mxu0
      %v5179 = vpop.f32.mrf.mxu0
      %v5180 = vadd.f32 0.0, %v5179
      %v5181 = vpop.f32.mrf.mxu0
      %5182 = vmatprep.mubr.bf16.mxu0 0
      %5183 = vmatmul.mubr.bf16.gmra.mxu0 %v5140
      %v5184 = vpop.f32.mrf.mxu0
      %v5185 = vadd.f32 0.0, %v5184
      %v5186 = vpop.f32.mrf.mxu0
      %v5187 = vpop.f32.mrf.mxu0
      %v5188 = vadd.f32 0.0, %v5187
      %v5189 = vpop.f32.mrf.mxu0
      %5190 = vdwg.mxu0
      %v5191 = vadd.f32 %v5057, %v5177
      %v5192 = vadd.f32 %v5058, %v5180
      %v5193 = vadd.f32 %v5059, %v5185
      %v5194 = vadd.f32 %v5060, %v5188
      %s5195 = scalar_lea.vmem %s7, 64
      %v5196 = vld [vmem:[%s5195] sm:$0xf]
      %v5197 = vld [vmem:[%s5195 + $0x4] sm:$0xf]
      %v5200 = vunpack.c.l.b16 %v5196
      %v5201 = vunpack.c.l.b16 %v5197
      %v5202 = vpack.c.b16 %v5201, %v5200
      %5204 = vmatprep.subr.bf16.mxu0 0
      %5205 = vmatpush1.bf16.msra.mxu0 0
      %5206 = vmatprep.subr.bf16.mxu0 0
      %5207 = vmatpush1.bf16.msra.mxu0 0
      %5208 = vmatprep.subr.bf16.mxu0 0
      %5209 = vmatpush1.bf16.msra.mxu0 0
      %5210 = vmatprep.subr.bf16.mxu0 0
      %5211 = vmatpush1.bf16.msra.mxu0 0
      %5212 = vmatprep.subr.bf16.mxu0 0
      %5213 = vmatpush1.bf16.msra.mxu0 0
      %5214 = vmatprep.subr.bf16.mxu0 0
      %5215 = vmatpush1.bf16.msra.mxu0 0
      %5216 = vmatprep.subr.bf16.mxu0 0
      %5217 = vmatpush1.bf16.msra.mxu0 0
      %5218 = vmatprep.subr.bf16.mxu0 0
      %5219 = vmatpush1.bf16.msra.mxu0 %v5202
      %5220 = vmatprep.subr.bf16.mxu0 0
      %5221 = vmatpush2.bf16.msra.mxu0 0
      %5222 = vmatprep.subr.bf16.mxu0 0
      %5223 = vmatpush2.bf16.msra.mxu0 0
      %5224 = vmatprep.subr.bf16.mxu0 0
      %5225 = vmatpush2.bf16.msra.mxu0 0
      %5226 = vmatprep.subr.bf16.mxu0 0
      %5227 = vmatpush2.bf16.msra.mxu0 0
      %5228 = vmatprep.subr.bf16.mxu0 0
      %5229 = vmatpush2.bf16.msra.mxu0 0
      %5230 = vmatprep.subr.bf16.mxu0 0
      %5231 = vmatpush2.bf16.msra.mxu0 0
      %5232 = vmatprep.subr.bf16.mxu0 0
      %5233 = vmatpush2.bf16.msra.mxu0 0
      %5234 = vmatprep.subr.bf16.mxu0 0
      %5235 = vmatpush2.bf16.msra.mxu0 0
      %5236 = vmatprep.mubr.bf16.mxu0 0
      %5237 = vmatmul.mubr.bf16.gmra.mxu0 %v4136
      %v5238 = vpop.f32.mrf.mxu0
      %v5239 = vadd.f32 0.0, %v5238
      %v5240 = vpop.f32.mrf.mxu0
      %v5241 = vpop.f32.mrf.mxu0
      %v5242 = vadd.f32 0.0, %v5241
      %v5243 = vpop.f32.mrf.mxu0
      %5244 = vmatprep.mubr.bf16.mxu0 0
      %5245 = vmatmul.mubr.bf16.gmra.mxu0 %v4139
      %v5246 = vpop.f32.mrf.mxu0
      %v5247 = vadd.f32 0.0, %v5246
      %v5248 = vpop.f32.mrf.mxu0
      %v5249 = vpop.f32.mrf.mxu0
      %v5250 = vadd.f32 0.0, %v5249
      %v5251 = vpop.f32.mrf.mxu0
      %5252 = vdwg.mxu0
      %s5253 = scalar_lea.vmem %s8, 128
      %v5254 = vld [vmem:[%s5253] sm:$0xf]
      %v5255 = vld [vmem:[%s5253 + $0x4] sm:$0xf]
      %v5256 = vld [vmem:[%s5253 + $0x8] sm:$0xf]
      %v5257 = vld [vmem:[%s5253 + $0xc] sm:$0xf]
      %v5258 = vpack.c.bf16 %v5242, %v5239
      %v5259 = vpack.c.bf16 %v5250, %v5247
      %v5264 = vunpack.c.l.b16 %v5254
      %v5265 = vunpack.c.l.b16 %v5255
      %v5266 = vunpack.c.l.b16 %v5256
      %v5267 = vunpack.c.l.b16 %v5257
      %v5268 = vpack.c.b16 %v5265, %v5264
      %v5269 = vpack.c.b16 %v5267, %v5266
      %v5271 = vsel %vm2865, %v5268, 0
      %v5274 = vsel %vm2865, %v5269, 0
      %5276 = vmatprep.subr.bf16.mxu0 0
      %5277 = vmatpush1.bf16.msra.mxu0 0
      %5278 = vmatprep.subr.bf16.mxu0 0
      %5279 = vmatpush1.bf16.msra.mxu0 0
      %5280 = vmatprep.subr.bf16.mxu0 0
      %5281 = vmatpush1.bf16.msra.mxu0 0
      %5282 = vmatprep.subr.bf16.mxu0 0
      %5283 = vmatpush1.bf16.msra.mxu0 0
      %5284 = vmatprep.subr.bf16.mxu0 0
      %5285 = vmatpush1.bf16.msra.mxu0 0
      %5286 = vmatprep.subr.bf16.mxu0 0
      %5287 = vmatpush1.bf16.msra.mxu0 0
      %5288 = vmatprep.subr.bf16.mxu0 0
      %5289 = vmatpush1.bf16.msra.mxu0 %v5259
      %5290 = vmatprep.subr.bf16.mxu0 0
      %5291 = vmatpush1.bf16.msra.mxu0 %v5258
      %5292 = vmatprep.subr.bf16.mxu0 0
      %5293 = vmatpush2.bf16.msra.mxu0 0
      %5294 = vmatprep.subr.bf16.mxu0 0
      %5295 = vmatpush2.bf16.msra.mxu0 0
      %5296 = vmatprep.subr.bf16.mxu0 0
      %5297 = vmatpush2.bf16.msra.mxu0 0
      %5298 = vmatprep.subr.bf16.mxu0 0
      %5299 = vmatpush2.bf16.msra.mxu0 0
      %5300 = vmatprep.subr.bf16.mxu0 0
      %5301 = vmatpush2.bf16.msra.mxu0 0
      %5302 = vmatprep.subr.bf16.mxu0 0
      %5303 = vmatpush2.bf16.msra.mxu0 0
      %5304 = vmatprep.subr.bf16.mxu0 0
      %5305 = vmatpush2.bf16.msra.mxu0 0
      %5306 = vmatprep.subr.bf16.mxu0 0
      %5307 = vmatpush2.bf16.msra.mxu0 0
      %5308 = vmatprep.mubr.bf16.mxu0 0
      %5309 = vmatmul.mubr.bf16.gmra.mxu0 %v5271
      %v5310 = vpop.f32.mrf.mxu0
      %v5311 = vadd.f32 0.0, %v5310
      %v5312 = vpop.f32.mrf.mxu0
      %v5313 = vpop.f32.mrf.mxu0
      %v5314 = vadd.f32 0.0, %v5313
      %v5315 = vpop.f32.mrf.mxu0
      %5316 = vmatprep.mubr.bf16.mxu0 0
      %5317 = vmatmul.mubr.bf16.gmra.mxu0 %v5274
      %v5318 = vpop.f32.mrf.mxu0
      %v5319 = vadd.f32 0.0, %v5318
      %v5320 = vpop.f32.mrf.mxu0
      %v5321 = vpop.f32.mrf.mxu0
      %v5322 = vadd.f32 0.0, %v5321
      %v5323 = vpop.f32.mrf.mxu0
      %5324 = vdwg.mxu0
      %v5325 = vadd.f32 %v5191, %v5311
      %v5326 = vadd.f32 %v5192, %v5314
      %v5327 = vadd.f32 %v5193, %v5319
      %v5328 = vadd.f32 %v5194, %v5322
      %v5329 = vld [vmem:[%s9] sm:$0xff]
      %v5330 = vld [vmem:[%s9 + $0x8] sm:$0xff]
      %v5331 = vld [vmem:[%s9 + $0x10] sm:$0xff]
      %v5332 = vld [vmem:[%s9 + $0x18] sm:$0xff]
      %5334 = vset.pattern.permute.xlu0 0
      %5335 = vperm.xlu0 %5334, %v5329
      %v5336 = vpop.permute.xlu0 %5335
      %5339 = vset.pattern.permute.xlu0 0
      %5340 = vperm.xlu0 %5339, %v5330
      %v5341 = vpop.permute.xlu0 %5340
      %5344 = vset.pattern.permute.xlu0 0
      %5345 = vperm.xlu0 %5344, %v5331
      %v5346 = vpop.permute.xlu0 %5345
      %5349 = vset.pattern.permute.xlu0 0
      %5350 = vperm.xlu0 %5349, %v5332
      %v5351 = vpop.permute.xlu0 %5350
      %v5353 = vadd.f32 %v5325, %v5336
      %v5354 = vadd.f32 %v5326, %v5341
      %v5355 = vadd.f32 %v5327, %v5346
      %v5356 = vadd.f32 %v5328, %v5351
      %v5357 = vmax.f32 %v5353, 0.0
      %v5358 = vmax.f32 %v5354, 0.0
      %v5359 = vmax.f32 %v5355, 0.0
      %v5360 = vmax.f32 %v5356, 0.0
      %v5361 = vpack.c.bf16 %v5358, %v5357
      %v5362 = vpack.c.bf16 %v5360, %v5359
      %v5363 = vld [vmem:[%s10] sm:$0xf]
      %v5364 = vld [vmem:[%s10 + $0x4] sm:$0x1]
      %v5367 = vunpack.c.l.b16 %v5363
      %v5368 = vunpack.c.l.b16 %v5364
      %v5369 = vpack.c.b16 %v5368, %v5367
      %v5371 = vsel %vm2865, %v5369, 0
      %5373 = vmatprep.subr.bf16.mxu0 0
      %5374 = vmatpush1.bf16.msra.mxu0 0
      %5375 = vmatprep.subr.bf16.mxu0 0
      %5376 = vmatpush1.bf16.msra.mxu0 0
      %5377 = vmatprep.subr.bf16.mxu0 0
      %5378 = vmatpush1.bf16.msra.mxu0 0
      %5379 = vmatprep.subr.bf16.mxu0 0
      %5380 = vmatpush1.bf16.msra.mxu0 0
      %5381 = vmatprep.subr.bf16.mxu0 0
      %5382 = vmatpush1.bf16.msra.mxu0 0
      %5383 = vmatprep.subr.bf16.mxu0 0
      %5384 = vmatpush1.bf16.msra.mxu0 0
      %5385 = vmatprep.subr.bf16.mxu0 0
      %5386 = vmatpush1.bf16.msra.mxu0 %v5362
      %5387 = vmatprep.subr.bf16.mxu0 0
      %5388 = vmatpush1.bf16.msra.mxu0 %v5361
      %5389 = vmatprep.subr.bf16.mxu0 0
      %5390 = vmatpush2.bf16.msra.mxu0 0
      %5391 = vmatprep.subr.bf16.mxu0 0
      %5392 = vmatpush2.bf16.msra.mxu0 0
      %5393 = vmatprep.subr.bf16.mxu0 0
      %5394 = vmatpush2.bf16.msra.mxu0 0
      %5395 = vmatprep.subr.bf16.mxu0 0
      %5396 = vmatpush2.bf16.msra.mxu0 0
      %5397 = vmatprep.subr.bf16.mxu0 0
      %5398 = vmatpush2.bf16.msra.mxu0 0
      %5399 = vmatprep.subr.bf16.mxu0 0
      %5400 = vmatpush2.bf16.msra.mxu0 0
      %5401 = vmatprep.subr.bf16.mxu0 0
      %5402 = vmatpush2.bf16.msra.mxu0 0
      %5403 = vmatprep.subr.bf16.mxu0 0
      %5404 = vmatpush2.bf16.msra.mxu0 0
      %5405 = vmatprep.mubr.bf16.mxu0 0
      %5406 = vmatmul.mubr.bf16.gmra.mxu0 %v5371
      %v5407 = vpop.f32.mrf.mxu0
      %v5408 = vadd.f32 0.0, %v5407
      %v5409 = vpop.f32.mrf.mxu0
      %v5410 = vpop.f32.mrf.mxu0
      %v5411 = vadd.f32 0.0, %v5410
      %v5412 = vpop.f32.mrf.mxu0
      %5413 = vdwg.mxu0
      %v5414 = vsel %vm4134, %v5408, 0.0
      %5415 = vadd.xlane.f32.xlu0 %v5414
      %v5416 = vpop.xlane.xlu0 %5415
      %vm5417 = vcmask 123904
      %v5418 = vsel %vm5417, %v5411, 0.0
      %5419 = vadd.xlane.f32.xlu0 %v5418
      %v5420 = vpop.xlane.xlu0 %5419
      %v5421 = vmul.f32 %v5416, 0.0625
      %v5422 = vmul.f32 %v5420, 0.0625
      %v5423 = vld [vmem:[%s11] sm:$0xff]
      %v5424 = vld [vmem:[%s11 + $0x8] sm:$0x3]
      %v5425 = vadd.f32 %v5421, %v5423
      %v5426 = vadd.f32 %v5422, %v5424
      %vm5427 = vcmask 7168
      %5428 = vst.msk [vmem:[%s413] sm:$0xff] %vm5427, %v5425
      %vm5429 = vcmask 1024
      %5430 = vst.msk [vmem:[%s413 + $0x8] sm:$0x3] %vm5429, %v5426
      %p5431 = scmp.lt.s32.totalorder %s23, 1
      %s5432 = scalar_select %p5431, %s23, 1
      %s5433 = smul.addr %s5432, 2
      %s5434 = smul.addr %s5433, 8
      %s5435 = scalar_lea.vmem %s12, %s5434
      // Predicated region
      $region69: #{cnn_forward.1} parent=67 // pred_check
        %p5436 = pneg %p298
      $region70: #{cnn_forward.1} parent=67 // pred_check_branch
        %5438 = sbr.rel (%p5436) target = $region72
      $region71: #{cnn_forward.1} parent=67 // pred_region
        _
      $region72: #{cnn_forward.1} parent=67 // pred_fallthru
        _
    $region68: #{cnn_forward.1} parent=5 // pred_fallthru
      _
    %p5439 = scmp.le.s32.totalorder 2, %s18
    // Predicated region
    $region73: #{cnn_forward.1} parent=5 // pred_check
      %p5440 = pneg %p5439
    $region74: #{cnn_forward.1} parent=5 // pred_check_branch
      %5442 = sbr.rel (%p5440) target = $region76
    $region75: #{cnn_forward.1} parent=5 // pred_region
      %s5443 = ssub.s32 %s18, 2
      // Predicated region
      $region77: #{cnn_forward.1} parent=75 // pred_check
        %p5444 = pneg %p304
      $region78: #{cnn_forward.1} parent=75 // pred_check_branch
        %5446 = sbr.rel (%p5444) target = $region80
      $region79: #{cnn_forward.1} parent=75 // pred_region
        %p5447 = scmp.lt.s32.totalorder %s24, 1
        %s5448 = scalar_select %p5447, %s24, 1
        %s5449 = smul.addr %s5448, 2
        %s5450 = smul.addr %s5449, 8
        %s5451 = scalar_lea.vmem %s12, %s5450
      $region80: #{cnn_forward.1} parent=75 // pred_fallthru
        _
    $region76: #{cnn_forward.1} parent=5 // pred_fallthru
      _
  $region6: #{cnn_forward.1} parent=0 // loop_footer
    %s22 = sadd.s32 1, %s18
  $region7: #{cnn_forward.1} parent=0 // loop_footer_branch
    %17 = sbr.rel target = $region3
  $region8: #{cnn_forward.1} parent=0 // loop_exit
    _

</llo_original>
